<compile_context>
chip_gen: v7x
topology: tpu7x:2x2x1
jax: 0.10.0
libtpu: 0.0.40
codegen_flags: <defaults>
</compile_context>

<pallas_src>
import functools

import jax
import jax.numpy as jnp
from jax.experimental import pallas as pl
from jax.experimental.pallas import tpu as pltpu


# ----------------------------------------------------------------------------
# Helpers
# ----------------------------------------------------------------------------

def _layernorm(x, g, b, eps):
    mu = jnp.mean(x, axis=-1, keepdims=True)
    var = jnp.mean((x - mu) ** 2, axis=-1, keepdims=True)
    return (x - mu) * jax.lax.rsqrt(var + eps) * g + b


# ----------------------------------------------------------------------------
# Kernel 1: patch embedding + [CLS] + positional embedding (grid over batch)
# ----------------------------------------------------------------------------

def _embed_kernel(xp_ref, w_ref, b_ref, cls_ref, pos_ref, o_ref):
    # xp_ref: (1, NP, C*P*P), o_ref: (1, S, D) with S = NP + 1
    patches = xp_ref[0].astype(jnp.bfloat16)                    # bf16 MXU operand
    pe = jnp.dot(patches, w_ref[...],
                 preferred_element_type=jnp.float32) + b_ref[...]
    # Assemble the whole (S, D) tile, then one unmasked full-tile store.
    tokens = jnp.concatenate([cls_ref[...], pe], axis=0) + pos_ref[...]
    o_ref[0] = tokens.astype(o_ref.dtype)


# ----------------------------------------------------------------------------
# Kernel 2: ALL transformer encoder layers fused (grid over layers, carried
#           activation in VMEM scratch)
# ----------------------------------------------------------------------------

def _vit_layers_kernel(tok_ref, ln1_g, ln1_b, wqkv, bqkv, wo, bo,
                       ln2_g, ln2_b, w1, b1, w2, b2,
                       o_ref, h_sc, *, B, S, heads, dh, scale, eps):
    layer = pl.program_id(0)
    D = heads * dh
    BS = B * S

    @pl.when(layer == 0)
    def _():
        # Load the bf16 tokens once; keep the carried activation in f32.
        h_sc[...] = tok_ref[...].reshape(BS, D).astype(jnp.float32)

    rows = h_sc[...]                                            # (B*S, D) f32

    # --- attention block (pre-LN, fused QKV projection, batch folded into M) ---
    hn = _layernorm(rows, ln1_g[0], ln1_b[0], eps)
    qkv = jnp.dot(hn.astype(jnp.bfloat16), wqkv[0],
                  preferred_element_type=jnp.float32) + bqkv[0]  # (B*S, 3D)
    q = qkv[:, :D].reshape(B, S, D)
    k = qkv[:, D:2 * D].reshape(B, S, D)
    v = qkv[:, 2 * D:].reshape(B, S, D)

    wo_v = wo[0]                                                # (D, D) bf16
    attn = jnp.zeros((BS, D), jnp.float32)
    for hh in range(heads):                                     # static unroll
        sl = slice(hh * dh, (hh + 1) * dh)
        # softmax scale folded into q at the bf16 cast (S*dh mults, not S*S)
        qh = (q[:, :, sl] * scale).astype(jnp.bfloat16)
        kh = k[:, :, sl].astype(jnp.bfloat16)
        vh = v[:, :, sl].astype(jnp.bfloat16)
        s = jnp.einsum("bqd,bkd->bqk", qh, kh,
                       preferred_element_type=jnp.float32)       # (B, S, S)
        s = s - jnp.max(s, axis=-1, keepdims=True)
        p = jnp.exp(s)
        # softmax denominator on the EUP reciprocal path (VALU divide avoided)
        p = p * pl.reciprocal(jnp.sum(p, axis=-1, keepdims=True), approx=True)
        ctx = jnp.einsum("bqk,bkd->bqd", p.astype(jnp.bfloat16), vh,
                         preferred_element_type=jnp.float32)     # (B, S, dh)
        # Accumulate ctx_h @ Wo[h*dh:(h+1)*dh, :] — no lane-dim head concat.
        attn = attn + jnp.dot(ctx.reshape(BS, dh).astype(jnp.bfloat16),
                              wo_v[sl, :],
                              preferred_element_type=jnp.float32)
    rows = rows + attn + bo[0]

    # --- MLP block (pre-LN) ---
    hn = _layernorm(rows, ln2_g[0], ln2_b[0], eps)
    m = jnp.dot(hn.astype(jnp.bfloat16), w1[0],
                preferred_element_type=jnp.float32) + b1[0]
    # TODO(synk): HF ViT uses exact (erf) GELU; tanh approximation kept here
    # for guaranteed Mosaic lowering.
    m = jax.nn.gelu(m, approximate=True)
    m = jnp.dot(m.astype(jnp.bfloat16), w2[0],
                preferred_element_type=jnp.float32) + b2[0]
    rows = rows + m

    h_sc[...] = rows                                            # carry to next layer

    @pl.when(layer == pl.num_programs(0) - 1)
    def _():
        o_ref[...] = rows.reshape(B, S, D).astype(o_ref.dtype)


# ----------------------------------------------------------------------------
# Kernel 3: final LN (CLS rows) + tanh pooler + projector + L2 normalize
# ----------------------------------------------------------------------------

def _head_kernel(cls_ref, lnf_g, lnf_b, pw, pb, w1, b1, w2, b2, o_ref, *, eps):
    x = cls_ref[...][:, 0, :].astype(jnp.float32)               # (B, D) CLS rows
    x = _layernorm(x, lnf_g[...], lnf_b[...], eps)
    x = jnp.tanh(jnp.dot(x.astype(jnp.bfloat16), pw[...],
                         preferred_element_type=jnp.float32) + pb[...])
    x = jnp.maximum(jnp.dot(x.astype(jnp.bfloat16), w1[...],
                            preferred_element_type=jnp.float32) + b1[...], 0.0)
    x = jnp.dot(x.astype(jnp.bfloat16), w2[...],
                preferred_element_type=jnp.float32) + b2[...]
    # L2 normalize via rsqrt (EUP), == torch F.normalize(dim=1, eps=1e-12)
    inv = jax.lax.rsqrt(jnp.maximum(jnp.sum(x * x, axis=-1, keepdims=True),
                                    1e-24))
    o_ref[...] = (x * inv).astype(o_ref.dtype)


# ----------------------------------------------------------------------------
# SimCLR-ViT forward (thin JAX glue, compute inside the kernels above)
# ----------------------------------------------------------------------------

def simclr_vit_forward(params, x, cfg):
    B, C, H, W = x.shape
    P, D = cfg["patch"], cfg["hidden"]
    heads, mlp, L = cfg["heads"], cfg["mlp"], cfg["layers"]
    ph, pd = cfg["proj_hidden"], cfg["proj_dim"]
    nh, nw = H // P, W // P
    NP = nh * nw
    S = NP + 1
    dh = D // heads
    scale = 1.0 / float(dh) ** 0.5
    cpp = C * P * P
    eps = 1e-12   # layer_norm_eps of google/vit-base-patch16-224-in21k

    # NCHW -> (B, NP, C*P*P), (C, ph, pw)-major per patch — matches a torch
    # Conv2d(kernel=P, stride=P) weight flattened as weight.reshape(D, -1).T
    xp = x.reshape(B, C, nh, P, nw, P)
    xp = jnp.transpose(xp, (0, 2, 4, 1, 3, 5)).reshape(B, NP, cpp)

    # ---- kernel 1: patch embed + CLS + positional embedding ----
    tokens = pl.pallas_call(
        _embed_kernel,
        out_shape=jax.ShapeDtypeStruct((B, S, D), jnp.bfloat16),  # bf16 carry
        grid=(B,),
        in_specs=[pl.BlockSpec((1, NP, cpp), lambda b: (b, 0, 0)),
                  pl.BlockSpec((cpp, D), lambda b: (0, 0)),
                  pl.BlockSpec((1, D), lambda b: (0, 0)),
                  pl.BlockSpec((1, D), lambda b: (0, 0)),
                  pl.BlockSpec((S, D), lambda b: (0, 0))],
        out_specs=pl.BlockSpec((1, S, D), lambda b: (b, 0, 0)),
        compiler_params=pltpu.CompilerParams(
            dimension_semantics=("parallel",)),
    )(xp, params["patch_w"], params["patch_b"], params["cls"], params["pos"])

    # ---- kernel 2: all transformer layers fused (grid over layers) ----
    def wspec(*dims):
        return pl.BlockSpec((1,) + dims, lambda l: (l, 0, 0))

    tok_spec = pl.BlockSpec((B, S, D), lambda l: (0, 0, 0))      # resident

    h = pl.pallas_call(
        functools.partial(_vit_layers_kernel, B=B, S=S, heads=heads, dh=dh,
                          scale=scale, eps=eps),
        out_shape=jax.ShapeDtypeStruct((B, S, D), jnp.bfloat16),
        grid=(L,),
        in_specs=[tok_spec,
                  wspec(1, D), wspec(1, D),            # ln1 g/b
                  wspec(D, 3 * D), wspec(1, 3 * D),    # fused qkv w/b
                  wspec(D, D), wspec(1, D),            # out-proj w/b
                  wspec(1, D), wspec(1, D),            # ln2 g/b
                  wspec(D, mlp), wspec(1, mlp),        # fc1 w/b
                  wspec(mlp, D), wspec(1, D)],         # fc2 w/b
        out_specs=tok_spec,
        scratch_shapes=[pltpu.VMEM((B * S, D), jnp.float32)],    # carried acts
        compiler_params=pltpu.CompilerParams(
            dimension_semantics=("arbitrary",),        # layers are sequential
            # Re-derived for v7x's 64 MiB/TC VMEM (headroom left); also lifts
            # v5e's 16 MiB default scoped limit.
            vmem_limit_bytes=48 * 1024 * 1024),
    )(tokens, params["ln1_g"], params["ln1_b"],
      params["qkv_w"], params["qkv_b"], params["o_w"], params["o_b"],
      params["ln2_g"], params["ln2_b"],
      params["fc1_w"], params["fc1_b"], params["fc2_w"], params["fc2_b"])

    # ---- kernel 3: head — CLS rows selected via BlockSpec (no XLA slice) ----
    cls_rows = 8 if S >= 8 else S    # keep the sublane dim 8-aligned
    out = pl.pallas_call(
        functools.partial(_head_kernel, eps=eps),
        out_shape=jax.ShapeDtypeStruct((B, pd), jnp.float32),
        grid=(1,),
        in_specs=[pl.BlockSpec((B, cls_rows, D), lambda i: (0, 0, 0)),
                  pl.BlockSpec((1, D), lambda i: (0, 0)),
                  pl.BlockSpec((1, D), lambda i: (0, 0)),
                  pl.BlockSpec((D, D), lambda i: (0, 0)),
                  pl.BlockSpec((1, D), lambda i: (0, 0)),
                  pl.BlockSpec((D, ph), lambda i: (0, 0)),
                  pl.BlockSpec((1, ph), lambda i: (0, 0)),
                  pl.BlockSpec((ph, pd), lambda i: (0, 0)),
                  pl.BlockSpec((1, pd), lambda i: (0, 0))],
        out_specs=pl.BlockSpec((B, pd), lambda i: (0, 0)),
    )(h, params["ln_f_g"], params["ln_f_b"],
      params["pool_w"], params["pool_b"],
      params["proj1_w"], params["proj1_b"],
      params["proj2_w"], params["proj2_b"])
    return out


# ----------------------------------------------------------------------------
# Deterministic parameter init (scaled-down ViT-like config, bf16 weights,
# per-layer tensors stacked with a leading (L, ...) axis for the fused kernel)
# ----------------------------------------------------------------------------

def init_params(key, cfg):
    D, C, P = cfg["hidden"], cfg["channels"], cfg["patch"]
    nh, nw = cfg["img_h"] // P, cfg["img_w"] // P
    S = nh * nw + 1
    mlp, ph, pd, L = cfg["mlp"], cfg["proj_hidden"], cfg["proj_dim"], cfg["layers"]
    cpp = C * P * P

    keys = iter(jax.random.split(key, 64))

    def nrm(shape, dtype=jnp.bfloat16, std=0.02):
        return (std * jax.random.normal(next(keys), shape, jnp.float32)).astype(dtype)

    def zeros(shape):
        return jnp.zeros(shape, jnp.float32)

    def ones(shape):
        return jnp.ones(shape, jnp.float32)

    return dict(
        # embedding
        patch_w=nrm((cpp, D)), patch_b=zeros((1, D)),
        cls=nrm((1, D), jnp.float32), pos=nrm((S, D), jnp.float32),
        # transformer layers, stacked along a leading L axis (bf16 weights)
        ln1_g=ones((L, 1, D)), ln1_b=zeros((L, 1, D)),
        qkv_w=nrm((L, D, 3 * D)), qkv_b=zeros((L, 1, 3 * D)),   # fused Q|K|V
        o_w=nrm((L, D, D)), o_b=zeros((L, 1, D)),
        ln2_g=ones((L, 1, D)), ln2_b=zeros((L, 1, D)),
        fc1_w=nrm((L, D, mlp)), fc1_b=zeros((L, 1, mlp)),
        fc2_w=nrm((L, mlp, D)), fc2_b=zeros((L, 1, D)),
        # final LN + pooler + projector (512 hidden / 128 out, as in the module)
        ln_f_g=ones((1, D)), ln_f_b=zeros((1, D)),
        pool_w=nrm((D, D)), pool_b=zeros((1, D)),
        proj1_w=nrm((D, ph)), proj1_b=zeros((1, ph)),
        proj2_w=nrm((ph, pd)), proj2_b=zeros((1, pd)),
    )


if __name__ == "__main__":
    # Scaled-down, lane-dense config.  24x40 / patch 8 gives 15 patches, so the
    # sequence length S = 16 is sublane-aligned (no masked stores / relayouts).
    # projector 512 -> 128 matches the PyTorch module.
    cfg = dict(img_h=24, img_w=40, patch=8, channels=3, hidden=128, heads=4,
               layers=2, mlp=256, proj_hidden=512, proj_dim=128)

    root = jax.random.PRNGKey(0)
    k_param, k_x = jax.random.split(root)
    params = init_params(k_param, cfg)
    x = jax.random.normal(
        k_x, (2, cfg["channels"], cfg["img_h"], cfg["img_w"]), jnp.float32)

    fwd = jax.jit(functools.partial(simclr_vit_forward, cfg=cfg))
    out = jax.block_until_ready(fwd(params, x))

    assert out.shape == (2, cfg["proj_dim"])
    assert bool(jnp.all(jnp.isfinite(out)))
    norms = jnp.linalg.norm(out, axis=1)
    assert bool(jnp.all(jnp.abs(norms - 1.0) < 1e-3))
    print("KERNEL_OK")
</pallas_src>

<mosaic_0001>
module attributes {stable_mosaic.version = 11 : i64} {
  func.func @_embed_kernel(%arg0: i32, %arg1: memref<1x15x192xf32, #tpu.memory_space<vmem>>, %arg2: memref<192x128xbf16, #tpu.memory_space<vmem>>, %arg3: memref<1x128xf32, #tpu.memory_space<vmem>>, %arg4: memref<1x128xf32, #tpu.memory_space<vmem>>, %arg5: memref<16x128xf32, #tpu.memory_space<vmem>>, %arg6: memref<1x16x128xbf16, #tpu.memory_space<vmem>>) attributes {dimension_semantics = [#tpu.dimension_semantics<parallel>], iteration_bounds = array<i64: 2>, scalar_prefetch = 0 : i64, scratch_operands = 0 : i64, tpu.core_type = #tpu.core_type<tc>, window_params = [{transform_indices = @transform_0, window_bounds = array<i64: 1, 15, 192>}, {pipeline_mode = #tpu.pipeline_mode<synchronous>, transform_indices = @transform_1, window_bounds = array<i64: 192, 128>}, {pipeline_mode = #tpu.pipeline_mode<synchronous>, transform_indices = @transform_2, window_bounds = array<i64: 1, 128>}, {pipeline_mode = #tpu.pipeline_mode<synchronous>, transform_indices = @transform_3, window_bounds = array<i64: 1, 128>}, {pipeline_mode = #tpu.pipeline_mode<synchronous>, transform_indices = @transform_4, window_bounds = array<i64: 16, 128>}, {transform_indices = @transform_5, window_bounds = array<i64: 1, 16, 128>}]} {
    %c0 = arith.constant 0 : index
    %c0_0 = arith.constant 0 : index
    %c0_1 = arith.constant 0 : index
    %0 = vector.load %arg1[%c0, %c0_0, %c0_1] : memref<1x15x192xf32, #tpu.memory_space<vmem>>, vector<1x15x192xf32>
    %1 = vector.shape_cast %0 : vector<1x15x192xf32> to vector<15x192xf32>
    %2 = arith.truncf %1 : vector<15x192xf32> to vector<15x192xbf16>
    %c0_2 = arith.constant 0 : index
    %c0_3 = arith.constant 0 : index
    %3 = vector.load %arg2[%c0_2, %c0_3] : memref<192x128xbf16, #tpu.memory_space<vmem>>, vector<192x128xbf16>
    %cst = arith.constant dense<0.000000e+00> : vector<15x128xf32>
    %4 = tpu.matmul %2, %3, %cst {dimension_numbers = #tpu.dot_dimension_numbers<[1], [0], [0], [1], [0, 0, 1, 1], [], []>} : vector<15x192xbf16>, vector<192x128xbf16>, vector<15x128xf32> -> vector<15x128xf32>
    %c0_4 = arith.constant 0 : index
    %c0_5 = arith.constant 0 : index
    %5 = vector.load %arg3[%c0_4, %c0_5] : memref<1x128xf32, #tpu.memory_space<vmem>>, vector<1x128xf32>
    %6 = vector.broadcast %5 : vector<1x128xf32> to vector<15x128xf32>
    %7 = arith.addf %4, %6 : vector<15x128xf32>
    %c0_6 = arith.constant 0 : index
    %c0_7 = arith.constant 0 : index
    %8 = vector.load %arg4[%c0_6, %c0_7] : memref<1x128xf32, #tpu.memory_space<vmem>>, vector<1x128xf32>
    %9 = tpu.concatenate %8, %7 in 0 : vector<1x128xf32>, vector<15x128xf32> -> vector<16x128xf32>
    %c0_8 = arith.constant 0 : index
    %c0_9 = arith.constant 0 : index
    %10 = vector.load %arg5[%c0_8, %c0_9] : memref<16x128xf32, #tpu.memory_space<vmem>>, vector<16x128xf32>
    %11 = arith.addf %9, %10 : vector<16x128xf32>
    %12 = arith.truncf %11 : vector<16x128xf32> to vector<16x128xbf16>
    %c0_10 = arith.constant 0 : index
    %c0_11 = arith.constant 0 : index
    %c0_12 = arith.constant 0 : index
    %13 = vector.load %arg6[%c0_10, %c0_11, %c0_12] : memref<1x16x128xbf16, #tpu.memory_space<vmem>>, vector<1x16x128xbf16>
    %14 = vector.shape_cast %13 : vector<1x16x128xbf16> to vector<16x128xbf16>
    %15 = vector.shape_cast %12 : vector<16x128xbf16> to vector<1x16x128xbf16>
    tpu.vector_store %arg6[%c0_10, %c0_11, %c0_12], %15 {strides = array<i32>} : memref<1x16x128xbf16, #tpu.memory_space<vmem>>, vector<1x16x128xbf16>,
    return
  }
  func.func @transform_0(%arg0: i32) -> (i32, i32, i32) {
    %c0_i32 = arith.constant 0 : i32
    %c0_i32_0 = arith.constant 0 : i32
    %c0_i32_1 = arith.constant 0 : i32
    return %arg0, %c0_i32, %c0_i32_0 : i32, i32, i32
  }
  func.func @transform_1(%arg0: i32) -> (i32, i32) {
    %c0_i32 = arith.constant 0 : i32
    %c0_i32_0 = arith.constant 0 : i32
    %c0_i32_1 = arith.constant 0 : i32
    return %c0_i32, %c0_i32_0 : i32, i32
  }
  func.func @transform_2(%arg0: i32) -> (i32, i32) {
    %c0_i32 = arith.constant 0 : i32
    %c0_i32_0 = arith.constant 0 : i32
    %c0_i32_1 = arith.constant 0 : i32
    return %c0_i32, %c0_i32_0 : i32, i32
  }
  func.func @transform_3(%arg0: i32) -> (i32, i32) {
    %c0_i32 = arith.constant 0 : i32
    %c0_i32_0 = arith.constant 0 : i32
    %c0_i32_1 = arith.constant 0 : i32
    return %c0_i32, %c0_i32_0 : i32, i32
  }
  func.func @transform_4(%arg0: i32) -> (i32, i32) {
    %c0_i32 = arith.constant 0 : i32
    %c0_i32_0 = arith.constant 0 : i32
    %c0_i32_1 = arith.constant 0 : i32
    return %c0_i32, %c0_i32_0 : i32, i32
  }
  func.func @transform_5(%arg0: i32) -> (i32, i32, i32) {
    %c0_i32 = arith.constant 0 : i32
    %c0_i32_0 = arith.constant 0 : i32
    %c0_i32_1 = arith.constant 0 : i32
    return %arg0, %c0_i32, %c0_i32_0 : i32, i32, i32
  }
}

module attributes {stable_mosaic.version = 11 : i64} {
  func.func @_vit_layers_kernel(%arg0: i32, %arg1: memref<2x16x128xbf16, #tpu.memory_space<vmem>>, %arg2: memref<1x1x128xf32, #tpu.memory_space<vmem>>, %arg3: memref<1x1x128xf32, #tpu.memory_space<vmem>>, %arg4: memref<1x128x384xbf16, #tpu.memory_space<vmem>>, %arg5: memref<1x1x384xf32, #tpu.memory_space<vmem>>, %arg6: memref<1x128x128xbf16, #tpu.memory_space<vmem>>, %arg7: memref<1x1x128xf32, #tpu.memory_space<vmem>>, %arg8: memref<1x1x128xf32, #tpu.memory_space<vmem>>, %arg9: memref<1x1x128xf32, #tpu.memory_space<vmem>>, %arg10: memref<1x128x256xbf16, #tpu.memory_space<vmem>>, %arg11: memref<1x1x256xf32, #tpu.memory_space<vmem>>, %arg12: memref<1x256x128xbf16, #tpu.memory_space<vmem>>, %arg13: memref<1x1x128xf32, #tpu.memory_space<vmem>>, %arg14: memref<2x16x128xbf16, #tpu.memory_space<vmem>>, %arg15: memref<32x128xf32, #tpu.memory_space<vmem>>) attributes {dimension_semantics = [#tpu.dimension_semantics<arbitrary>], iteration_bounds = array<i64: 2>, scalar_prefetch = 0 : i64, scratch_operands = 1 : i64, tpu.core_type = #tpu.core_type<tc>, window_params = [{pipeline_mode = #tpu.pipeline_mode<synchronous>, transform_indices = @transform_0, window_bounds = array<i64: 2, 16, 128>}, {transform_indices = @transform_1, window_bounds = array<i64: 1, 1, 128>}, {transform_indices = @transform_2, window_bounds = array<i64: 1, 1, 128>}, {transform_indices = @transform_3, window_bounds = array<i64: 1, 128, 384>}, {transform_indices = @transform_4, window_bounds = array<i64: 1, 1, 384>}, {transform_indices = @transform_5, window_bounds = array<i64: 1, 128, 128>}, {transform_indices = @transform_6, window_bounds = array<i64: 1, 1, 128>}, {transform_indices = @transform_7, window_bounds = array<i64: 1, 1, 128>}, {transform_indices = @transform_8, window_bounds = array<i64: 1, 1, 128>}, {transform_indices = @transform_9, window_bounds = array<i64: 1, 128, 256>}, {transform_indices = @transform_10, window_bounds = array<i64: 1, 1, 256>}, {transform_indices = @transform_11, window_bounds = array<i64: 1, 256, 128>}, {transform_indices = @transform_12, window_bounds = array<i64: 1, 1, 128>}, {pipeline_mode = #tpu.pipeline_mode<synchronous>, transform_indices = @transform_13, window_bounds = array<i64: 2, 16, 128>}]} {
    %c0_i32 = arith.constant 0 : i32
    %0 = arith.cmpi eq, %arg0, %c0_i32 : i32
    %1 = arith.extui %0 : i1 to i32
    %c0_i32_0 = arith.constant 0 : i32
    %2 = arith.cmpi ne, %1, %c0_i32_0 : i32
    scf.if %2 {
      %c0_82 = arith.constant 0 : index
      %c0_83 = arith.constant 0 : index
      %c0_84 = arith.constant 0 : index
      %216 = vector.load %arg1[%c0_82, %c0_83, %c0_84] : memref<2x16x128xbf16, #tpu.memory_space<vmem>>, vector<2x16x128xbf16>
      %217 = vector.shape_cast %216 : vector<2x16x128xbf16> to vector<32x128xbf16>
      %218 = arith.extf %217 : vector<32x128xbf16> to vector<32x128xf32>
      %c0_85 = arith.constant 0 : index
      %c0_86 = arith.constant 0 : index
      %219 = vector.load %arg15[%c0_85, %c0_86] : memref<32x128xf32, #tpu.memory_space<vmem>>, vector<32x128xf32>
      tpu.vector_store %arg15[%c0_85, %c0_86], %218 {strides = array<i32>} : memref<32x128xf32, #tpu.memory_space<vmem>>, vector<32x128xf32>,
    } else {
    }
    %c0 = arith.constant 0 : index
    %c0_1 = arith.constant 0 : index
    %3 = vector.load %arg15[%c0, %c0_1] : memref<32x128xf32, #tpu.memory_space<vmem>>, vector<32x128xf32>
    %c0_2 = arith.constant 0 : index
    %c0_3 = arith.constant 0 : index
    %c0_4 = arith.constant 0 : index
    %4 = vector.load %arg2[%c0_2, %c0_3, %c0_4] : memref<1x1x128xf32, #tpu.memory_space<vmem>>, vector<1x1x128xf32>
    %5 = vector.shape_cast %4 : vector<1x1x128xf32> to vector<1x128xf32>
    %c0_5 = arith.constant 0 : index
    %c0_6 = arith.constant 0 : index
    %c0_7 = arith.constant 0 : index
    %6 = vector.load %arg3[%c0_5, %c0_6, %c0_7] : memref<1x1x128xf32, #tpu.memory_space<vmem>>, vector<1x1x128xf32>
    %7 = vector.shape_cast %6 : vector<1x1x128xf32> to vector<1x128xf32>
    %cst = arith.constant dense<0.000000e+00> : vector<32xf32>
    %8 = vector.multi_reduction <add>, %3, %cst [1] : vector<32x128xf32> to vector<32xf32>
    %9 = vector.shape_cast %8 : vector<32xf32> to vector<32x1xf32>
    %cst_8 = arith.constant 1.280000e+02 : f32
    %10 = vector.broadcast %cst_8 : f32 to vector<32x1xf32>
    %11 = arith.divf %9, %10 : vector<32x1xf32>
    %12 = vector.broadcast %11 : vector<32x1xf32> to vector<32x128xf32>
    %13 = arith.subf %3, %12 : vector<32x128xf32>
    %14 = arith.mulf %13, %13 : vector<32x128xf32>
    %cst_9 = arith.constant dense<0.000000e+00> : vector<32xf32>
    %15 = vector.multi_reduction <add>, %14, %cst_9 [1] : vector<32x128xf32> to vector<32xf32>
    %16 = vector.shape_cast %15 : vector<32xf32> to vector<32x1xf32>
    %cst_10 = arith.constant 1.280000e+02 : f32
    %17 = vector.broadcast %cst_10 : f32 to vector<32x1xf32>
    %18 = arith.divf %16, %17 : vector<32x1xf32>
    %19 = vector.broadcast %11 : vector<32x1xf32> to vector<32x128xf32>
    %20 = arith.subf %3, %19 : vector<32x128xf32>
    %cst_11 = arith.constant 9.99999996E-13 : f32
    %21 = vector.broadcast %cst_11 : f32 to vector<32x1xf32>
    %22 = arith.addf %18, %21 : vector<32x1xf32>
    %23 = math.rsqrt %22 : vector<32x1xf32>
    %24 = vector.broadcast %23 : vector<32x1xf32> to vector<32x128xf32>
    %25 = arith.mulf %20, %24 : vector<32x128xf32>
    %26 = vector.broadcast %5 : vector<1x128xf32> to vector<32x128xf32>
    %27 = arith.mulf %25, %26 : vector<32x128xf32>
    %28 = vector.broadcast %7 : vector<1x128xf32> to vector<32x128xf32>
    %29 = arith.addf %27, %28 : vector<32x128xf32>
    %30 = arith.truncf %29 : vector<32x128xf32> to vector<32x128xbf16>
    %c0_12 = arith.constant 0 : index
    %c0_13 = arith.constant 0 : index
    %c0_14 = arith.constant 0 : index
    %31 = vector.load %arg4[%c0_12, %c0_13, %c0_14] : memref<1x128x384xbf16, #tpu.memory_space<vmem>>, vector<1x128x384xbf16>
    %32 = vector.shape_cast %31 : vector<1x128x384xbf16> to vector<128x384xbf16>
    %cst_15 = arith.constant dense<0.000000e+00> : vector<32x384xf32>
    %33 = tpu.matmul %30, %32, %cst_15 {dimension_numbers = #tpu.dot_dimension_numbers<[1], [0], [0], [1], [0, 0, 1, 1], [], []>} : vector<32x128xbf16>, vector<128x384xbf16>, vector<32x384xf32> -> vector<32x384xf32>
    %c0_16 = arith.constant 0 : index
    %c0_17 = arith.constant 0 : index
    %c0_18 = arith.constant 0 : index
    %34 = vector.load %arg5[%c0_16, %c0_17, %c0_18] : memref<1x1x384xf32, #tpu.memory_space<vmem>>, vector<1x1x384xf32>
    %35 = vector.shape_cast %34 : vector<1x1x384xf32> to vector<1x384xf32>
    %36 = vector.broadcast %35 : vector<1x384xf32> to vector<32x384xf32>
    %37 = arith.addf %33, %36 : vector<32x384xf32>
    %38 = vector.extract_strided_slice %37 {offsets = [0, 0], sizes = [32, 128], strides = [1, 1]} : vector<32x384xf32> to vector<32x128xf32>
    %39 = vector.shape_cast %38 : vector<32x128xf32> to vector<2x16x128xf32>
    %40 = vector.extract_strided_slice %37 {offsets = [0, 128], sizes = [32, 128], strides = [1, 1]} : vector<32x384xf32> to vector<32x128xf32>
    %41 = vector.shape_cast %40 : vector<32x128xf32> to vector<2x16x128xf32>
    %42 = vector.extract_strided_slice %37 {offsets = [0, 256], sizes = [32, 128], strides = [1, 1]} : vector<32x384xf32> to vector<32x128xf32>
    %43 = vector.shape_cast %42 : vector<32x128xf32> to vector<2x16x128xf32>
    %c0_19 = arith.constant 0 : index
    %c0_20 = arith.constant 0 : index
    %c0_21 = arith.constant 0 : index
    %44 = vector.load %arg6[%c0_19, %c0_20, %c0_21] : memref<1x128x128xbf16, #tpu.memory_space<vmem>>, vector<1x128x128xbf16>
    %45 = vector.shape_cast %44 : vector<1x128x128xbf16> to vector<128x128xbf16>
    %cst_22 = arith.constant 0.000000e+00 : f32
    %46 = vector.broadcast %cst_22 : f32 to vector<32x128xf32>
    %47 = vector.extract_strided_slice %39 {offsets = [0, 0, 0], sizes = [2, 16, 32], strides = [1, 1, 1]} : vector<2x16x128xf32> to vector<2x16x32xf32>
    %cst_23 = arith.constant 0.176776692 : f32
    %48 = vector.broadcast %cst_23 : f32 to vector<2x16x32xf32>
    %49 = arith.mulf %47, %48 : vector<2x16x32xf32>
    %50 = arith.truncf %49 : vector<2x16x32xf32> to vector<2x16x32xbf16>
    %51 = vector.extract_strided_slice %41 {offsets = [0, 0, 0], sizes = [2, 16, 32], strides = [1, 1, 1]} : vector<2x16x128xf32> to vector<2x16x32xf32>
    %52 = arith.truncf %51 : vector<2x16x32xf32> to vector<2x16x32xbf16>
    %53 = vector.extract_strided_slice %43 {offsets = [0, 0, 0], sizes = [2, 16, 32], strides = [1, 1, 1]} : vector<2x16x128xf32> to vector<2x16x32xf32>
    %54 = arith.truncf %53 : vector<2x16x32xf32> to vector<2x16x32xbf16>
    "tpu.trace_start"() <{level = 10 : i32, message = "bqd,bkd->bqk"}> : () -> ()
    %cst_24 = arith.constant dense<0.000000e+00> : vector<2x16x16xf32>
    %55 = tpu.matmul %50, %52, %cst_24 {dimension_numbers = #tpu.dot_dimension_numbers<[2], [2], [1], [1], [0, 0, 0, 1, 1, 1], [0], [0]>} : vector<2x16x32xbf16>, vector<2x16x32xbf16>, vector<2x16x16xf32> -> vector<2x16x16xf32>
    "tpu.trace_stop"() : () -> ()
    %cst_25 = arith.constant dense<0xFF800000> : vector<2x16xf32>
    %56 = vector.multi_reduction <maximumf>, %55, %cst_25 [2] : vector<2x16x16xf32> to vector<2x16xf32>
    %57 = vector.shape_cast %56 : vector<2x16xf32> to vector<2x16x1xf32>
    %58 = vector.broadcast %57 : vector<2x16x1xf32> to vector<2x16x16xf32>
    %59 = arith.subf %55, %58 : vector<2x16x16xf32>
    %60 = math.exp %59 : vector<2x16x16xf32>
    %cst_26 = arith.constant dense<0.000000e+00> : vector<2x16xf32>
    %61 = vector.multi_reduction <add>, %60, %cst_26 [2] : vector<2x16x16xf32> to vector<2x16xf32>
    %62 = vector.shape_cast %61 : vector<2x16xf32> to vector<2x16x1xf32>
    %63 = tpu.reciprocal %62 {approx = true} : vector<2x16x1xf32> -> vector<2x16x1xf32>
    %64 = vector.broadcast %63 : vector<2x16x1xf32> to vector<2x16x16xf32>
    %65 = arith.mulf %60, %64 : vector<2x16x16xf32>
    %66 = arith.truncf %65 : vector<2x16x16xf32> to vector<2x16x16xbf16>
    "tpu.trace_start"() <{level = 10 : i32, message = "bqk,bkd->bqd"}> : () -> ()
    %cst_27 = arith.constant dense<0.000000e+00> : vector<2x16x32xf32>
    %67 = tpu.matmul %66, %54, %cst_27 {dimension_numbers = #tpu.dot_dimension_numbers<[2], [1], [1], [2], [0, 0, 0, 1, 1, 2], [0], [0]>} : vector<2x16x16xbf16>, vector<2x16x32xbf16>, vector<2x16x32xf32> -> vector<2x16x32xf32>
    "tpu.trace_stop"() : () -> ()
    %68 = vector.shape_cast %67 : vector<2x16x32xf32> to vector<32x32xf32>
    %69 = arith.truncf %68 : vector<32x32xf32> to vector<32x32xbf16>
    %70 = vector.extract_strided_slice %45 {offsets = [0, 0], sizes = [32, 128], strides = [1, 1]} : vector<128x128xbf16> to vector<32x128xbf16>
    %cst_28 = arith.constant dense<0.000000e+00> : vector<32x128xf32>
    %71 = tpu.matmul %69, %70, %cst_28 {dimension_numbers = #tpu.dot_dimension_numbers<[1], [0], [0], [1], [0, 0, 1, 1], [], []>} : vector<32x32xbf16>, vector<32x128xbf16>, vector<32x128xf32> -> vector<32x128xf32>
    %72 = arith.addf %46, %71 : vector<32x128xf32>
    %73 = vector.extract_strided_slice %39 {offsets = [0, 0, 32], sizes = [2, 16, 32], strides = [1, 1, 1]} : vector<2x16x128xf32> to vector<2x16x32xf32>
    %cst_29 = arith.constant 0.176776692 : f32
    %74 = vector.broadcast %cst_29 : f32 to vector<2x16x32xf32>
    %75 = arith.mulf %73, %74 : vector<2x16x32xf32>
    %76 = arith.truncf %75 : vector<2x16x32xf32> to vector<2x16x32xbf16>
    %77 = vector.extract_strided_slice %41 {offsets = [0, 0, 32], sizes = [2, 16, 32], strides = [1, 1, 1]} : vector<2x16x128xf32> to vector<2x16x32xf32>
    %78 = arith.truncf %77 : vector<2x16x32xf32> to vector<2x16x32xbf16>
    %79 = vector.extract_strided_slice %43 {offsets = [0, 0, 32], sizes = [2, 16, 32], strides = [1, 1, 1]} : vector<2x16x128xf32> to vector<2x16x32xf32>
    %80 = arith.truncf %79 : vector<2x16x32xf32> to vector<2x16x32xbf16>
    "tpu.trace_start"() <{level = 10 : i32, message = "bqd,bkd->bqk"}> : () -> ()
    %cst_30 = arith.constant dense<0.000000e+00> : vector<2x16x16xf32>
    %81 = tpu.matmul %76, %78, %cst_30 {dimension_numbers = #tpu.dot_dimension_numbers<[2], [2], [1], [1], [0, 0, 0, 1, 1, 1], [0], [0]>} : vector<2x16x32xbf16>, vector<2x16x32xbf16>, vector<2x16x16xf32> -> vector<2x16x16xf32>
    "tpu.trace_stop"() : () -> ()
    %cst_31 = arith.constant dense<0xFF800000> : vector<2x16xf32>
    %82 = vector.multi_reduction <maximumf>, %81, %cst_31 [2] : vector<2x16x16xf32> to vector<2x16xf32>
    %83 = vector.shape_cast %82 : vector<2x16xf32> to vector<2x16x1xf32>
    %84 = vector.broadcast %83 : vector<2x16x1xf32> to vector<2x16x16xf32>
    %85 = arith.subf %81, %84 : vector<2x16x16xf32>
    %86 = math.exp %85 : vector<2x16x16xf32>
    %cst_32 = arith.constant dense<0.000000e+00> : vector<2x16xf32>
    %87 = vector.multi_reduction <add>, %86, %cst_32 [2] : vector<2x16x16xf32> to vector<2x16xf32>
    %88 = vector.shape_cast %87 : vector<2x16xf32> to vector<2x16x1xf32>
    %89 = tpu.reciprocal %88 {approx = true} : vector<2x16x1xf32> -> vector<2x16x1xf32>
    %90 = vector.broadcast %89 : vector<2x16x1xf32> to vector<2x16x16xf32>
    %91 = arith.mulf %86, %90 : vector<2x16x16xf32>
    %92 = arith.truncf %91 : vector<2x16x16xf32> to vector<2x16x16xbf16>
    "tpu.trace_start"() <{level = 10 : i32, message = "bqk,bkd->bqd"}> : () -> ()
    %cst_33 = arith.constant dense<0.000000e+00> : vector<2x16x32xf32>
    %93 = tpu.matmul %92, %80, %cst_33 {dimension_numbers = #tpu.dot_dimension_numbers<[2], [1], [1], [2], [0, 0, 0, 1, 1, 2], [0], [0]>} : vector<2x16x16xbf16>, vector<2x16x32xbf16>, vector<2x16x32xf32> -> vector<2x16x32xf32>
    "tpu.trace_stop"() : () -> ()
    %94 = vector.shape_cast %93 : vector<2x16x32xf32> to vector<32x32xf32>
    %95 = arith.truncf %94 : vector<32x32xf32> to vector<32x32xbf16>
    %96 = vector.extract_strided_slice %45 {offsets = [32, 0], sizes = [32, 128], strides = [1, 1]} : vector<128x128xbf16> to vector<32x128xbf16>
    %cst_34 = arith.constant dense<0.000000e+00> : vector<32x128xf32>
    %97 = tpu.matmul %95, %96, %cst_34 {dimension_numbers = #tpu.dot_dimension_numbers<[1], [0], [0], [1], [0, 0, 1, 1], [], []>} : vector<32x32xbf16>, vector<32x128xbf16>, vector<32x128xf32> -> vector<32x128xf32>
    %98 = arith.addf %72, %97 : vector<32x128xf32>
    %99 = vector.extract_strided_slice %39 {offsets = [0, 0, 64], sizes = [2, 16, 32], strides = [1, 1, 1]} : vector<2x16x128xf32> to vector<2x16x32xf32>
    %cst_35 = arith.constant 0.176776692 : f32
    %100 = vector.broadcast %cst_35 : f32 to vector<2x16x32xf32>
    %101 = arith.mulf %99, %100 : vector<2x16x32xf32>
    %102 = arith.truncf %101 : vector<2x16x32xf32> to vector<2x16x32xbf16>
    %103 = vector.extract_strided_slice %41 {offsets = [0, 0, 64], sizes = [2, 16, 32], strides = [1, 1, 1]} : vector<2x16x128xf32> to vector<2x16x32xf32>
    %104 = arith.truncf %103 : vector<2x16x32xf32> to vector<2x16x32xbf16>
    %105 = vector.extract_strided_slice %43 {offsets = [0, 0, 64], sizes = [2, 16, 32], strides = [1, 1, 1]} : vector<2x16x128xf32> to vector<2x16x32xf32>
    %106 = arith.truncf %105 : vector<2x16x32xf32> to vector<2x16x32xbf16>
    "tpu.trace_start"() <{level = 10 : i32, message = "bqd,bkd->bqk"}> : () -> ()
    %cst_36 = arith.constant dense<0.000000e+00> : vector<2x16x16xf32>
    %107 = tpu.matmul %102, %104, %cst_36 {dimension_numbers = #tpu.dot_dimension_numbers<[2], [2], [1], [1], [0, 0, 0, 1, 1, 1], [0], [0]>} : vector<2x16x32xbf16>, vector<2x16x32xbf16>, vector<2x16x16xf32> -> vector<2x16x16xf32>
    "tpu.trace_stop"() : () -> ()
    %cst_37 = arith.constant dense<0xFF800000> : vector<2x16xf32>
    %108 = vector.multi_reduction <maximumf>, %107, %cst_37 [2] : vector<2x16x16xf32> to vector<2x16xf32>
    %109 = vector.shape_cast %108 : vector<2x16xf32> to vector<2x16x1xf32>
    %110 = vector.broadcast %109 : vector<2x16x1xf32> to vector<2x16x16xf32>
    %111 = arith.subf %107, %110 : vector<2x16x16xf32>
    %112 = math.exp %111 : vector<2x16x16xf32>
    %cst_38 = arith.constant dense<0.000000e+00> : vector<2x16xf32>
    %113 = vector.multi_reduction <add>, %112, %cst_38 [2] : vector<2x16x16xf32> to vector<2x16xf32>
    %114 = vector.shape_cast %113 : vector<2x16xf32> to vector<2x16x1xf32>
    %115 = tpu.reciprocal %114 {approx = true} : vector<2x16x1xf32> -> vector<2x16x1xf32>
    %116 = vector.broadcast %115 : vector<2x16x1xf32> to vector<2x16x16xf32>
    %117 = arith.mulf %112, %116 : vector<2x16x16xf32>
    %118 = arith.truncf %117 : vector<2x16x16xf32> to vector<2x16x16xbf16>
    "tpu.trace_start"() <{level = 10 : i32, message = "bqk,bkd->bqd"}> : () -> ()
    %cst_39 = arith.constant dense<0.000000e+00> : vector<2x16x32xf32>
    %119 = tpu.matmul %118, %106, %cst_39 {dimension_numbers = #tpu.dot_dimension_numbers<[2], [1], [1], [2], [0, 0, 0, 1, 1, 2], [0], [0]>} : vector<2x16x16xbf16>, vector<2x16x32xbf16>, vector<2x16x32xf32> -> vector<2x16x32xf32>
    "tpu.trace_stop"() : () -> ()
    %120 = vector.shape_cast %119 : vector<2x16x32xf32> to vector<32x32xf32>
    %121 = arith.truncf %120 : vector<32x32xf32> to vector<32x32xbf16>
    %122 = vector.extract_strided_slice %45 {offsets = [64, 0], sizes = [32, 128], strides = [1, 1]} : vector<128x128xbf16> to vector<32x128xbf16>
    %cst_40 = arith.constant dense<0.000000e+00> : vector<32x128xf32>
    %123 = tpu.matmul %121, %122, %cst_40 {dimension_numbers = #tpu.dot_dimension_numbers<[1], [0], [0], [1], [0, 0, 1, 1], [], []>} : vector<32x32xbf16>, vector<32x128xbf16>, vector<32x128xf32> -> vector<32x128xf32>
    %124 = arith.addf %98, %123 : vector<32x128xf32>
    %125 = vector.extract_strided_slice %39 {offsets = [0, 0, 96], sizes = [2, 16, 32], strides = [1, 1, 1]} : vector<2x16x128xf32> to vector<2x16x32xf32>
    %cst_41 = arith.constant 0.176776692 : f32
    %126 = vector.broadcast %cst_41 : f32 to vector<2x16x32xf32>
    %127 = arith.mulf %125, %126 : vector<2x16x32xf32>
    %128 = arith.truncf %127 : vector<2x16x32xf32> to vector<2x16x32xbf16>
    %129 = vector.extract_strided_slice %41 {offsets = [0, 0, 96], sizes = [2, 16, 32], strides = [1, 1, 1]} : vector<2x16x128xf32> to vector<2x16x32xf32>
    %130 = arith.truncf %129 : vector<2x16x32xf32> to vector<2x16x32xbf16>
    %131 = vector.extract_strided_slice %43 {offsets = [0, 0, 96], sizes = [2, 16, 32], strides = [1, 1, 1]} : vector<2x16x128xf32> to vector<2x16x32xf32>
    %132 = arith.truncf %131 : vector<2x16x32xf32> to vector<2x16x32xbf16>
    "tpu.trace_start"() <{level = 10 : i32, message = "bqd,bkd->bqk"}> : () -> ()
    %cst_42 = arith.constant dense<0.000000e+00> : vector<2x16x16xf32>
    %133 = tpu.matmul %128, %130, %cst_42 {dimension_numbers = #tpu.dot_dimension_numbers<[2], [2], [1], [1], [0, 0, 0, 1, 1, 1], [0], [0]>} : vector<2x16x32xbf16>, vector<2x16x32xbf16>, vector<2x16x16xf32> -> vector<2x16x16xf32>
    "tpu.trace_stop"() : () -> ()
    %cst_43 = arith.constant dense<0xFF800000> : vector<2x16xf32>
    %134 = vector.multi_reduction <maximumf>, %133, %cst_43 [2] : vector<2x16x16xf32> to vector<2x16xf32>
    %135 = vector.shape_cast %134 : vector<2x16xf32> to vector<2x16x1xf32>
    %136 = vector.broadcast %135 : vector<2x16x1xf32> to vector<2x16x16xf32>
    %137 = arith.subf %133, %136 : vector<2x16x16xf32>
    %138 = math.exp %137 : vector<2x16x16xf32>
    %cst_44 = arith.constant dense<0.000000e+00> : vector<2x16xf32>
    %139 = vector.multi_reduction <add>, %138, %cst_44 [2] : vector<2x16x16xf32> to vector<2x16xf32>
    %140 = vector.shape_cast %139 : vector<2x16xf32> to vector<2x16x1xf32>
    %141 = tpu.reciprocal %140 {approx = true} : vector<2x16x1xf32> -> vector<2x16x1xf32>
    %142 = vector.broadcast %141 : vector<2x16x1xf32> to vector<2x16x16xf32>
    %143 = arith.mulf %138, %142 : vector<2x16x16xf32>
    %144 = arith.truncf %143 : vector<2x16x16xf32> to vector<2x16x16xbf16>
    "tpu.trace_start"() <{level = 10 : i32, message = "bqk,bkd->bqd"}> : () -> ()
    %cst_45 = arith.constant dense<0.000000e+00> : vector<2x16x32xf32>
    %145 = tpu.matmul %144, %132, %cst_45 {dimension_numbers = #tpu.dot_dimension_numbers<[2], [1], [1], [2], [0, 0, 0, 1, 1, 2], [0], [0]>} : vector<2x16x16xbf16>, vector<2x16x32xbf16>, vector<2x16x32xf32> -> vector<2x16x32xf32>
    "tpu.trace_stop"() : () -> ()
    %146 = vector.shape_cast %145 : vector<2x16x32xf32> to vector<32x32xf32>
    %147 = arith.truncf %146 : vector<32x32xf32> to vector<32x32xbf16>
    %148 = vector.extract_strided_slice %45 {offsets = [96, 0], sizes = [32, 128], strides = [1, 1]} : vector<128x128xbf16> to vector<32x128xbf16>
    %cst_46 = arith.constant dense<0.000000e+00> : vector<32x128xf32>
    %149 = tpu.matmul %147, %148, %cst_46 {dimension_numbers = #tpu.dot_dimension_numbers<[1], [0], [0], [1], [0, 0, 1, 1], [], []>} : vector<32x32xbf16>, vector<32x128xbf16>, vector<32x128xf32> -> vector<32x128xf32>
    %150 = arith.addf %124, %149 : vector<32x128xf32>
    %151 = arith.addf %3, %150 : vector<32x128xf32>
    %c0_47 = arith.constant 0 : index
    %c0_48 = arith.constant 0 : index
    %c0_49 = arith.constant 0 : index
    %152 = vector.load %arg7[%c0_47, %c0_48, %c0_49] : memref<1x1x128xf32, #tpu.memory_space<vmem>>, vector<1x1x128xf32>
    %153 = vector.shape_cast %152 : vector<1x1x128xf32> to vector<1x128xf32>
    %154 = vector.broadcast %153 : vector<1x128xf32> to vector<32x128xf32>
    %155 = arith.addf %151, %154 : vector<32x128xf32>
    %c0_50 = arith.constant 0 : index
    %c0_51 = arith.constant 0 : index
    %c0_52 = arith.constant 0 : index
    %156 = vector.load %arg8[%c0_50, %c0_51, %c0_52] : memref<1x1x128xf32, #tpu.memory_space<vmem>>, vector<1x1x128xf32>
    %157 = vector.shape_cast %156 : vector<1x1x128xf32> to vector<1x128xf32>
    %c0_53 = arith.constant 0 : index
    %c0_54 = arith.constant 0 : index
    %c0_55 = arith.constant 0 : index
    %158 = vector.load %arg9[%c0_53, %c0_54, %c0_55] : memref<1x1x128xf32, #tpu.memory_space<vmem>>, vector<1x1x128xf32>
    %159 = vector.shape_cast %158 : vector<1x1x128xf32> to vector<1x128xf32>
    %cst_56 = arith.constant dense<0.000000e+00> : vector<32xf32>
    %160 = vector.multi_reduction <add>, %155, %cst_56 [1] : vector<32x128xf32> to vector<32xf32>
    %161 = vector.shape_cast %160 : vector<32xf32> to vector<32x1xf32>
    %cst_57 = arith.constant 1.280000e+02 : f32
    %162 = vector.broadcast %cst_57 : f32 to vector<32x1xf32>
    %163 = arith.divf %161, %162 : vector<32x1xf32>
    %164 = vector.broadcast %163 : vector<32x1xf32> to vector<32x128xf32>
    %165 = arith.subf %155, %164 : vector<32x128xf32>
    %166 = arith.mulf %165, %165 : vector<32x128xf32>
    %cst_58 = arith.constant dense<0.000000e+00> : vector<32xf32>
    %167 = vector.multi_reduction <add>, %166, %cst_58 [1] : vector<32x128xf32> to vector<32xf32>
    %168 = vector.shape_cast %167 : vector<32xf32> to vector<32x1xf32>
    %cst_59 = arith.constant 1.280000e+02 : f32
    %169 = vector.broadcast %cst_59 : f32 to vector<32x1xf32>
    %170 = arith.divf %168, %169 : vector<32x1xf32>
    %171 = vector.broadcast %163 : vector<32x1xf32> to vector<32x128xf32>
    %172 = arith.subf %155, %171 : vector<32x128xf32>
    %cst_60 = arith.constant 9.99999996E-13 : f32
    %173 = vector.broadcast %cst_60 : f32 to vector<32x1xf32>
    %174 = arith.addf %170, %173 : vector<32x1xf32>
    %175 = math.rsqrt %174 : vector<32x1xf32>
    %176 = vector.broadcast %175 : vector<32x1xf32> to vector<32x128xf32>
    %177 = arith.mulf %172, %176 : vector<32x128xf32>
    %178 = vector.broadcast %157 : vector<1x128xf32> to vector<32x128xf32>
    %179 = arith.mulf %177, %178 : vector<32x128xf32>
    %180 = vector.broadcast %159 : vector<1x128xf32> to vector<32x128xf32>
    %181 = arith.addf %179, %180 : vector<32x128xf32>
    %182 = arith.truncf %181 : vector<32x128xf32> to vector<32x128xbf16>
    %c0_61 = arith.constant 0 : index
    %c0_62 = arith.constant 0 : index
    %c0_63 = arith.constant 0 : index
    %183 = vector.load %arg10[%c0_61, %c0_62, %c0_63] : memref<1x128x256xbf16, #tpu.memory_space<vmem>>, vector<1x128x256xbf16>
    %184 = vector.shape_cast %183 : vector<1x128x256xbf16> to vector<128x256xbf16>
    %cst_64 = arith.constant dense<0.000000e+00> : vector<32x256xf32>
    %185 = tpu.matmul %182, %184, %cst_64 {dimension_numbers = #tpu.dot_dimension_numbers<[1], [0], [0], [1], [0, 0, 1, 1], [], []>} : vector<32x128xbf16>, vector<128x256xbf16>, vector<32x256xf32> -> vector<32x256xf32>
    %c0_65 = arith.constant 0 : index
    %c0_66 = arith.constant 0 : index
    %c0_67 = arith.constant 0 : index
    %186 = vector.load %arg11[%c0_65, %c0_66, %c0_67] : memref<1x1x256xf32, #tpu.memory_space<vmem>>, vector<1x1x256xf32>
    %187 = vector.shape_cast %186 : vector<1x1x256xf32> to vector<1x256xf32>
    %188 = vector.broadcast %187 : vector<1x256xf32> to vector<32x256xf32>
    %189 = arith.addf %185, %188 : vector<32x256xf32>
    %190 = arith.mulf %189, %189 : vector<32x256xf32>
    %191 = arith.mulf %189, %190 : vector<32x256xf32>
    %cst_68 = arith.constant 4.471500e-02 : f32
    %192 = vector.broadcast %cst_68 : f32 to vector<32x256xf32>
    %193 = arith.mulf %192, %191 : vector<32x256xf32>
    %194 = arith.addf %189, %193 : vector<32x256xf32>
    %cst_69 = arith.constant 0.797884583 : f32
    %195 = vector.broadcast %cst_69 : f32 to vector<32x256xf32>
    %196 = arith.mulf %195, %194 : vector<32x256xf32>
    %197 = math.tanh %196 : vector<32x256xf32>
    %cst_70 = arith.constant 1.000000e+00 : f32
    %198 = vector.broadcast %cst_70 : f32 to vector<32x256xf32>
    %199 = arith.addf %198, %197 : vector<32x256xf32>
    %cst_71 = arith.constant 5.000000e-01 : f32
    %200 = vector.broadcast %cst_71 : f32 to vector<32x256xf32>
    %201 = arith.mulf %200, %199 : vector<32x256xf32>
    %202 = arith.mulf %189, %201 : vector<32x256xf32>
    %203 = arith.truncf %202 : vector<32x256xf32> to vector<32x256xbf16>
    %c0_72 = arith.constant 0 : index
    %c0_73 = arith.constant 0 : index
    %c0_74 = arith.constant 0 : index
    %204 = vector.load %arg12[%c0_72, %c0_73, %c0_74] : memref<1x256x128xbf16, #tpu.memory_space<vmem>>, vector<1x256x128xbf16>
    %205 = vector.shape_cast %204 : vector<1x256x128xbf16> to vector<256x128xbf16>
    %cst_75 = arith.constant dense<0.000000e+00> : vector<32x128xf32>
    %206 = tpu.matmul %203, %205, %cst_75 {dimension_numbers = #tpu.dot_dimension_numbers<[1], [0], [0], [1], [0, 0, 1, 1], [], []>} : vector<32x256xbf16>, vector<256x128xbf16>, vector<32x128xf32> -> vector<32x128xf32>
    %c0_76 = arith.constant 0 : index
    %c0_77 = arith.constant 0 : index
    %c0_78 = arith.constant 0 : index
    %207 = vector.load %arg13[%c0_76, %c0_77, %c0_78] : memref<1x1x128xf32, #tpu.memory_space<vmem>>, vector<1x1x128xf32>
    %208 = vector.shape_cast %207 : vector<1x1x128xf32> to vector<1x128xf32>
    %209 = vector.broadcast %208 : vector<1x128xf32> to vector<32x128xf32>
    %210 = arith.addf %206, %209 : vector<32x128xf32>
    %211 = arith.addf %155, %210 : vector<32x128xf32>
    %c0_79 = arith.constant 0 : index
    %c0_80 = arith.constant 0 : index
    %212 = vector.load %arg15[%c0_79, %c0_80] : memref<32x128xf32, #tpu.memory_space<vmem>>, vector<32x128xf32>
    tpu.vector_store %arg15[%c0_79, %c0_80], %211 {strides = array<i32>} : memref<32x128xf32, #tpu.memory_space<vmem>>, vector<32x128xf32>,
    %c1_i32 = arith.constant 1 : i32
    %213 = arith.cmpi eq, %arg0, %c1_i32 : i32
    %214 = arith.extui %213 : i1 to i32
    %c0_i32_81 = arith.constant 0 : i32
    %215 = arith.cmpi ne, %214, %c0_i32_81 : i32
    scf.if %215 {
      %216 = vector.shape_cast %211 : vector<32x128xf32> to vector<2x16x128xf32>
      %217 = arith.truncf %216 : vector<2x16x128xf32> to vector<2x16x128xbf16>
      %c0_82 = arith.constant 0 : index
      %c0_83 = arith.constant 0 : index
      %c0_84 = arith.constant 0 : index
      %218 = vector.load %arg14[%c0_82, %c0_83, %c0_84] : memref<2x16x128xbf16, #tpu.memory_space<vmem>>, vector<2x16x128xbf16>
      tpu.vector_store %arg14[%c0_82, %c0_83, %c0_84], %217 {strides = array<i32>} : memref<2x16x128xbf16, #tpu.memory_space<vmem>>, vector<2x16x128xbf16>,
    } else {
    }
    return
  }
  func.func @transform_0(%arg0: i32) -> (i32, i32, i32) {
    %c0_i32 = arith.constant 0 : i32
    %c0_i32_0 = arith.constant 0 : i32
    %c0_i32_1 = arith.constant 0 : i32
    %c0_i32_2 = arith.constant 0 : i32
    return %c0_i32, %c0_i32_0, %c0_i32_1 : i32, i32, i32
  }
  func.func @transform_1(%arg0: i32) -> (i32, i32, i32) {
    %c0_i32 = arith.constant 0 : i32
    %c0_i32_0 = arith.constant 0 : i32
    %c0_i32_1 = arith.constant 0 : i32
    return %arg0, %c0_i32, %c0_i32_0 : i32, i32, i32
  }
  func.func @transform_2(%arg0: i32) -> (i32, i32, i32) {
    %c0_i32 = arith.constant 0 : i32
    %c0_i32_0 = arith.constant 0 : i32
    %c0_i32_1 = arith.constant 0 : i32
    return %arg0, %c0_i32, %c0_i32_0 : i32, i32, i32
  }
  func.func @transform_3(%arg0: i32) -> (i32, i32, i32) {
    %c0_i32 = arith.constant 0 : i32
    %c0_i32_0 = arith.constant 0 : i32
    %c0_i32_1 = arith.constant 0 : i32
    return %arg0, %c0_i32, %c0_i32_0 : i32, i32, i32
  }
  func.func @transform_4(%arg0: i32) -> (i32, i32, i32) {
    %c0_i32 = arith.constant 0 : i32
    %c0_i32_0 = arith.constant 0 : i32
    %c0_i32_1 = arith.constant 0 : i32
    return %arg0, %c0_i32, %c0_i32_0 : i32, i32, i32
  }
  func.func @transform_5(%arg0: i32) -> (i32, i32, i32) {
    %c0_i32 = arith.constant 0 : i32
    %c0_i32_0 = arith.constant 0 : i32
    %c0_i32_1 = arith.constant 0 : i32
    return %arg0, %c0_i32, %c0_i32_0 : i32, i32, i32
  }
  func.func @transform_6(%arg0: i32) -> (i32, i32, i32) {
    %c0_i32 = arith.constant 0 : i32
    %c0_i32_0 = arith.constant 0 : i32
    %c0_i32_1 = arith.constant 0 : i32
    return %arg0, %c0_i32, %c0_i32_0 : i32, i32, i32
  }
  func.func @transform_7(%arg0: i32) -> (i32, i32, i32) {
    %c0_i32 = arith.constant 0 : i32
    %c0_i32_0 = arith.constant 0 : i32
    %c0_i32_1 = arith.constant 0 : i32
    return %arg0, %c0_i32, %c0_i32_0 : i32, i32, i32
  }
  func.func @transform_8(%arg0: i32) -> (i32, i32, i32) {
    %c0_i32 = arith.constant 0 : i32
    %c0_i32_0 = arith.constant 0 : i32
    %c0_i32_1 = arith.constant 0 : i32
    return %arg0, %c0_i32, %c0_i32_0 : i32, i32, i32
  }
  func.func @transform_9(%arg0: i32) -> (i32, i32, i32) {
    %c0_i32 = arith.constant 0 : i32
    %c0_i32_0 = arith.constant 0 : i32
    %c0_i32_1 = arith.constant 0 : i32
    return %arg0, %c0_i32, %c0_i32_0 : i32, i32, i32
  }
  func.func @transform_10(%arg0: i32) -> (i32, i32, i32) {
    %c0_i32 = arith.constant 0 : i32
    %c0_i32_0 = arith.constant 0 : i32
    %c0_i32_1 = arith.constant 0 : i32
    return %arg0, %c0_i32, %c0_i32_0 : i32, i32, i32
  }
  func.func @transform_11(%arg0: i32) -> (i32, i32, i32) {
    %c0_i32 = arith.constant 0 : i32
    %c0_i32_0 = arith.constant 0 : i32
    %c0_i32_1 = arith.constant 0 : i32
    return %arg0, %c0_i32, %c0_i32_0 : i32, i32, i32
  }
  func.func @transform_12(%arg0: i32) -> (i32, i32, i32) {
    %c0_i32 = arith.constant 0 : i32
    %c0_i32_0 = arith.constant 0 : i32
    %c0_i32_1 = arith.constant 0 : i32
    return %arg0, %c0_i32, %c0_i32_0 : i32, i32, i32
  }
  func.func @transform_13(%arg0: i32) -> (i32, i32, i32) {
    %c0_i32 = arith.constant 0 : i32
    %c0_i32_0 = arith.constant 0 : i32
    %c0_i32_1 = arith.constant 0 : i32
    %c0_i32_2 = arith.constant 0 : i32
    return %c0_i32, %c0_i32_0, %c0_i32_1 : i32, i32, i32
  }
}

module attributes {stable_mosaic.version = 11 : i64} {
  func.func @_head_kernel(%arg0: i32, %arg1: memref<2x8x128xbf16, #tpu.memory_space<vmem>>, %arg2: memref<1x128xf32, #tpu.memory_space<vmem>>, %arg3: memref<1x128xf32, #tpu.memory_space<vmem>>, %arg4: memref<128x128xbf16, #tpu.memory_space<vmem>>, %arg5: memref<1x128xf32, #tpu.memory_space<vmem>>, %arg6: memref<128x512xbf16, #tpu.memory_space<vmem>>, %arg7: memref<1x512xf32, #tpu.memory_space<vmem>>, %arg8: memref<512x128xbf16, #tpu.memory_space<vmem>>, %arg9: memref<1x128xf32, #tpu.memory_space<vmem>>, %arg10: memref<2x128xf32, #tpu.memory_space<vmem>>) attributes {dimension_semantics = [#tpu.dimension_semantics<arbitrary>], iteration_bounds = array<i64: 1>, scalar_prefetch = 0 : i64, scratch_operands = 0 : i64, tpu.core_type = #tpu.core_type<tc>, window_params = [{transform_indices = @transform_0, window_bounds = array<i64: 2, 8, 128>}, {pipeline_mode = #tpu.pipeline_mode<synchronous>, transform_indices = @transform_1, window_bounds = array<i64: 1, 128>}, {pipeline_mode = #tpu.pipeline_mode<synchronous>, transform_indices = @transform_2, window_bounds = array<i64: 1, 128>}, {pipeline_mode = #tpu.pipeline_mode<synchronous>, transform_indices = @transform_3, window_bounds = array<i64: 128, 128>}, {pipeline_mode = #tpu.pipeline_mode<synchronous>, transform_indices = @transform_4, window_bounds = array<i64: 1, 128>}, {pipeline_mode = #tpu.pipeline_mode<synchronous>, transform_indices = @transform_5, window_bounds = array<i64: 128, 512>}, {pipeline_mode = #tpu.pipeline_mode<synchronous>, transform_indices = @transform_6, window_bounds = array<i64: 1, 512>}, {pipeline_mode = #tpu.pipeline_mode<synchronous>, transform_indices = @transform_7, window_bounds = array<i64: 512, 128>}, {pipeline_mode = #tpu.pipeline_mode<synchronous>, transform_indices = @transform_8, window_bounds = array<i64: 1, 128>}, {pipeline_mode = #tpu.pipeline_mode<synchronous>, transform_indices = @transform_9, window_bounds = array<i64: 2, 128>}]} {
    %c0 = arith.constant 0 : index
    %c0_0 = arith.constant 0 : index
    %c0_1 = arith.constant 0 : index
    %0 = vector.load %arg1[%c0, %c0_0, %c0_1] : memref<2x8x128xbf16, #tpu.memory_space<vmem>>, vector<2x8x128xbf16>
    %1 = vector.extract_strided_slice %0 {offsets = [0, 0, 0], sizes = [2, 1, 128], strides = [1, 1, 1]} : vector<2x8x128xbf16> to vector<2x1x128xbf16>
    %2 = vector.shape_cast %1 : vector<2x1x128xbf16> to vector<2x128xbf16>
    %3 = arith.extf %2 : vector<2x128xbf16> to vector<2x128xf32>
    %c0_2 = arith.constant 0 : index
    %c0_3 = arith.constant 0 : index
    %4 = vector.load %arg2[%c0_2, %c0_3] : memref<1x128xf32, #tpu.memory_space<vmem>>, vector<1x128xf32>
    %c0_4 = arith.constant 0 : index
    %c0_5 = arith.constant 0 : index
    %5 = vector.load %arg3[%c0_4, %c0_5] : memref<1x128xf32, #tpu.memory_space<vmem>>, vector<1x128xf32>
    %cst = arith.constant dense<0.000000e+00> : vector<2xf32>
    %6 = vector.multi_reduction <add>, %3, %cst [1] : vector<2x128xf32> to vector<2xf32>
    %7 = vector.shape_cast %6 : vector<2xf32> to vector<2x1xf32>
    %cst_6 = arith.constant 1.280000e+02 : f32
    %8 = vector.broadcast %cst_6 : f32 to vector<2x1xf32>
    %9 = arith.divf %7, %8 : vector<2x1xf32>
    %10 = vector.broadcast %9 : vector<2x1xf32> to vector<2x128xf32>
    %11 = arith.subf %3, %10 : vector<2x128xf32>
    %12 = arith.mulf %11, %11 : vector<2x128xf32>
    %cst_7 = arith.constant dense<0.000000e+00> : vector<2xf32>
    %13 = vector.multi_reduction <add>, %12, %cst_7 [1] : vector<2x128xf32> to vector<2xf32>
    %14 = vector.shape_cast %13 : vector<2xf32> to vector<2x1xf32>
    %cst_8 = arith.constant 1.280000e+02 : f32
    %15 = vector.broadcast %cst_8 : f32 to vector<2x1xf32>
    %16 = arith.divf %14, %15 : vector<2x1xf32>
    %17 = vector.broadcast %9 : vector<2x1xf32> to vector<2x128xf32>
    %18 = arith.subf %3, %17 : vector<2x128xf32>
    %cst_9 = arith.constant 9.99999996E-13 : f32
    %19 = vector.broadcast %cst_9 : f32 to vector<2x1xf32>
    %20 = arith.addf %16, %19 : vector<2x1xf32>
    %21 = math.rsqrt %20 : vector<2x1xf32>
    %22 = vector.broadcast %21 : vector<2x1xf32> to vector<2x128xf32>
    %23 = arith.mulf %18, %22 : vector<2x128xf32>
    %24 = vector.broadcast %4 : vector<1x128xf32> to vector<2x128xf32>
    %25 = arith.mulf %23, %24 : vector<2x128xf32>
    %26 = vector.broadcast %5 : vector<1x128xf32> to vector<2x128xf32>
    %27 = arith.addf %25, %26 : vector<2x128xf32>
    %28 = arith.truncf %27 : vector<2x128xf32> to vector<2x128xbf16>
    %c0_10 = arith.constant 0 : index
    %c0_11 = arith.constant 0 : index
    %29 = vector.load %arg4[%c0_10, %c0_11] : memref<128x128xbf16, #tpu.memory_space<vmem>>, vector<128x128xbf16>
    %cst_12 = arith.constant dense<0.000000e+00> : vector<2x128xf32>
    %30 = tpu.matmul %28, %29, %cst_12 {dimension_numbers = #tpu.dot_dimension_numbers<[1], [0], [0], [1], [0, 0, 1, 1], [], []>} : vector<2x128xbf16>, vector<128x128xbf16>, vector<2x128xf32> -> vector<2x128xf32>
    %c0_13 = arith.constant 0 : index
    %c0_14 = arith.constant 0 : index
    %31 = vector.load %arg5[%c0_13, %c0_14] : memref<1x128xf32, #tpu.memory_space<vmem>>, vector<1x128xf32>
    %32 = vector.broadcast %31 : vector<1x128xf32> to vector<2x128xf32>
    %33 = arith.addf %30, %32 : vector<2x128xf32>
    %34 = math.tanh %33 : vector<2x128xf32>
    %35 = arith.truncf %34 : vector<2x128xf32> to vector<2x128xbf16>
    %c0_15 = arith.constant 0 : index
    %c0_16 = arith.constant 0 : index
    %36 = vector.load %arg6[%c0_15, %c0_16] : memref<128x512xbf16, #tpu.memory_space<vmem>>, vector<128x512xbf16>
    %cst_17 = arith.constant dense<0.000000e+00> : vector<2x512xf32>
    %37 = tpu.matmul %35, %36, %cst_17 {dimension_numbers = #tpu.dot_dimension_numbers<[1], [0], [0], [1], [0, 0, 1, 1], [], []>} : vector<2x128xbf16>, vector<128x512xbf16>, vector<2x512xf32> -> vector<2x512xf32>
    %c0_18 = arith.constant 0 : index
    %c0_19 = arith.constant 0 : index
    %38 = vector.load %arg7[%c0_18, %c0_19] : memref<1x512xf32, #tpu.memory_space<vmem>>, vector<1x512xf32>
    %39 = vector.broadcast %38 : vector<1x512xf32> to vector<2x512xf32>
    %40 = arith.addf %37, %39 : vector<2x512xf32>
    %cst_20 = arith.constant 0.000000e+00 : f32
    %41 = vector.broadcast %cst_20 : f32 to vector<2x512xf32>
    %42 = arith.maximumf %40, %41 : vector<2x512xf32>
    %43 = arith.truncf %42 : vector<2x512xf32> to vector<2x512xbf16>
    %c0_21 = arith.constant 0 : index
    %c0_22 = arith.constant 0 : index
    %44 = vector.load %arg8[%c0_21, %c0_22] : memref<512x128xbf16, #tpu.memory_space<vmem>>, vector<512x128xbf16>
    %cst_23 = arith.constant dense<0.000000e+00> : vector<2x128xf32>
    %45 = tpu.matmul %43, %44, %cst_23 {dimension_numbers = #tpu.dot_dimension_numbers<[1], [0], [0], [1], [0, 0, 1, 1], [], []>} : vector<2x512xbf16>, vector<512x128xbf16>, vector<2x128xf32> -> vector<2x128xf32>
    %c0_24 = arith.constant 0 : index
    %c0_25 = arith.constant 0 : index
    %46 = vector.load %arg9[%c0_24, %c0_25] : memref<1x128xf32, #tpu.memory_space<vmem>>, vector<1x128xf32>
    %47 = vector.broadcast %46 : vector<1x128xf32> to vector<2x128xf32>
    %48 = arith.addf %45, %47 : vector<2x128xf32>
    %49 = arith.mulf %48, %48 : vector<2x128xf32>
    %cst_26 = arith.constant dense<0.000000e+00> : vector<2xf32>
    %50 = vector.multi_reduction <add>, %49, %cst_26 [1] : vector<2x128xf32> to vector<2xf32>
    %51 = vector.shape_cast %50 : vector<2xf32> to vector<2x1xf32>
    %cst_27 = arith.constant 1.000000e-24 : f32
    %52 = vector.broadcast %cst_27 : f32 to vector<2x1xf32>
    %53 = arith.maximumf %51, %52 : vector<2x1xf32>
    %54 = math.rsqrt %53 : vector<2x1xf32>
    %55 = vector.broadcast %54 : vector<2x1xf32> to vector<2x128xf32>
    %56 = arith.mulf %48, %55 : vector<2x128xf32>
    %c0_28 = arith.constant 0 : index
    %c0_29 = arith.constant 0 : index
    %57 = vector.load %arg10[%c0_28, %c0_29] : memref<2x128xf32, #tpu.memory_space<vmem>>, vector<2x128xf32>
    tpu.vector_store %arg10[%c0_28, %c0_29], %56 {strides = array<i32>} : memref<2x128xf32, #tpu.memory_space<vmem>>, vector<2x128xf32>,
    return
  }
  func.func @transform_0(%arg0: i32) -> (i32, i32, i32) {
    %c0_i32 = arith.constant 0 : i32
    %c0_i32_0 = arith.constant 0 : i32
    %c0_i32_1 = arith.constant 0 : i32
    %c0_i32_2 = arith.constant 0 : i32
    return %c0_i32, %c0_i32_0, %c0_i32_1 : i32, i32, i32
  }
  func.func @transform_1(%arg0: i32) -> (i32, i32) {
    %c0_i32 = arith.constant 0 : i32
    %c0_i32_0 = arith.constant 0 : i32
    %c0_i32_1 = arith.constant 0 : i32
    return %c0_i32, %c0_i32_0 : i32, i32
  }
  func.func @transform_2(%arg0: i32) -> (i32, i32) {
    %c0_i32 = arith.constant 0 : i32
    %c0_i32_0 = arith.constant 0 : i32
    %c0_i32_1 = arith.constant 0 : i32
    return %c0_i32, %c0_i32_0 : i32, i32
  }
  func.func @transform_3(%arg0: i32) -> (i32, i32) {
    %c0_i32 = arith.constant 0 : i32
    %c0_i32_0 = arith.constant 0 : i32
    %c0_i32_1 = arith.constant 0 : i32
    return %c0_i32, %c0_i32_0 : i32, i32
  }
  func.func @transform_4(%arg0: i32) -> (i32, i32) {
    %c0_i32 = arith.constant 0 : i32
    %c0_i32_0 = arith.constant 0 : i32
    %c0_i32_1 = arith.constant 0 : i32
    return %c0_i32, %c0_i32_0 : i32, i32
  }
  func.func @transform_5(%arg0: i32) -> (i32, i32) {
    %c0_i32 = arith.constant 0 : i32
    %c0_i32_0 = arith.constant 0 : i32
    %c0_i32_1 = arith.constant 0 : i32
    return %c0_i32, %c0_i32_0 : i32, i32
  }
  func.func @transform_6(%arg0: i32) -> (i32, i32) {
    %c0_i32 = arith.constant 0 : i32
    %c0_i32_0 = arith.constant 0 : i32
    %c0_i32_1 = arith.constant 0 : i32
    return %c0_i32, %c0_i32_0 : i32, i32
  }
  func.func @transform_7(%arg0: i32) -> (i32, i32) {
    %c0_i32 = arith.constant 0 : i32
    %c0_i32_0 = arith.constant 0 : i32
    %c0_i32_1 = arith.constant 0 : i32
    return %c0_i32, %c0_i32_0 : i32, i32
  }
  func.func @transform_8(%arg0: i32) -> (i32, i32) {
    %c0_i32 = arith.constant 0 : i32
    %c0_i32_0 = arith.constant 0 : i32
    %c0_i32_1 = arith.constant 0 : i32
    return %c0_i32, %c0_i32_0 : i32, i32
  }
  func.func @transform_9(%arg0: i32) -> (i32, i32) {
    %c0_i32 = arith.constant 0 : i32
    %c0_i32_0 = arith.constant 0 : i32
    %c0_i32_1 = arith.constant 0 : i32
    return %c0_i32, %c0_i32_0 : i32, i32
  }
}

</mosaic_0001>

<llo_original>
// kernel: simclr_vit_forward.3
$region0: #{simclr_vit_forward.3}
  #allocation0 [shape = 'u32[]', space=smem, size = 0x4, offset = 0x4, fixed_abs, tag = 'smem constant byte address 0x4 - core index']
  #allocation1 [shape = 'u32[144,128]{1,0:T(1,128)}', space=vmem, size = 0x12000, scoped, tag = 'internal scratch']
  %s0 = inlined_call_operand.vmem [shape: f32[2,15,192], index: 0, kind: input, shape index: {}]
  %s1 = inlined_call_operand.vmem [shape: bf16[192,128], index: 1, kind: input, shape index: {}]
  %s2 = inlined_call_operand.vmem [shape: f32[1,128], index: 2, kind: input, shape index: {}]
  %s3 = inlined_call_operand.vmem [shape: f32[1,128], index: 3, kind: input, shape index: {}]
  %s4 = inlined_call_operand.vmem [shape: f32[16,128], index: 4, kind: input, shape index: {}]
  %s5 = inlined_call_operand.vmem [shape: bf16[2,16,128], index: 5, kind: output, shape index: {}]
  %s6 = sld [smem:[#allocation0]]
  $region53: #{simclr_vit_forward.3} parent=0
    _
  %s8 = ssub.s32 1, %s6
  %s9 = scalar_select 0, %s8, %s6
  loop: start=0, step=1, limit=4
  $region2: #{simclr_vit_forward.3} parent=0 // loop_pre_header
    _
  $region3: #{simclr_vit_forward.3} parent=0 // loop_header
    %s11 = sphi 0, %s15
    %p12 = scmp.ge.s32.totalorder %s11, 4
    %s21 = sphi 0, %s23
    %s24 = sphi 0, %s21
    %s25 = sphi 0, %s24
    %s41 = sphi 0, %s25
    %s45 = sphi 0, %s45
    %s47 = sphi 0, %s45
    %s48 = sphi 0, %s47
    %s62 = sphi 0, %s48
    %s66 = sphi 0, %s66
    %s68 = sphi 0, %s66
    %s69 = sphi 0, %s68
    %s83 = sphi 0, %s69
    %s87 = sphi 0, %s87
    %s89 = sphi 0, %s87
    %s90 = sphi 0, %s89
    %s104 = sphi 0, %s90
    %s108 = sphi 0, %s108
    %s110 = sphi 0, %s108
    %s111 = sphi 0, %s110
    %s125 = sphi 0, %s111
    %s131 = sphi 0, %s133
    %s134 = sphi 0, %s131
    %s135 = sphi 0, %s134
    %s151 = sphi 0, %s135
  $region4: #{simclr_vit_forward.3} parent=0 // loop_header_branch
    %14 = sbr.rel (%p12) target = $region8
  $region5: #{simclr_vit_forward.3} parent=0 // loop_body
    %s16 = ssub.s32 %s11, 1
    %s17 = ssub.s32 %s11, 2
    %s18 = sadd.s32 %s11, 1
    %s19 = ssub.s32 %s11, %s18
    %p20 = scmp.eq.s32.totalorder %s19, 0
    %s22 = sadd.s32 %s21, 1
    %s23 = scalar_select %p20, %s21, %s22
    %p26 = pneg %p20
    %p27 = scmp.eq.s32.totalorder %s11, 1
    %p28 = por %p26, %p27
    %p29 = scmp.ne.s32.totalorder %s21, %s24
    %p30 = scmp.eq.s32.totalorder %s11, 0
    %p31 = por %p29, %p30
    %p32 = scmp.ne.s32.totalorder %s21, %s24
    %p33 = scmp.eq.s32.totalorder %s16, 1
    %p34 = por %p32, %p33
    %p35 = scmp.ne.s32.totalorder %s24, %s25
    %p36 = scmp.eq.s32.totalorder %s16, 0
    %p37 = por %p35, %p36
    %p38 = scmp.ne.s32.totalorder %s24, %s25
    %p39 = scmp.eq.s32.totalorder %s17, 1
    %p40 = por %p38, %p39
    %p42 = scmp.ne.s32.totalorder %s25, %s41
    %p43 = scmp.eq.s32.totalorder %s17, 0
    %p44 = por %p42, %p43
    %s46 = sadd.s32 %s45, 1
    %p49 = scmp.eq.s32.totalorder %s11, 1
    %p50 = scmp.ne.s32.totalorder %s45, %s47
    %p51 = scmp.eq.s32.totalorder %s11, 0
    %p52 = por %p50, %p51
    %p53 = scmp.ne.s32.totalorder %s45, %s47
    %p54 = scmp.eq.s32.totalorder %s16, 1
    %p55 = por %p53, %p54
    %p56 = scmp.ne.s32.totalorder %s47, %s48
    %p57 = scmp.eq.s32.totalorder %s16, 0
    %p58 = por %p56, %p57
    %p59 = scmp.ne.s32.totalorder %s47, %s48
    %p60 = scmp.eq.s32.totalorder %s17, 1
    %p61 = por %p59, %p60
    %p63 = scmp.ne.s32.totalorder %s48, %s62
    %p64 = scmp.eq.s32.totalorder %s17, 0
    %p65 = por %p63, %p64
    %s67 = sadd.s32 %s66, 1
    %p70 = scmp.eq.s32.totalorder %s11, 1
    %p71 = scmp.ne.s32.totalorder %s66, %s68
    %p72 = scmp.eq.s32.totalorder %s11, 0
    %p73 = por %p71, %p72
    %p74 = scmp.ne.s32.totalorder %s66, %s68
    %p75 = scmp.eq.s32.totalorder %s16, 1
    %p76 = por %p74, %p75
    %p77 = scmp.ne.s32.totalorder %s68, %s69
    %p78 = scmp.eq.s32.totalorder %s16, 0
    %p79 = por %p77, %p78
    %p80 = scmp.ne.s32.totalorder %s68, %s69
    %p81 = scmp.eq.s32.totalorder %s17, 1
    %p82 = por %p80, %p81
    %p84 = scmp.ne.s32.totalorder %s69, %s83
    %p85 = scmp.eq.s32.totalorder %s17, 0
    %p86 = por %p84, %p85
    %s88 = sadd.s32 %s87, 1
    %p91 = scmp.eq.s32.totalorder %s11, 1
    %p92 = scmp.ne.s32.totalorder %s87, %s89
    %p93 = scmp.eq.s32.totalorder %s11, 0
    %p94 = por %p92, %p93
    %p95 = scmp.ne.s32.totalorder %s87, %s89
    %p96 = scmp.eq.s32.totalorder %s16, 1
    %p97 = por %p95, %p96
    %p98 = scmp.ne.s32.totalorder %s89, %s90
    %p99 = scmp.eq.s32.totalorder %s16, 0
    %p100 = por %p98, %p99
    %p101 = scmp.ne.s32.totalorder %s89, %s90
    %p102 = scmp.eq.s32.totalorder %s17, 1
    %p103 = por %p101, %p102
    %p105 = scmp.ne.s32.totalorder %s90, %s104
    %p106 = scmp.eq.s32.totalorder %s17, 0
    %p107 = por %p105, %p106
    %s109 = sadd.s32 %s108, 1
    %p112 = scmp.eq.s32.totalorder %s11, 1
    %p113 = scmp.ne.s32.totalorder %s108, %s110
    %p114 = scmp.eq.s32.totalorder %s11, 0
    %p115 = por %p113, %p114
    %p116 = scmp.ne.s32.totalorder %s108, %s110
    %p117 = scmp.eq.s32.totalorder %s16, 1
    %p118 = por %p116, %p117
    %p119 = scmp.ne.s32.totalorder %s110, %s111
    %p120 = scmp.eq.s32.totalorder %s16, 0
    %p121 = por %p119, %p120
    %p122 = scmp.ne.s32.totalorder %s110, %s111
    %p123 = scmp.eq.s32.totalorder %s17, 1
    %p124 = por %p122, %p123
    %p126 = scmp.ne.s32.totalorder %s111, %s125
    %p127 = scmp.eq.s32.totalorder %s17, 0
    %p128 = por %p126, %p127
    %s129 = ssub.s32 %s11, %s18
    %p130 = scmp.eq.s32.totalorder %s129, 0
    %s132 = sadd.s32 %s131, 1
    %s133 = scalar_select %p130, %s131, %s132
    %p136 = pneg %p130
    %p137 = scmp.eq.s32.totalorder %s11, 1
    %p138 = por %p136, %p137
    %p139 = scmp.ne.s32.totalorder %s131, %s134
    %p140 = scmp.eq.s32.totalorder %s11, 0
    %p141 = por %p139, %p140
    %p142 = scmp.ne.s32.totalorder %s131, %s134
    %p143 = scmp.eq.s32.totalorder %s16, 1
    %p144 = por %p142, %p143
    %p145 = scmp.ne.s32.totalorder %s134, %s135
    %p146 = scmp.eq.s32.totalorder %s16, 0
    %p147 = por %p145, %p146
    %p148 = scmp.ne.s32.totalorder %s134, %s135
    %p149 = scmp.eq.s32.totalorder %s17, 1
    %p150 = por %p148, %p149
    %p152 = scmp.ne.s32.totalorder %s135, %s151
    %p153 = scmp.eq.s32.totalorder %s17, 0
    %p154 = por %p152, %p153
    %p155 = scmp.le.s32.totalorder 1, %s11
    %p156 = scmp.lt.s32.totalorder %s11, 3
    %p157 = pnand %p155, %p156
    %p158 = pneg %p157
    // Predicated region
    $region9: #{simclr_vit_forward.3} parent=5 // pred_check
      _
    $region10: #{simclr_vit_forward.3} parent=5 // pred_check_branch
      %160 = sbr.rel (%p157) target = $region12
    $region11: #{simclr_vit_forward.3} parent=5 // pred_region
      %s161 = ssub.s32 %s11, 1
      // Predicated region
      $region13: #{simclr_vit_forward.3} parent=11 // pred_check
        %p162 = pneg %p58
      $region14: #{simclr_vit_forward.3} parent=11 // pred_check_branch
        %164 = sbr.rel (%p162) target = $region16
      $region15: #{simclr_vit_forward.3} parent=11 // pred_region
        _
      $region16: #{simclr_vit_forward.3} parent=11 // pred_fallthru
        _
      // Predicated region
      $region17: #{simclr_vit_forward.3} parent=11 // pred_check
        %p165 = pneg %p79
      $region18: #{simclr_vit_forward.3} parent=11 // pred_check_branch
        %167 = sbr.rel (%p165) target = $region20
      $region19: #{simclr_vit_forward.3} parent=11 // pred_region
        _
      $region20: #{simclr_vit_forward.3} parent=11 // pred_fallthru
        _
      // Predicated region
      $region21: #{simclr_vit_forward.3} parent=11 // pred_check
        %p168 = pneg %p100
      $region22: #{simclr_vit_forward.3} parent=11 // pred_check_branch
        %170 = sbr.rel (%p168) target = $region24
      $region23: #{simclr_vit_forward.3} parent=11 // pred_region
        _
      $region24: #{simclr_vit_forward.3} parent=11 // pred_fallthru
        _
      // Predicated region
      $region25: #{simclr_vit_forward.3} parent=11 // pred_check
        %p171 = pneg %p121
      $region26: #{simclr_vit_forward.3} parent=11 // pred_check_branch
        %173 = sbr.rel (%p171) target = $region28
      $region27: #{simclr_vit_forward.3} parent=11 // pred_region
        _
      $region28: #{simclr_vit_forward.3} parent=11 // pred_fallthru
        _
    $region12: #{simclr_vit_forward.3} parent=5 // pred_fallthru
      _
    %p174 = scmp.lt.s32.totalorder %s11, 2
    // Predicated region
    $region29: #{simclr_vit_forward.3} parent=5 // pred_check
      %p175 = pneg %p174
    $region30: #{simclr_vit_forward.3} parent=5 // pred_check_branch
      %177 = sbr.rel (%p175) target = $region32
    $region31: #{simclr_vit_forward.3} parent=5 // pred_region
      // Predicated region
      $region33: #{simclr_vit_forward.3} parent=31 // pred_check
        %p178 = pneg %p31
      $region34: #{simclr_vit_forward.3} parent=31 // pred_check_branch
        %180 = sbr.rel (%p178) target = $region36
      $region35: #{simclr_vit_forward.3} parent=31 // pred_region
        %p181 = scmp.lt.s32.totalorder %s11, 1
        %s182 = scalar_select %p181, %s11, 1
        %s183 = smul.addr %s182, 4
        %s184 = smul.addr %s183, 8
        %s185 = scalar_lea.vmem %s0, %s184
      $region36: #{simclr_vit_forward.3} parent=31 // pred_fallthru
        _
    $region32: #{simclr_vit_forward.3} parent=5 // pred_fallthru
      _
    %p186 = scmp.le.s32.totalorder 1, %s11
    %p187 = scmp.lt.s32.totalorder %s11, 3
    %p188 = pnand %p186, %p187
    %p189 = pneg %p188
    // Predicated region
    $region37: #{simclr_vit_forward.3} parent=5 // pred_check
      _
    $region38: #{simclr_vit_forward.3} parent=5 // pred_check_branch
      %191 = sbr.rel (%p188) target = $region40
    $region39: #{simclr_vit_forward.3} parent=5 // pred_region
      %s192 = ssub.s32 %s11, 1
      %p193 = scmp.lt.s32.totalorder %s16, 1
      %s194 = scalar_select %p193, %s16, 1
      %s195 = smul.addr %s194, 4
      %s196 = smul.addr %s195, 8
      %s197 = scalar_lea.vmem %s0, %s196
      %p198 = pneg %p37
      %p199 = pneg %p34
      %p200 = pneg %p58
      %p201 = pneg %p55
      %p202 = pneg %p79
      %p203 = pneg %p76
      %p204 = pneg %p100
      %p205 = pneg %p97
      %p206 = pneg %p121
      %p207 = pneg %p118
      %p208 = pneg %p147
      %p209 = pneg %p144
      %p210 = scmp.lt.s32.totalorder %s16, 1
      %s211 = scalar_select %p210, %s16, 1
      %s212 = smul.addr %s211, 2
      %s213 = smul.addr %s212, 4
      %s214 = scalar_lea.vmem %s5, %s213
      %p215 = scmp.lt.s32.totalorder %s16, 1
      %s216 = scalar_select %p215, %s16, 1
      %s217 = smul.addr %s216, 4
      %s218 = smul.addr %s217, 8
      %s219 = scalar_lea.vmem %s0, %s218
      %p220 = scmp.lt.s32.totalorder %s16, 1
      %s221 = scalar_select %p220, %s16, 1
      %s222 = smul.addr %s221, 2
      %s223 = smul.addr %s222, 4
      %s224 = scalar_lea.vmem %s5, %s223
      %v226 = vld [vmem:[%s219] sm:$0xff]
      %v227 = vld [vmem:[%s219 + $0x8] sm:$0xff]
      %v228 = vld [vmem:[%s219 + $0x10] sm:$0x7f]
      %v229 = vld [vmem:[%s219 + $0x18] sm:$0x7f]
      %v230 = vpack.c.bf16 %v228, %v226
      %v231 = vpack.c.bf16 %v229, %v227
      %v232 = vld [vmem:[%s1] sm:$0xf]
      %v233 = vld [vmem:[%s1 + $0x4] sm:$0xf]
      %v234 = vld [vmem:[%s1 + $0x8] sm:$0xf]
      %v235 = vld [vmem:[%s1 + $0xc] sm:$0xf]
      %v236 = vld [vmem:[%s1 + $0x10] sm:$0xf]
      %v237 = vld [vmem:[%s1 + $0x14] sm:$0xf]
      %v238 = vld [vmem:[%s1 + $0x18] sm:$0xf]
      %v239 = vld [vmem:[%s1 + $0x1c] sm:$0xf]
      %v240 = vld [vmem:[%s1 + $0x20] sm:$0xf]
      %v241 = vld [vmem:[%s1 + $0x24] sm:$0xf]
      %v242 = vld [vmem:[%s1 + $0x28] sm:$0xf]
      %v243 = vld [vmem:[%s1 + $0x2c] sm:$0xf]
      %v244 = vld [vmem:[%s1 + $0x30] sm:$0xf]
      %v245 = vld [vmem:[%s1 + $0x34] sm:$0xf]
      %v246 = vld [vmem:[%s1 + $0x38] sm:$0xf]
      %v247 = vld [vmem:[%s1 + $0x3c] sm:$0xf]
      %v248 = vld [vmem:[%s1 + $0x40] sm:$0xf]
      %v249 = vld [vmem:[%s1 + $0x44] sm:$0xf]
      %v250 = vld [vmem:[%s1 + $0x48] sm:$0xf]
      %v251 = vld [vmem:[%s1 + $0x4c] sm:$0xf]
      %v252 = vld [vmem:[%s1 + $0x50] sm:$0xf]
      %v253 = vld [vmem:[%s1 + $0x54] sm:$0xf]
      %v254 = vld [vmem:[%s1 + $0x58] sm:$0xf]
      %v255 = vld [vmem:[%s1 + $0x5c] sm:$0xf]
      %v256 = vld [vmem:[%s2] sm:$0x1]
      %v258 = vlaneseq
      %v259 = vshrl.u32 %v258, 7
      %v260 = vsub.s32 0, %v259
      %v261 = vrot.slane %v256, %v260
      %v287 = vunpack.c.l.b16 %v232
      %v288 = vunpack.c.l.b16 %v233
      %v289 = vunpack.c.l.b16 %v234
      %v290 = vunpack.c.l.b16 %v235
      %v291 = vunpack.c.l.b16 %v236
      %v292 = vunpack.c.l.b16 %v237
      %v293 = vunpack.c.l.b16 %v238
      %v294 = vunpack.c.l.b16 %v239
      %v295 = vunpack.c.l.b16 %v240
      %v296 = vunpack.c.l.b16 %v241
      %v297 = vunpack.c.l.b16 %v242
      %v298 = vunpack.c.l.b16 %v243
      %v299 = vunpack.c.l.b16 %v244
      %v300 = vunpack.c.l.b16 %v245
      %v301 = vunpack.c.l.b16 %v246
      %v302 = vunpack.c.l.b16 %v247
      %v303 = vunpack.c.l.b16 %v248
      %v304 = vunpack.c.l.b16 %v249
      %v305 = vunpack.c.l.b16 %v250
      %v306 = vunpack.c.l.b16 %v251
      %v307 = vunpack.c.l.b16 %v252
      %v308 = vunpack.c.l.b16 %v253
      %v309 = vunpack.c.l.b16 %v254
      %v310 = vunpack.c.l.b16 %v255
      %v311 = vpack.c.b16 %v288, %v287
      %v312 = vpack.c.b16 %v290, %v289
      %v313 = vpack.c.b16 %v292, %v291
      %v314 = vpack.c.b16 %v294, %v293
      %v315 = vpack.c.b16 %v296, %v295
      %v316 = vpack.c.b16 %v298, %v297
      %v317 = vpack.c.b16 %v300, %v299
      %v318 = vpack.c.b16 %v302, %v301
      %v319 = vpack.c.b16 %v304, %v303
      %v320 = vpack.c.b16 %v306, %v305
      %v321 = vpack.c.b16 %v308, %v307
      %v322 = vpack.c.b16 %v310, %v309
      %vm335 = vcmask 523264
      %v337 = vsel %vm335, %v231, 0
      %339 = vmatprep.subr.bf16.mxu0 0
      %340 = vmatpush1.bf16.msra.mxu0 %v311
      %341 = vmatprep.subr.bf16.mxu0 0
      %342 = vmatpush1.bf16.msra.mxu0 %v312
      %343 = vmatprep.subr.bf16.mxu0 0
      %344 = vmatpush1.bf16.msra.mxu0 %v313
      %345 = vmatprep.subr.bf16.mxu0 0
      %346 = vmatpush1.bf16.msra.mxu0 %v314
      %347 = vmatprep.subr.bf16.mxu0 0
      %348 = vmatpush1.bf16.msra.mxu0 %v315
      %349 = vmatprep.subr.bf16.mxu0 0
      %350 = vmatpush1.bf16.msra.mxu0 %v316
      %351 = vmatprep.subr.bf16.mxu0 0
      %352 = vmatpush1.bf16.msra.mxu0 %v317
      %353 = vmatprep.subr.bf16.mxu0 0
      %354 = vmatpush1.bf16.msra.mxu0 %v318
      %355 = vmatprep.subr.bf16.mxu0 0
      %356 = vmatpush1.bf16.msra.mxu0 %v319
      %357 = vmatprep.subr.bf16.mxu0 0
      %358 = vmatpush1.bf16.msra.mxu0 %v320
      %359 = vmatprep.subr.bf16.mxu0 0
      %360 = vmatpush1.bf16.msra.mxu0 %v321
      %361 = vmatprep.subr.bf16.mxu0 0
      %362 = vmatpush1.bf16.msra.mxu0 %v322
      %363 = vmatprep.subr.bf16.mxu0 0
      %364 = vmatpush1.bf16.msra.mxu0 0
      %365 = vmatprep.subr.bf16.mxu0 0
      %366 = vmatpush1.bf16.msra.mxu0 0
      %367 = vmatprep.subr.bf16.mxu0 0
      %368 = vmatpush1.bf16.msra.mxu0 0
      %369 = vmatprep.subr.bf16.mxu0 0
      %370 = vmatpush1.bf16.msra.mxu0 0
      %371 = vmatprep.mubr.bf16.mxu0 %v337
      %372 = vmatmul.mubr.bf16.gmra.mrb[0].mxu0 %v230
      %v373 = vpop.f32.mrb[0].mxu0
      %v374 = vadd.f32 %v261, %v373
      %v375 = vpop.f32.mrb[0].mxu0
      %v376 = vpop.f32.mrb[0].mxu0
      %v377 = vadd.f32 %v261, %v376
      %v378 = vpop.f32.mrb[0].mxu0
      %379 = vdwg.mxu0
      %v380 = vld [vmem:[%s3] sm:$0x1]
      %vm383 = vcmask 1040384
      %v384 = vrot.slane %v374, 7
      %v385 = vrot.slane %v377, 7
      %v386 = vsel %vm383, %v384, %v385
      %v389 = vsel %vm383, %v380, %v384
      %v390 = vld [vmem:[%s4] sm:$0xff]
      %v391 = vld [vmem:[%s4 + $0x8] sm:$0xff]
      %v392 = vadd.f32 %v389, %v390
      %v393 = vadd.f32 %v386, %v391
      %v394 = vpack.c.bf16 %v393, %v392
      %v396 = vunpack.c.l.b16 %v394
      %v397 = vunpack.c.h.b16 %v394
      %v398 = vpack.c.b16 %v396, %v396
      %v399 = vpack.c.b16 %v397, %v397
      %402 = vst [vmem:[%s224] sm:$0xf] %v398
      %403 = vst [vmem:[%s224 + $0x4] sm:$0xf] %v399
      %p404 = scmp.lt.s32.totalorder %s16, 1
      %s405 = scalar_select %p404, %s16, 1
      %s406 = smul.addr %s405, 2
      %s407 = smul.addr %s406, 4
      %s408 = scalar_lea.vmem %s5, %s407
      // Predicated region
      $region41: #{simclr_vit_forward.3} parent=39 // pred_check
        %p409 = pneg %p144
      $region42: #{simclr_vit_forward.3} parent=39 // pred_check_branch
        %411 = sbr.rel (%p409) target = $region44
      $region43: #{simclr_vit_forward.3} parent=39 // pred_region
        _
      $region44: #{simclr_vit_forward.3} parent=39 // pred_fallthru
        _
    $region40: #{simclr_vit_forward.3} parent=5 // pred_fallthru
      _
    %p412 = scmp.le.s32.totalorder 2, %s11
    // Predicated region
    $region45: #{simclr_vit_forward.3} parent=5 // pred_check
      %p413 = pneg %p412
    $region46: #{simclr_vit_forward.3} parent=5 // pred_check_branch
      %415 = sbr.rel (%p413) target = $region48
    $region47: #{simclr_vit_forward.3} parent=5 // pred_region
      %s416 = ssub.s32 %s11, 2
      // Predicated region
      $region49: #{simclr_vit_forward.3} parent=47 // pred_check
        %p417 = pneg %p150
      $region50: #{simclr_vit_forward.3} parent=47 // pred_check_branch
        %419 = sbr.rel (%p417) target = $region52
      $region51: #{simclr_vit_forward.3} parent=47 // pred_region
        %p420 = scmp.lt.s32.totalorder %s17, 1
        %s421 = scalar_select %p420, %s17, 1
        %s422 = smul.addr %s421, 2
        %s423 = smul.addr %s422, 4
        %s424 = scalar_lea.vmem %s5, %s423
      $region52: #{simclr_vit_forward.3} parent=47 // pred_fallthru
        _
    $region48: #{simclr_vit_forward.3} parent=5 // pred_fallthru
      _
  $region6: #{simclr_vit_forward.3} parent=0 // loop_footer
    %s15 = sadd.s32 1, %s11
  $region7: #{simclr_vit_forward.3} parent=0 // loop_footer_branch
    %10 = sbr.rel target = $region3
  $region8: #{simclr_vit_forward.3} parent=0 // loop_exit
    _

// kernel: simclr_vit_forward.5
$region0: #{simclr_vit_forward.5}
  #allocation0 [shape = 'u32[]', space=smem, size = 0x4, offset = 0x4, fixed_abs, tag = 'smem constant byte address 0x4 - core index']
  #allocation1 [shape = 'u32[144,128]{1,0:T(1,128)}', space=vmem, size = 0x12000, scoped, tag = 'internal scratch']
  %s0 = inlined_call_operand.vmem [shape: bf16[2,16,128], index: 0, kind: input, shape index: {}]
  %s1 = inlined_call_operand.vmem [shape: f32[1,128], index: 1, kind: input, shape index: {}]
  %s2 = inlined_call_operand.vmem [shape: f32[1,128], index: 2, kind: input, shape index: {}]
  %s3 = inlined_call_operand.vmem [shape: bf16[128,128], index: 3, kind: input, shape index: {}]
  %s4 = inlined_call_operand.vmem [shape: f32[1,128], index: 4, kind: input, shape index: {}]
  %s5 = inlined_call_operand.vmem [shape: bf16[128,512], index: 5, kind: input, shape index: {}]
  %s6 = inlined_call_operand.vmem [shape: f32[1,512], index: 6, kind: input, shape index: {}]
  %s7 = inlined_call_operand.vmem [shape: bf16[512,128], index: 7, kind: input, shape index: {}]
  %s8 = inlined_call_operand.vmem [shape: f32[1,128], index: 8, kind: input, shape index: {}]
  %s9 = inlined_call_operand.hbm [shape: f32[2,128], index: 9, kind: output, shape index: {}]
  %s10 = sld [smem:[#allocation0]]
  $region87: #{simclr_vit_forward.5} parent=0
    _
  %s12 = ssub.s32 1, %s10
  %s13 = scalar_select 0, %s12, %s10
  $region1: #{simclr_vit_forward.5} parent=0
    #allocation2 [shape = 'u8[4096]{0}', space=vmem, size = 0x1000, scoped, tag = 'input window, operand 0, single buffered']
    #allocation3 [shape = 'u8[1024]{0}', space=vmem, size = 0x400, scoped, tag = 'output window, operand 0, single buffered']
    #allocation4 [shape = 's32[1]{0}', space=sflag, size = 0x4, scoped, tag = 'scoped memory for simclr_vit_forward.5']
    %14 = vsyncpa [#allocation4], 0
    // Predicated region
    $region2: #{simclr_vit_forward.5} parent=1 // pred_check
      _
    $region3: #{simclr_vit_forward.5} parent=1 // pred_check_branch
      %16 = sbr.rel (0) target = $region5
    $region4: #{simclr_vit_forward.5} parent=1 // pred_region
      // Predicated region
      $region6: #{simclr_vit_forward.5} parent=4 // pred_check
        _
      $region7: #{simclr_vit_forward.5} parent=4 // pred_check_branch
        %18 = sbr.rel (0) target = $region9
      $region8: #{simclr_vit_forward.5} parent=4 // pred_region
        // Predicated region
        $region10: #{simclr_vit_forward.5} parent=8 // pred_check
          _
        $region11: #{simclr_vit_forward.5} parent=8 // pred_check_branch
          %20 = sbr.rel target = $region13
        $region12: #{simclr_vit_forward.5} parent=8 // pred_region
          // Predicated region
          $region25: #{simclr_vit_forward.5} parent=12 // pred_check
            _
          $region26: #{simclr_vit_forward.5} parent=12 // pred_check_branch
            %37 = sbr.rel (0) target = $region28
          $region27: #{simclr_vit_forward.5} parent=12 // pred_region
            loop: start=0, step=1, limit=1
            $region29: #{simclr_vit_forward.5} parent=27 // loop_pre_header
              _
            $region30: #{simclr_vit_forward.5} parent=27 // loop_header
              %s39 = sphi 0, %s43
              %p40 = scmp.ge.s32.totalorder %s39, 1
              %s44 = sphi %s0, %s0
              %s45 = sphi [#allocation2], [#allocation2]
            $region31: #{simclr_vit_forward.5} parent=27 // loop_header_branch
              %42 = sbr.rel (%p40) target = $region35
            $region32: #{simclr_vit_forward.5} parent=27 // loop_body
              _
            $region33: #{simclr_vit_forward.5} parent=27 // loop_footer
              %s43 = sadd.s32 1, %s39
            $region34: #{simclr_vit_forward.5} parent=27 // loop_footer_branch
              %38 = sbr.rel target = $region30
            $region35: #{simclr_vit_forward.5} parent=27 // loop_exit
              _
            loop: start=0, step=1, limit=1
            $region36: #{simclr_vit_forward.5} parent=27 // loop_pre_header
              _
            $region37: #{simclr_vit_forward.5} parent=27 // loop_header
              %s48 = sphi 0, %s52
              %p49 = scmp.ge.s32.totalorder %s48, 1
              %s53 = sphi %s0, %s0
              %s54 = sphi [#allocation2], [#allocation2]
            $region38: #{simclr_vit_forward.5} parent=27 // loop_header_branch
              %51 = sbr.rel (%p49) target = $region42
            $region39: #{simclr_vit_forward.5} parent=27 // loop_body
              %v55 = vld [vmem:[%s53] sm:$0xf]
              %56 = vst [vmem:[%s54] sm:$0xf] %v55
              %v57 = vld [vmem:[%s53 + $0x8] sm:$0xf]
              %58 = vst [vmem:[%s54 + $0x4] sm:$0xf] %v57
            $region40: #{simclr_vit_forward.5} parent=27 // loop_footer
              %s52 = sadd.s32 1, %s48
            $region41: #{simclr_vit_forward.5} parent=27 // loop_footer_branch
              %47 = sbr.rel target = $region37
            $region42: #{simclr_vit_forward.5} parent=27 // loop_exit
              _
          $region28: #{simclr_vit_forward.5} parent=12 // pred_fallthru
            _
        $region13: #{simclr_vit_forward.5} parent=8 // pred_fallthru
          _
        // Predicated region
        $region14: #{simclr_vit_forward.5} parent=8 // pred_check
          _
        $region15: #{simclr_vit_forward.5} parent=8 // pred_check_branch
          %22 = sbr.rel (0) target = $region17
        $region16: #{simclr_vit_forward.5} parent=8 // pred_region
          loop: start=0, step=1, limit=1
          $region18: #{simclr_vit_forward.5} parent=16 // loop_pre_header
            _
          $region19: #{simclr_vit_forward.5} parent=16 // loop_header
            %s25 = sphi 0, %s29
            %p26 = scmp.ge.s32.totalorder %s25, 1
            %s30 = sphi %s0, %s0
            %s31 = sphi [#allocation2], [#allocation2]
          $region20: #{simclr_vit_forward.5} parent=16 // loop_header_branch
            %28 = sbr.rel (%p26) target = $region24
          $region21: #{simclr_vit_forward.5} parent=16 // loop_body
            %v32 = vld [vmem:[%s30] sm:$0xf]
            %33 = vst [vmem:[%s31] sm:$0xf] %v32
            %v34 = vld [vmem:[%s30 + $0x8] sm:$0xf]
            %35 = vst [vmem:[%s31 + $0x4] sm:$0xf] %v34
          $region22: #{simclr_vit_forward.5} parent=16 // loop_footer
            %s29 = sadd.s32 1, %s25
          $region23: #{simclr_vit_forward.5} parent=16 // loop_footer_branch
            %24 = sbr.rel target = $region19
          $region24: #{simclr_vit_forward.5} parent=16 // loop_exit
            _
        $region17: #{simclr_vit_forward.5} parent=8 // pred_fallthru
          _
      $region9: #{simclr_vit_forward.5} parent=4 // pred_fallthru
        _
      %59 = vnop
    $region5: #{simclr_vit_forward.5} parent=1 // pred_fallthru
      _
    // Predicated region
    $region43: #{simclr_vit_forward.5} parent=1 // pred_check
      _
    $region44: #{simclr_vit_forward.5} parent=1 // pred_check_branch
      %61 = sbr.rel (0) target = $region46
    $region45: #{simclr_vit_forward.5} parent=1 // pred_region
      _
    $region46: #{simclr_vit_forward.5} parent=1 // pred_fallthru
      _
    // Predicated region
    $region47: #{simclr_vit_forward.5} parent=1 // pred_check
      _
    $region48: #{simclr_vit_forward.5} parent=1 // pred_check_branch
      %63 = sbr.rel (0) target = $region50
    $region49: #{simclr_vit_forward.5} parent=1 // pred_region
      _
    $region50: #{simclr_vit_forward.5} parent=1 // pred_fallthru
      _
    // Predicated region
    $region51: #{simclr_vit_forward.5} parent=1 // pred_check
      _
    $region52: #{simclr_vit_forward.5} parent=1 // pred_check_branch
      %65 = sbr.rel (0) target = $region54
    $region53: #{simclr_vit_forward.5} parent=1 // pred_region
      _
    $region54: #{simclr_vit_forward.5} parent=1 // pred_fallthru
      _
    // Predicated region
    $region55: #{simclr_vit_forward.5} parent=1 // pred_check
      _
    $region56: #{simclr_vit_forward.5} parent=1 // pred_check_branch
      %67 = sbr.rel (0) target = $region58
    $region57: #{simclr_vit_forward.5} parent=1 // pred_region
      _
    $region58: #{simclr_vit_forward.5} parent=1 // pred_fallthru
      _
    // Predicated region
    $region59: #{simclr_vit_forward.5} parent=1 // pred_check
      _
    $region60: #{simclr_vit_forward.5} parent=1 // pred_check_branch
      %69 = sbr.rel (0) target = $region62
    $region61: #{simclr_vit_forward.5} parent=1 // pred_region
      _
    $region62: #{simclr_vit_forward.5} parent=1 // pred_fallthru
      _
    // Predicated region
    $region63: #{simclr_vit_forward.5} parent=1 // pred_check
      _
    $region64: #{simclr_vit_forward.5} parent=1 // pred_check_branch
      %71 = sbr.rel (0) target = $region66
    $region65: #{simclr_vit_forward.5} parent=1 // pred_region
      _
    $region66: #{simclr_vit_forward.5} parent=1 // pred_fallthru
      _
    // Predicated region
    $region67: #{simclr_vit_forward.5} parent=1 // pred_check
      _
    $region68: #{simclr_vit_forward.5} parent=1 // pred_check_branch
      %73 = sbr.rel (0) target = $region70
    $region69: #{simclr_vit_forward.5} parent=1 // pred_region
      _
    $region70: #{simclr_vit_forward.5} parent=1 // pred_fallthru
      _
    // Predicated region
    $region71: #{simclr_vit_forward.5} parent=1 // pred_check
      _
    $region72: #{simclr_vit_forward.5} parent=1 // pred_check_branch
      %75 = sbr.rel (0) target = $region74
    $region73: #{simclr_vit_forward.5} parent=1 // pred_region
      _
    $region74: #{simclr_vit_forward.5} parent=1 // pred_fallthru
      _
    // Predicated region
    $region75: #{simclr_vit_forward.5} parent=1 // pred_check
      _
    $region76: #{simclr_vit_forward.5} parent=1 // pred_check_branch
      %77 = sbr.rel (0) target = $region78
    $region77: #{simclr_vit_forward.5} parent=1 // pred_region
      _
    $region78: #{simclr_vit_forward.5} parent=1 // pred_fallthru
      _
    %v79 = vld [vmem:[#allocation2] sm:$0xf]
    %v80 = vld [vmem:[#allocation2 + $0x4] sm:$0xf]
    %v81 = vunpack.c.l.bf16 %v79
    %v82 = vunpack.c.l.bf16 %v80
    %v83 = vld [vmem:[%s1] sm:$0x1]
    %v84 = vld [vmem:[%s2] sm:$0x1]
    %v87 = vrot.slane %v82, 7
    %vm88 = vcmask 1041409
    %v89 = vsel %vm88, %v87, %v81
    %vm91 = vcmask 1041408
    %v92 = vsel %vm91, %v89, 0.0
    %93 = vadd.xlane.f32.xlu0 %v92
    %v94 = vpop.xlane.xlu0 %93
    %v95 = vrcp.pop 128.0
    %v96 = vmul.f32 %v94, %v95
    %v98 = vrot.slane %v96, 1
    %v101 = vsub.f32 %v81, %v96
    %v102 = vsub.f32 %v82, %v98
    %v103 = vmul.f32 %v101, %v101
    %v104 = vmul.f32 %v102, %v102
    %v107 = vrot.slane %v104, 7
    %v108 = vsel %vm88, %v107, %v103
    %v110 = vsel %vm91, %v108, 0.0
    %111 = vadd.xlane.f32.xlu0 %v110
    %v112 = vpop.xlane.xlu0 %111
    %v113 = vmul.f32 %v112, %v95
    %v114 = vadd.f32 %v113, 1e-12
    %v115 = vrsqrt.pop %v114
    %v117 = vrot.slane %v115, 1
    %v120 = vmul.f32 %v101, %v115
    %v121 = vmul.f32 %v102, %v117
    %v123 = vlaneseq
    %v124 = vshrl.u32 %v123, 7
    %v125 = vsub.s32 0, %v124
    %v126 = vrot.slane %v83, %v125
    %v128 = vmul.f32 %v120, %v126
    %v129 = vmul.f32 %v121, %v126
    %v131 = vlaneseq
    %v132 = vshrl.u32 %v131, 7
    %v133 = vsub.s32 0, %v132
    %v134 = vrot.slane %v84, %v133
    %v136 = vadd.f32 %v128, %v134
    %v137 = vadd.f32 %v129, %v134
    %v138 = vpack.c.bf16 %v136, %v136
    %v139 = vpack.c.bf16 %v137, %v137
    %v140 = vld [vmem:[%s3] sm:$0xf]
    %v141 = vld [vmem:[%s3 + $0x4] sm:$0xf]
    %v142 = vld [vmem:[%s3 + $0x8] sm:$0xf]
    %v143 = vld [vmem:[%s3 + $0xc] sm:$0xf]
    %v144 = vld [vmem:[%s3 + $0x10] sm:$0xf]
    %v145 = vld [vmem:[%s3 + $0x14] sm:$0xf]
    %v146 = vld [vmem:[%s3 + $0x18] sm:$0xf]
    %v147 = vld [vmem:[%s3 + $0x1c] sm:$0xf]
    %v148 = vld [vmem:[%s3 + $0x20] sm:$0xf]
    %v149 = vld [vmem:[%s3 + $0x24] sm:$0xf]
    %v150 = vld [vmem:[%s3 + $0x28] sm:$0xf]
    %v151 = vld [vmem:[%s3 + $0x2c] sm:$0xf]
    %v152 = vld [vmem:[%s3 + $0x30] sm:$0xf]
    %v153 = vld [vmem:[%s3 + $0x34] sm:$0xf]
    %v154 = vld [vmem:[%s3 + $0x38] sm:$0xf]
    %v155 = vld [vmem:[%s3 + $0x3c] sm:$0xf]
    %v156 = vld [vmem:[%s4] sm:$0x1]
    %v158 = vlaneseq
    %v159 = vshrl.u32 %v158, 7
    %v160 = vsub.s32 0, %v159
    %v161 = vrot.slane %v156, %v160
    %v165 = vunpack.c.l.b16 %v138
    %v166 = vunpack.c.l.b16 %v139
    %v167 = vrot.slane %v166, 7
    %v168 = vsel %vm88, %v167, %v165
    %v169 = vpack.c.b16 %v168, %v168
    %v187 = vunpack.c.l.b16 %v140
    %v188 = vunpack.c.l.b16 %v141
    %v189 = vunpack.c.l.b16 %v142
    %v190 = vunpack.c.l.b16 %v143
    %v191 = vunpack.c.l.b16 %v144
    %v192 = vunpack.c.l.b16 %v145
    %v193 = vunpack.c.l.b16 %v146
    %v194 = vunpack.c.l.b16 %v147
    %v195 = vunpack.c.l.b16 %v148
    %v196 = vunpack.c.l.b16 %v149
    %v197 = vunpack.c.l.b16 %v150
    %v198 = vunpack.c.l.b16 %v151
    %v199 = vunpack.c.l.b16 %v152
    %v200 = vunpack.c.l.b16 %v153
    %v201 = vunpack.c.l.b16 %v154
    %v202 = vunpack.c.l.b16 %v155
    %v203 = vpack.c.b16 %v188, %v187
    %v204 = vpack.c.b16 %v190, %v189
    %v205 = vpack.c.b16 %v192, %v191
    %v206 = vpack.c.b16 %v194, %v193
    %v207 = vpack.c.b16 %v196, %v195
    %v208 = vpack.c.b16 %v198, %v197
    %v209 = vpack.c.b16 %v200, %v199
    %v210 = vpack.c.b16 %v202, %v201
    %219 = vmatprep.subr.bf16.mxu0 0
    %220 = vmatpush1.bf16.msra.mxu0 %v203
    %221 = vmatprep.subr.bf16.mxu0 0
    %222 = vmatpush1.bf16.msra.mxu0 %v204
    %223 = vmatprep.subr.bf16.mxu0 0
    %224 = vmatpush1.bf16.msra.mxu0 %v205
    %225 = vmatprep.subr.bf16.mxu0 0
    %226 = vmatpush1.bf16.msra.mxu0 %v206
    %227 = vmatprep.subr.bf16.mxu0 0
    %228 = vmatpush1.bf16.msra.mxu0 %v207
    %229 = vmatprep.subr.bf16.mxu0 0
    %230 = vmatpush1.bf16.msra.mxu0 %v208
    %231 = vmatprep.subr.bf16.mxu0 0
    %232 = vmatpush1.bf16.msra.mxu0 %v209
    %233 = vmatprep.subr.bf16.mxu0 0
    %234 = vmatpush1.bf16.msra.mxu0 %v210
    %235 = vmatprep.subr.bf16.mxu0 0
    %236 = vmatpush1.bf16.msra.mxu0 0
    %237 = vmatprep.subr.bf16.mxu0 0
    %238 = vmatpush1.bf16.msra.mxu0 0
    %239 = vmatprep.subr.bf16.mxu0 0
    %240 = vmatpush1.bf16.msra.mxu0 0
    %241 = vmatprep.subr.bf16.mxu0 0
    %242 = vmatpush1.bf16.msra.mxu0 0
    %243 = vmatprep.subr.bf16.mxu0 0
    %244 = vmatpush1.bf16.msra.mxu0 0
    %245 = vmatprep.subr.bf16.mxu0 0
    %246 = vmatpush1.bf16.msra.mxu0 0
    %247 = vmatprep.subr.bf16.mxu0 0
    %248 = vmatpush1.bf16.msra.mxu0 0
    %249 = vmatprep.subr.bf16.mxu0 0
    %250 = vmatpush1.bf16.msra.mxu0 0
    %251 = vmatprep.mubr.bf16.mxu0 0
    %252 = vmatmul.mubr.bf16.gmra.mrb[0].mxu0 %v169
    %v253 = vpop.f32.mrb[0].mxu0
    %v254 = vadd.f32 %v161, %v253
    %v255 = vpop.f32.mrb[0].mxu0
    %v256 = vpop.f32.mrb[0].mxu0
    %v257 = vpop.f32.mrb[0].mxu0
    %258 = vdwg.mxu0
    %v259 = vtanh.pop %v254
    %v260 = vpack.c.bf16 %v259, %v259
    %v261 = vld [vmem:[%s5] sm:$0xff]
    %v262 = vld [vmem:[%s5 + $0x8] sm:$0xff]
    %v263 = vld [vmem:[%s5 + $0x10] sm:$0xff]
    %v264 = vld [vmem:[%s5 + $0x18] sm:$0xff]
    %v265 = vld [vmem:[%s5 + $0x20] sm:$0xff]
    %v266 = vld [vmem:[%s5 + $0x28] sm:$0xff]
    %v267 = vld [vmem:[%s5 + $0x30] sm:$0xff]
    %v268 = vld [vmem:[%s5 + $0x38] sm:$0xff]
    %v269 = vld [vmem:[%s5 + $0x40] sm:$0xff]
    %v270 = vld [vmem:[%s5 + $0x48] sm:$0xff]
    %v271 = vld [vmem:[%s5 + $0x50] sm:$0xff]
    %v272 = vld [vmem:[%s5 + $0x58] sm:$0xff]
    %v273 = vld [vmem:[%s5 + $0x60] sm:$0xff]
    %v274 = vld [vmem:[%s5 + $0x68] sm:$0xff]
    %v275 = vld [vmem:[%s5 + $0x70] sm:$0xff]
    %v276 = vld [vmem:[%s5 + $0x78] sm:$0xff]
    %v277 = vld [vmem:[%s5 + $0x80] sm:$0xff]
    %v278 = vld [vmem:[%s5 + $0x88] sm:$0xff]
    %v279 = vld [vmem:[%s5 + $0x90] sm:$0xff]
    %v280 = vld [vmem:[%s5 + $0x98] sm:$0xff]
    %v281 = vld [vmem:[%s5 + $0xa0] sm:$0xff]
    %v282 = vld [vmem:[%s5 + $0xa8] sm:$0xff]
    %v283 = vld [vmem:[%s5 + $0xb0] sm:$0xff]
    %v284 = vld [vmem:[%s5 + $0xb8] sm:$0xff]
    %v285 = vld [vmem:[%s5 + $0xc0] sm:$0xff]
    %v286 = vld [vmem:[%s5 + $0xc8] sm:$0xff]
    %v287 = vld [vmem:[%s5 + $0xd0] sm:$0xff]
    %v288 = vld [vmem:[%s5 + $0xd8] sm:$0xff]
    %v289 = vld [vmem:[%s5 + $0xe0] sm:$0xff]
    %v290 = vld [vmem:[%s5 + $0xe8] sm:$0xff]
    %v291 = vld [vmem:[%s5 + $0xf0] sm:$0xff]
    %v292 = vld [vmem:[%s5 + $0xf8] sm:$0xff]
    %v293 = vld [vmem:[%s6] sm:$0xf]
    %v295 = vlaneseq
    %v296 = vshrl.u32 %v295, 7
    %v297 = vsub.s32 0, %v296
    %v298 = vrot.slane %v293, %v297
    %v299 = vlaneseq
    %v300 = vshrl.u32 %v299, 7
    %v301 = vsub.s32 1, %v300
    %v302 = vrot.slane %v293, %v301
    %v303 = vlaneseq
    %v304 = vshrl.u32 %v303, 7
    %v305 = vsub.s32 2, %v304
    %v306 = vrot.slane %v293, %v305
    %v307 = vlaneseq
    %v308 = vshrl.u32 %v307, 7
    %v309 = vsub.s32 3, %v308
    %v310 = vrot.slane %v293, %v309
    %v347 = vunpack.c.l.b16 %v261
    %v348 = vunpack.c.h.b16 %v261
    %v349 = vunpack.c.l.b16 %v262
    %v350 = vunpack.c.h.b16 %v262
    %v351 = vunpack.c.l.b16 %v263
    %v352 = vunpack.c.h.b16 %v263
    %v353 = vunpack.c.l.b16 %v264
    %v354 = vunpack.c.h.b16 %v264
    %v355 = vunpack.c.l.b16 %v265
    %v356 = vunpack.c.h.b16 %v265
    %v357 = vunpack.c.l.b16 %v266
    %v358 = vunpack.c.h.b16 %v266
    %v359 = vunpack.c.l.b16 %v267
    %v360 = vunpack.c.h.b16 %v267
    %v361 = vunpack.c.l.b16 %v268
    %v362 = vunpack.c.h.b16 %v268
    %v363 = vunpack.c.l.b16 %v269
    %v364 = vunpack.c.h.b16 %v269
    %v365 = vunpack.c.l.b16 %v270
    %v366 = vunpack.c.h.b16 %v270
    %v367 = vunpack.c.l.b16 %v271
    %v368 = vunpack.c.h.b16 %v271
    %v369 = vunpack.c.l.b16 %v272
    %v370 = vunpack.c.h.b16 %v272
    %v371 = vunpack.c.l.b16 %v273
    %v372 = vunpack.c.h.b16 %v273
    %v373 = vunpack.c.l.b16 %v274
    %v374 = vunpack.c.h.b16 %v274
    %v375 = vunpack.c.l.b16 %v275
    %v376 = vunpack.c.h.b16 %v275
    %v377 = vunpack.c.l.b16 %v276
    %v378 = vunpack.c.h.b16 %v276
    %v379 = vunpack.c.l.b16 %v277
    %v380 = vunpack.c.h.b16 %v277
    %v381 = vunpack.c.l.b16 %v278
    %v382 = vunpack.c.h.b16 %v278
    %v383 = vunpack.c.l.b16 %v279
    %v384 = vunpack.c.h.b16 %v279
    %v385 = vunpack.c.l.b16 %v280
    %v386 = vunpack.c.h.b16 %v280
    %v387 = vunpack.c.l.b16 %v281
    %v388 = vunpack.c.h.b16 %v281
    %v389 = vunpack.c.l.b16 %v282
    %v390 = vunpack.c.h.b16 %v282
    %v391 = vunpack.c.l.b16 %v283
    %v392 = vunpack.c.h.b16 %v283
    %v393 = vunpack.c.l.b16 %v284
    %v394 = vunpack.c.h.b16 %v284
    %v395 = vunpack.c.l.b16 %v285
    %v396 = vunpack.c.h.b16 %v285
    %v397 = vunpack.c.l.b16 %v286
    %v398 = vunpack.c.h.b16 %v286
    %v399 = vunpack.c.l.b16 %v287
    %v400 = vunpack.c.h.b16 %v287
    %v401 = vunpack.c.l.b16 %v288
    %v402 = vunpack.c.h.b16 %v288
    %v403 = vunpack.c.l.b16 %v289
    %v404 = vunpack.c.h.b16 %v289
    %v405 = vunpack.c.l.b16 %v290
    %v406 = vunpack.c.h.b16 %v290
    %v407 = vunpack.c.l.b16 %v291
    %v408 = vunpack.c.h.b16 %v291
    %v409 = vunpack.c.l.b16 %v292
    %v410 = vunpack.c.h.b16 %v292
    %v411 = vpack.c.b16 %v351, %v347
    %v412 = vpack.c.b16 %v352, %v348
    %v413 = vpack.c.b16 %v353, %v349
    %v414 = vpack.c.b16 %v354, %v350
    %v415 = vpack.c.b16 %v359, %v355
    %v416 = vpack.c.b16 %v360, %v356
    %v417 = vpack.c.b16 %v361, %v357
    %v418 = vpack.c.b16 %v362, %v358
    %v419 = vpack.c.b16 %v367, %v363
    %v420 = vpack.c.b16 %v368, %v364
    %v421 = vpack.c.b16 %v369, %v365
    %v422 = vpack.c.b16 %v370, %v366
    %v423 = vpack.c.b16 %v375, %v371
    %v424 = vpack.c.b16 %v376, %v372
    %v425 = vpack.c.b16 %v377, %v373
    %v426 = vpack.c.b16 %v378, %v374
    %v427 = vpack.c.b16 %v383, %v379
    %v428 = vpack.c.b16 %v384, %v380
    %v429 = vpack.c.b16 %v385, %v381
    %v430 = vpack.c.b16 %v386, %v382
    %v431 = vpack.c.b16 %v391, %v387
    %v432 = vpack.c.b16 %v392, %v388
    %v433 = vpack.c.b16 %v393, %v389
    %v434 = vpack.c.b16 %v394, %v390
    %v435 = vpack.c.b16 %v399, %v395
    %v436 = vpack.c.b16 %v400, %v396
    %v437 = vpack.c.b16 %v401, %v397
    %v438 = vpack.c.b16 %v402, %v398
    %v439 = vpack.c.b16 %v407, %v403
    %v440 = vpack.c.b16 %v408, %v404
    %v441 = vpack.c.b16 %v409, %v405
    %v442 = vpack.c.b16 %v410, %v406
    %475 = vmatprep.subr.bf16.mxu0 %v412
    %476 = vmatpush1.bf16.msra.mxu0 %v411
    %477 = vmatprep.subr.bf16.mxu0 %v416
    %478 = vmatpush1.bf16.msra.mxu0 %v415
    %479 = vmatprep.subr.bf16.mxu0 %v420
    %480 = vmatpush1.bf16.msra.mxu0 %v419
    %481 = vmatprep.subr.bf16.mxu0 %v424
    %482 = vmatpush1.bf16.msra.mxu0 %v423
    %483 = vmatprep.subr.bf16.mxu0 %v428
    %484 = vmatpush1.bf16.msra.mxu0 %v427
    %485 = vmatprep.subr.bf16.mxu0 %v432
    %486 = vmatpush1.bf16.msra.mxu0 %v431
    %487 = vmatprep.subr.bf16.mxu0 %v436
    %488 = vmatpush1.bf16.msra.mxu0 %v435
    %489 = vmatprep.subr.bf16.mxu0 %v440
    %490 = vmatpush1.bf16.msra.mxu0 %v439
    %491 = vmatprep.subr.bf16.mxu0 0
    %492 = vmatpush1.bf16.msra.mxu0 0
    %493 = vmatprep.subr.bf16.mxu0 0
    %494 = vmatpush1.bf16.msra.mxu0 0
    %495 = vmatprep.subr.bf16.mxu0 0
    %496 = vmatpush1.bf16.msra.mxu0 0
    %497 = vmatprep.subr.bf16.mxu0 0
    %498 = vmatpush1.bf16.msra.mxu0 0
    %499 = vmatprep.subr.bf16.mxu0 0
    %500 = vmatpush1.bf16.msra.mxu0 0
    %501 = vmatprep.subr.bf16.mxu0 0
    %502 = vmatpush1.bf16.msra.mxu0 0
    %503 = vmatprep.subr.bf16.mxu0 0
    %504 = vmatpush1.bf16.msra.mxu0 0
    %505 = vmatprep.subr.bf16.mxu0 0
    %506 = vmatpush1.bf16.msra.mxu0 0
    %507 = vmatprep.mubr.bf16.mxu0 0
    %508 = vmatmul.mubr.bf16.gmra.mrb[0].mxu0 %v260
    %v509 = vpop.f32.mrb[0].mxu0
    %v510 = vadd.f32 %v298, %v509
    %v511 = vpop.f32.mrb[0].mxu0
    %v512 = vadd.f32 %v302, %v511
    %v513 = vpop.f32.mrb[0].mxu0
    %v514 = vpop.f32.mrb[0].mxu0
    %515 = vdwg.mxu0
    %516 = vmatprep.subr.bf16.mxu0 %v414
    %517 = vmatpush1.bf16.msra.mxu0 %v413
    %518 = vmatprep.subr.bf16.mxu0 %v418
    %519 = vmatpush1.bf16.msra.mxu0 %v417
    %520 = vmatprep.subr.bf16.mxu0 %v422
    %521 = vmatpush1.bf16.msra.mxu0 %v421
    %522 = vmatprep.subr.bf16.mxu0 %v426
    %523 = vmatpush1.bf16.msra.mxu0 %v425
    %524 = vmatprep.subr.bf16.mxu0 %v430
    %525 = vmatpush1.bf16.msra.mxu0 %v429
    %526 = vmatprep.subr.bf16.mxu0 %v434
    %527 = vmatpush1.bf16.msra.mxu0 %v433
    %528 = vmatprep.subr.bf16.mxu0 %v438
    %529 = vmatpush1.bf16.msra.mxu0 %v437
    %530 = vmatprep.subr.bf16.mxu0 %v442
    %531 = vmatpush1.bf16.msra.mxu0 %v441
    %532 = vmatprep.subr.bf16.mxu0 0
    %533 = vmatpush1.bf16.msra.mxu0 0
    %534 = vmatprep.subr.bf16.mxu0 0
    %535 = vmatpush1.bf16.msra.mxu0 0
    %536 = vmatprep.subr.bf16.mxu0 0
    %537 = vmatpush1.bf16.msra.mxu0 0
    %538 = vmatprep.subr.bf16.mxu0 0
    %539 = vmatpush1.bf16.msra.mxu0 0
    %540 = vmatprep.subr.bf16.mxu0 0
    %541 = vmatpush1.bf16.msra.mxu0 0
    %542 = vmatprep.subr.bf16.mxu0 0
    %543 = vmatpush1.bf16.msra.mxu0 0
    %544 = vmatprep.subr.bf16.mxu0 0
    %545 = vmatpush1.bf16.msra.mxu0 0
    %546 = vmatprep.subr.bf16.mxu0 0
    %547 = vmatpush1.bf16.msra.mxu0 0
    %548 = vmatprep.mubr.bf16.mxu0 0
    %549 = vmatmul.mubr.bf16.gmra.mrb[0].mxu0 %v260
    %v550 = vpop.f32.mrb[0].mxu0
    %v551 = vadd.f32 %v306, %v550
    %v552 = vpop.f32.mrb[0].mxu0
    %v553 = vadd.f32 %v310, %v552
    %v554 = vpop.f32.mrb[0].mxu0
    %v555 = vpop.f32.mrb[0].mxu0
    %556 = vdwg.mxu0
    %v557 = vmax.f32 %v510, 0.0
    %v558 = vmax.f32 %v512, 0.0
    %v559 = vmax.f32 %v551, 0.0
    %v560 = vmax.f32 %v553, 0.0
    %v561 = vpack.c.bf16 %v557, %v557
    %v562 = vpack.c.bf16 %v558, %v558
    %v563 = vpack.c.bf16 %v559, %v559
    %v564 = vpack.c.bf16 %v560, %v560
    %v565 = vld [vmem:[%s7] sm:$0xf]
    %v566 = vld [vmem:[%s7 + $0x4] sm:$0xf]
    %v567 = vld [vmem:[%s7 + $0x8] sm:$0xf]
    %v568 = vld [vmem:[%s7 + $0xc] sm:$0xf]
    %v569 = vld [vmem:[%s7 + $0x10] sm:$0xf]
    %v570 = vld [vmem:[%s7 + $0x14] sm:$0xf]
    %v571 = vld [vmem:[%s7 + $0x18] sm:$0xf]
    %v572 = vld [vmem:[%s7 + $0x1c] sm:$0xf]
    %v573 = vld [vmem:[%s7 + $0x20] sm:$0xf]
    %v574 = vld [vmem:[%s7 + $0x24] sm:$0xf]
    %v575 = vld [vmem:[%s7 + $0x28] sm:$0xf]
    %v576 = vld [vmem:[%s7 + $0x2c] sm:$0xf]
    %v577 = vld [vmem:[%s7 + $0x30] sm:$0xf]
    %v578 = vld [vmem:[%s7 + $0x34] sm:$0xf]
    %v579 = vld [vmem:[%s7 + $0x38] sm:$0xf]
    %v580 = vld [vmem:[%s7 + $0x3c] sm:$0xf]
    %v581 = vld [vmem:[%s7 + $0x40] sm:$0xf]
    %v582 = vld [vmem:[%s7 + $0x44] sm:$0xf]
    %v583 = vld [vmem:[%s7 + $0x48] sm:$0xf]
    %v584 = vld [vmem:[%s7 + $0x4c] sm:$0xf]
    %v585 = vld [vmem:[%s7 + $0x50] sm:$0xf]
    %v586 = vld [vmem:[%s7 + $0x54] sm:$0xf]
    %v587 = vld [vmem:[%s7 + $0x58] sm:$0xf]
    %v588 = vld [vmem:[%s7 + $0x5c] sm:$0xf]
    %v589 = vld [vmem:[%s7 + $0x60] sm:$0xf]
    %v590 = vld [vmem:[%s7 + $0x64] sm:$0xf]
    %v591 = vld [vmem:[%s7 + $0x68] sm:$0xf]
    %v592 = vld [vmem:[%s7 + $0x6c] sm:$0xf]
    %v593 = vld [vmem:[%s7 + $0x70] sm:$0xf]
    %v594 = vld [vmem:[%s7 + $0x74] sm:$0xf]
    %v595 = vld [vmem:[%s7 + $0x78] sm:$0xf]
    %v596 = vld [vmem:[%s7 + $0x7c] sm:$0xf]
    %v597 = vld [vmem:[%s7 + $0x80] sm:$0xf]
    %v598 = vld [vmem:[%s7 + $0x84] sm:$0xf]
    %v599 = vld [vmem:[%s7 + $0x88] sm:$0xf]
    %v600 = vld [vmem:[%s7 + $0x8c] sm:$0xf]
    %v601 = vld [vmem:[%s7 + $0x90] sm:$0xf]
    %v602 = vld [vmem:[%s7 + $0x94] sm:$0xf]
    %v603 = vld [vmem:[%s7 + $0x98] sm:$0xf]
    %v604 = vld [vmem:[%s7 + $0x9c] sm:$0xf]
    %v605 = vld [vmem:[%s7 + $0xa0] sm:$0xf]
    %v606 = vld [vmem:[%s7 + $0xa4] sm:$0xf]
    %v607 = vld [vmem:[%s7 + $0xa8] sm:$0xf]
    %v608 = vld [vmem:[%s7 + $0xac] sm:$0xf]
    %v609 = vld [vmem:[%s7 + $0xb0] sm:$0xf]
    %v610 = vld [vmem:[%s7 + $0xb4] sm:$0xf]
    %v611 = vld [vmem:[%s7 + $0xb8] sm:$0xf]
    %v612 = vld [vmem:[%s7 + $0xbc] sm:$0xf]
    %v613 = vld [vmem:[%s7 + $0xc0] sm:$0xf]
    %v614 = vld [vmem:[%s7 + $0xc4] sm:$0xf]
    %v615 = vld [vmem:[%s7 + $0xc8] sm:$0xf]
    %v616 = vld [vmem:[%s7 + $0xcc] sm:$0xf]
    %v617 = vld [vmem:[%s7 + $0xd0] sm:$0xf]
    %v618 = vld [vmem:[%s7 + $0xd4] sm:$0xf]
    %v619 = vld [vmem:[%s7 + $0xd8] sm:$0xf]
    %v620 = vld [vmem:[%s7 + $0xdc] sm:$0xf]
    %v621 = vld [vmem:[%s7 + $0xe0] sm:$0xf]
    %v622 = vld [vmem:[%s7 + $0xe4] sm:$0xf]
    %v623 = vld [vmem:[%s7 + $0xe8] sm:$0xf]
    %v624 = vld [vmem:[%s7 + $0xec] sm:$0xf]
    %v625 = vld [vmem:[%s7 + $0xf0] sm:$0xf]
    %v626 = vld [vmem:[%s7 + $0xf4] sm:$0xf]
    %v627 = vld [vmem:[%s7 + $0xf8] sm:$0xf]
    %v628 = vld [vmem:[%s7 + $0xfc] sm:$0xf]
    %v629 = vld [vmem:[%s8] sm:$0x1]
    %v631 = vlaneseq
    %v632 = vshrl.u32 %v631, 7
    %v633 = vsub.s32 0, %v632
    %v634 = vrot.slane %v629, %v633
    %v700 = vunpack.c.l.b16 %v565
    %v701 = vunpack.c.l.b16 %v566
    %v702 = vunpack.c.l.b16 %v567
    %v703 = vunpack.c.l.b16 %v568
    %v704 = vunpack.c.l.b16 %v569
    %v705 = vunpack.c.l.b16 %v570
    %v706 = vunpack.c.l.b16 %v571
    %v707 = vunpack.c.l.b16 %v572
    %v708 = vunpack.c.l.b16 %v573
    %v709 = vunpack.c.l.b16 %v574
    %v710 = vunpack.c.l.b16 %v575
    %v711 = vunpack.c.l.b16 %v576
    %v712 = vunpack.c.l.b16 %v577
    %v713 = vunpack.c.l.b16 %v578
    %v714 = vunpack.c.l.b16 %v579
    %v715 = vunpack.c.l.b16 %v580
    %v716 = vunpack.c.l.b16 %v581
    %v717 = vunpack.c.l.b16 %v582
    %v718 = vunpack.c.l.b16 %v583
    %v719 = vunpack.c.l.b16 %v584
    %v720 = vunpack.c.l.b16 %v585
    %v721 = vunpack.c.l.b16 %v586
    %v722 = vunpack.c.l.b16 %v587
    %v723 = vunpack.c.l.b16 %v588
    %v724 = vunpack.c.l.b16 %v589
    %v725 = vunpack.c.l.b16 %v590
    %v726 = vunpack.c.l.b16 %v591
    %v727 = vunpack.c.l.b16 %v592
    %v728 = vunpack.c.l.b16 %v593
    %v729 = vunpack.c.l.b16 %v594
    %v730 = vunpack.c.l.b16 %v595
    %v731 = vunpack.c.l.b16 %v596
    %v732 = vunpack.c.l.b16 %v597
    %v733 = vunpack.c.l.b16 %v598
    %v734 = vunpack.c.l.b16 %v599
    %v735 = vunpack.c.l.b16 %v600
    %v736 = vunpack.c.l.b16 %v601
    %v737 = vunpack.c.l.b16 %v602
    %v738 = vunpack.c.l.b16 %v603
    %v739 = vunpack.c.l.b16 %v604
    %v740 = vunpack.c.l.b16 %v605
    %v741 = vunpack.c.l.b16 %v606
    %v742 = vunpack.c.l.b16 %v607
    %v743 = vunpack.c.l.b16 %v608
    %v744 = vunpack.c.l.b16 %v609
    %v745 = vunpack.c.l.b16 %v610
    %v746 = vunpack.c.l.b16 %v611
    %v747 = vunpack.c.l.b16 %v612
    %v748 = vunpack.c.l.b16 %v613
    %v749 = vunpack.c.l.b16 %v614
    %v750 = vunpack.c.l.b16 %v615
    %v751 = vunpack.c.l.b16 %v616
    %v752 = vunpack.c.l.b16 %v617
    %v753 = vunpack.c.l.b16 %v618
    %v754 = vunpack.c.l.b16 %v619
    %v755 = vunpack.c.l.b16 %v620
    %v756 = vunpack.c.l.b16 %v621
    %v757 = vunpack.c.l.b16 %v622
    %v758 = vunpack.c.l.b16 %v623
    %v759 = vunpack.c.l.b16 %v624
    %v760 = vunpack.c.l.b16 %v625
    %v761 = vunpack.c.l.b16 %v626
    %v762 = vunpack.c.l.b16 %v627
    %v763 = vunpack.c.l.b16 %v628
    %v764 = vpack.c.b16 %v701, %v700
    %v765 = vpack.c.b16 %v703, %v702
    %v766 = vpack.c.b16 %v705, %v704
    %v767 = vpack.c.b16 %v707, %v706
    %v768 = vpack.c.b16 %v709, %v708
    %v769 = vpack.c.b16 %v711, %v710
    %v770 = vpack.c.b16 %v713, %v712
    %v771 = vpack.c.b16 %v715, %v714
    %v772 = vpack.c.b16 %v717, %v716
    %v773 = vpack.c.b16 %v719, %v718
    %v774 = vpack.c.b16 %v721, %v720
    %v775 = vpack.c.b16 %v723, %v722
    %v776 = vpack.c.b16 %v725, %v724
    %v777 = vpack.c.b16 %v727, %v726
    %v778 = vpack.c.b16 %v729, %v728
    %v779 = vpack.c.b16 %v731, %v730
    %v780 = vpack.c.b16 %v733, %v732
    %v781 = vpack.c.b16 %v735, %v734
    %v782 = vpack.c.b16 %v737, %v736
    %v783 = vpack.c.b16 %v739, %v738
    %v784 = vpack.c.b16 %v741, %v740
    %v785 = vpack.c.b16 %v743, %v742
    %v786 = vpack.c.b16 %v745, %v744
    %v787 = vpack.c.b16 %v747, %v746
    %v788 = vpack.c.b16 %v749, %v748
    %v789 = vpack.c.b16 %v751, %v750
    %v790 = vpack.c.b16 %v753, %v752
    %v791 = vpack.c.b16 %v755, %v754
    %v792 = vpack.c.b16 %v757, %v756
    %v793 = vpack.c.b16 %v759, %v758
    %v794 = vpack.c.b16 %v761, %v760
    %v795 = vpack.c.b16 %v763, %v762
    %828 = vmatprep.subr.bf16.mxu0 0
    %829 = vmatpush1.bf16.msra.mxu0 %v764
    %830 = vmatprep.subr.bf16.mxu0 0
    %831 = vmatpush1.bf16.msra.mxu0 %v765
    %832 = vmatprep.subr.bf16.mxu0 0
    %833 = vmatpush1.bf16.msra.mxu0 %v766
    %834 = vmatprep.subr.bf16.mxu0 0
    %835 = vmatpush1.bf16.msra.mxu0 %v767
    %836 = vmatprep.subr.bf16.mxu0 0
    %837 = vmatpush1.bf16.msra.mxu0 %v768
    %838 = vmatprep.subr.bf16.mxu0 0
    %839 = vmatpush1.bf16.msra.mxu0 %v769
    %840 = vmatprep.subr.bf16.mxu0 0
    %841 = vmatpush1.bf16.msra.mxu0 %v770
    %842 = vmatprep.subr.bf16.mxu0 0
    %843 = vmatpush1.bf16.msra.mxu0 %v771
    %844 = vmatprep.subr.bf16.mxu0 0
    %845 = vmatpush1.bf16.msra.mxu0 %v772
    %846 = vmatprep.subr.bf16.mxu0 0
    %847 = vmatpush1.bf16.msra.mxu0 %v773
    %848 = vmatprep.subr.bf16.mxu0 0
    %849 = vmatpush1.bf16.msra.mxu0 %v774
    %850 = vmatprep.subr.bf16.mxu0 0
    %851 = vmatpush1.bf16.msra.mxu0 %v775
    %852 = vmatprep.subr.bf16.mxu0 0
    %853 = vmatpush1.bf16.msra.mxu0 %v776
    %854 = vmatprep.subr.bf16.mxu0 0
    %855 = vmatpush1.bf16.msra.mxu0 %v777
    %856 = vmatprep.subr.bf16.mxu0 0
    %857 = vmatpush1.bf16.msra.mxu0 %v778
    %858 = vmatprep.subr.bf16.mxu0 0
    %859 = vmatpush1.bf16.msra.mxu0 %v779
    %860 = vmatprep.mubr.bf16.mxu0 %v562
    %861 = vmatmul.mubr.bf16.gmra.mrb[0].mxu0 %v561
    %v862 = vpop.f32.mrb[0].mxu0
    %v863 = vadd.f32 %v634, %v862
    %v864 = vpop.f32.mrb[0].mxu0
    %v865 = vpop.f32.mrb[0].mxu0
    %v866 = vpop.f32.mrb[0].mxu0
    %867 = vdwg.mxu0
    %868 = vmatprep.subr.bf16.mxu0 0
    %869 = vmatpush1.bf16.msra.mxu0 %v780
    %870 = vmatprep.subr.bf16.mxu0 0
    %871 = vmatpush1.bf16.msra.mxu0 %v781
    %872 = vmatprep.subr.bf16.mxu0 0
    %873 = vmatpush1.bf16.msra.mxu0 %v782
    %874 = vmatprep.subr.bf16.mxu0 0
    %875 = vmatpush1.bf16.msra.mxu0 %v783
    %876 = vmatprep.subr.bf16.mxu0 0
    %877 = vmatpush1.bf16.msra.mxu0 %v784
    %878 = vmatprep.subr.bf16.mxu0 0
    %879 = vmatpush1.bf16.msra.mxu0 %v785
    %880 = vmatprep.subr.bf16.mxu0 0
    %881 = vmatpush1.bf16.msra.mxu0 %v786
    %882 = vmatprep.subr.bf16.mxu0 0
    %883 = vmatpush1.bf16.msra.mxu0 %v787
    %884 = vmatprep.subr.bf16.mxu0 0
    %885 = vmatpush1.bf16.msra.mxu0 %v788
    %886 = vmatprep.subr.bf16.mxu0 0
    %887 = vmatpush1.bf16.msra.mxu0 %v789
    %888 = vmatprep.subr.bf16.mxu0 0
    %889 = vmatpush1.bf16.msra.mxu0 %v790
    %890 = vmatprep.subr.bf16.mxu0 0
    %891 = vmatpush1.bf16.msra.mxu0 %v791
    %892 = vmatprep.subr.bf16.mxu0 0
    %893 = vmatpush1.bf16.msra.mxu0 %v792
    %894 = vmatprep.subr.bf16.mxu0 0
    %895 = vmatpush1.bf16.msra.mxu0 %v793
    %896 = vmatprep.subr.bf16.mxu0 0
    %897 = vmatpush1.bf16.msra.mxu0 %v794
    %898 = vmatprep.subr.bf16.mxu0 0
    %899 = vmatpush1.bf16.msra.mxu0 %v795
    %900 = vmatprep.mubr.bf16.mxu0 %v564
    %901 = vmatmul.mubr.bf16.gmra.mrb[0].mxu0 %v563
    %v902 = vpop.f32.mrb[0].mxu0
    %v903 = vadd.f32 %v863, %v902
    %v904 = vpop.f32.mrb[0].mxu0
    %v905 = vpop.f32.mrb[0].mxu0
    %v906 = vpop.f32.mrb[0].mxu0
    %907 = vdwg.mxu0
    %v908 = vmul.f32 %v903, %v903
    %v909 = vsel %vm91, %v908, 0.0
    %910 = vadd.xlane.f32.xlu0 %v909
    %v911 = vpop.xlane.xlu0 %910
    %v912 = vmax.f32 %v911, 1e-24
    %v913 = vrsqrt.pop %v912
    %v914 = vmul.f32 %v903, %v913
    %915 = vst [vmem:[#allocation3] sm:$0x3] %v914
    // Predicated region
    $region79: #{simclr_vit_forward.5} parent=1 // pred_check
      _
    $region80: #{simclr_vit_forward.5} parent=1 // pred_check_branch
      %917 = sbr.rel (0) target = $region82
    $region81: #{simclr_vit_forward.5} parent=1 // pred_region
      %s919 = ssub.s32 32, 32
      %920 = vsyncadd [#allocation4], %s919
      %s922 = sshll.u32 [#allocation3], 4
      %s923 = int_to_ptr.vmem [resolvable:$true] %s922
      %925 = dma.vmem_to_hbm [thread:$0]  %s923, 32, %s9, [#allocation4]
    $region82: #{simclr_vit_forward.5} parent=1 // pred_fallthru
      _
    // Predicated region
    $region83: #{simclr_vit_forward.5} parent=1 // pred_check
      _
    $region84: #{simclr_vit_forward.5} parent=1 // pred_check_branch
      %927 = sbr.rel (0) target = $region86
    $region85: #{simclr_vit_forward.5} parent=1 // pred_region
      %928 = dma.done [#allocation4], 32
    $region86: #{simclr_vit_forward.5} parent=1 // pred_fallthru
      _
    %929 = vsyncpa [#allocation4], 1

// kernel: simclr_vit_forward.4
$region0: #{simclr_vit_forward.4}
  #allocation0 [shape = 'u32[]', space=smem, size = 0x4, offset = 0x4, fixed_abs, tag = 'smem constant byte address 0x4 - core index']
  #allocation1 [shape = 'u32[144,128]{1,0:T(1,128)}', space=vmem, size = 0x12000, scoped, tag = 'internal scratch']
  #allocation2 [shape = 'f32[32,128]{1,0:T(8,128)}', space=vmem, size = 0x4000, scoped, tag = 'scratch operand']
  %s0 = inlined_call_operand.vmem [shape: bf16[2,16,128], index: 0, kind: input, shape index: {}]
  %s1 = inlined_call_operand.vmem [shape: f32[2,1,128], index: 1, kind: input, shape index: {}]
  %s2 = inlined_call_operand.vmem [shape: f32[2,1,128], index: 2, kind: input, shape index: {}]
  %s3 = inlined_call_operand.vmem [shape: bf16[2,128,384], index: 3, kind: input, shape index: {}]
  %s4 = inlined_call_operand.vmem [shape: f32[2,1,384], index: 4, kind: input, shape index: {}]
  %s5 = inlined_call_operand.vmem [shape: bf16[2,128,128], index: 5, kind: input, shape index: {}]
  %s6 = inlined_call_operand.vmem [shape: f32[2,1,128], index: 6, kind: input, shape index: {}]
  %s7 = inlined_call_operand.vmem [shape: f32[2,1,128], index: 7, kind: input, shape index: {}]
  %s8 = inlined_call_operand.vmem [shape: f32[2,1,128], index: 8, kind: input, shape index: {}]
  %s9 = inlined_call_operand.vmem [shape: bf16[2,128,256], index: 9, kind: input, shape index: {}]
  %s10 = inlined_call_operand.vmem [shape: f32[2,1,256], index: 10, kind: input, shape index: {}]
  %s11 = inlined_call_operand.vmem [shape: bf16[2,256,128], index: 11, kind: input, shape index: {}]
  %s12 = inlined_call_operand.vmem [shape: f32[2,1,128], index: 12, kind: input, shape index: {}]
  %s13 = inlined_call_operand.vmem [shape: bf16[2,16,128], index: 13, kind: output, shape index: {}]
  %s14 = sld [smem:[#allocation0]]
  $region93: #{simclr_vit_forward.4} parent=0
    _
  %s16 = ssub.s32 1, %s14
  %s17 = scalar_select 0, %s16, %s14
  loop: start=0, step=1, limit=4
  $region2: #{simclr_vit_forward.4} parent=0 // loop_pre_header
    _
  $region3: #{simclr_vit_forward.4} parent=0 // loop_header
    %s19 = sphi 0, %s23
    %p20 = scmp.ge.s32.totalorder %s19, 4
    %s27 = sphi 0, %s27
    %s29 = sphi 0, %s27
    %s30 = sphi 0, %s29
    %s44 = sphi 0, %s30
    %s50 = sphi 0, %s52
    %s53 = sphi 0, %s50
    %s54 = sphi 0, %s53
    %s70 = sphi 0, %s54
    %s76 = sphi 0, %s78
    %s79 = sphi 0, %s76
    %s80 = sphi 0, %s79
    %s96 = sphi 0, %s80
    %s102 = sphi 0, %s104
    %s105 = sphi 0, %s102
    %s106 = sphi 0, %s105
    %s122 = sphi 0, %s106
    %s128 = sphi 0, %s130
    %s131 = sphi 0, %s128
    %s132 = sphi 0, %s131
    %s148 = sphi 0, %s132
    %s154 = sphi 0, %s156
    %s157 = sphi 0, %s154
    %s158 = sphi 0, %s157
    %s174 = sphi 0, %s158
    %s180 = sphi 0, %s182
    %s183 = sphi 0, %s180
    %s184 = sphi 0, %s183
    %s200 = sphi 0, %s184
    %s206 = sphi 0, %s208
    %s209 = sphi 0, %s206
    %s210 = sphi 0, %s209
    %s226 = sphi 0, %s210
    %s232 = sphi 0, %s234
    %s235 = sphi 0, %s232
    %s236 = sphi 0, %s235
    %s252 = sphi 0, %s236
    %s258 = sphi 0, %s260
    %s261 = sphi 0, %s258
    %s262 = sphi 0, %s261
    %s278 = sphi 0, %s262
    %s284 = sphi 0, %s286
    %s287 = sphi 0, %s284
    %s288 = sphi 0, %s287
    %s304 = sphi 0, %s288
    %s310 = sphi 0, %s312
    %s313 = sphi 0, %s310
    %s314 = sphi 0, %s313
    %s330 = sphi 0, %s314
    %s336 = sphi 0, %s338
    %s339 = sphi 0, %s336
    %s340 = sphi 0, %s339
    %s356 = sphi 0, %s340
    %s360 = sphi 0, %s360
    %s362 = sphi 0, %s360
    %s363 = sphi 0, %s362
    %s377 = sphi 0, %s363
  $region4: #{simclr_vit_forward.4} parent=0 // loop_header_branch
    %22 = sbr.rel (%p20) target = $region8
  $region5: #{simclr_vit_forward.4} parent=0 // loop_body
    %s24 = ssub.s32 %s19, 1
    %s25 = ssub.s32 %s19, 2
    %s26 = sadd.s32 %s19, 1
    %s28 = sadd.s32 %s27, 1
    %p31 = scmp.eq.s32.totalorder %s19, 1
    %p32 = scmp.ne.s32.totalorder %s27, %s29
    %p33 = scmp.eq.s32.totalorder %s19, 0
    %p34 = por %p32, %p33
    %p35 = scmp.ne.s32.totalorder %s27, %s29
    %p36 = scmp.eq.s32.totalorder %s24, 1
    %p37 = por %p35, %p36
    %p38 = scmp.ne.s32.totalorder %s29, %s30
    %p39 = scmp.eq.s32.totalorder %s24, 0
    %p40 = por %p38, %p39
    %p41 = scmp.ne.s32.totalorder %s29, %s30
    %p42 = scmp.eq.s32.totalorder %s25, 1
    %p43 = por %p41, %p42
    %p45 = scmp.ne.s32.totalorder %s30, %s44
    %p46 = scmp.eq.s32.totalorder %s25, 0
    %p47 = por %p45, %p46
    %s48 = ssub.s32 %s19, %s26
    %p49 = scmp.eq.s32.totalorder %s48, 0
    %s51 = sadd.s32 %s50, 1
    %s52 = scalar_select %p49, %s50, %s51
    %p55 = pneg %p49
    %p56 = scmp.eq.s32.totalorder %s19, 1
    %p57 = por %p55, %p56
    %p58 = scmp.ne.s32.totalorder %s50, %s53
    %p59 = scmp.eq.s32.totalorder %s19, 0
    %p60 = por %p58, %p59
    %p61 = scmp.ne.s32.totalorder %s50, %s53
    %p62 = scmp.eq.s32.totalorder %s24, 1
    %p63 = por %p61, %p62
    %p64 = scmp.ne.s32.totalorder %s53, %s54
    %p65 = scmp.eq.s32.totalorder %s24, 0
    %p66 = por %p64, %p65
    %p67 = scmp.ne.s32.totalorder %s53, %s54
    %p68 = scmp.eq.s32.totalorder %s25, 1
    %p69 = por %p67, %p68
    %p71 = scmp.ne.s32.totalorder %s54, %s70
    %p72 = scmp.eq.s32.totalorder %s25, 0
    %p73 = por %p71, %p72
    %s74 = ssub.s32 %s19, %s26
    %p75 = scmp.eq.s32.totalorder %s74, 0
    %s77 = sadd.s32 %s76, 1
    %s78 = scalar_select %p75, %s76, %s77
    %p81 = pneg %p75
    %p82 = scmp.eq.s32.totalorder %s19, 1
    %p83 = por %p81, %p82
    %p84 = scmp.ne.s32.totalorder %s76, %s79
    %p85 = scmp.eq.s32.totalorder %s19, 0
    %p86 = por %p84, %p85
    %p87 = scmp.ne.s32.totalorder %s76, %s79
    %p88 = scmp.eq.s32.totalorder %s24, 1
    %p89 = por %p87, %p88
    %p90 = scmp.ne.s32.totalorder %s79, %s80
    %p91 = scmp.eq.s32.totalorder %s24, 0
    %p92 = por %p90, %p91
    %p93 = scmp.ne.s32.totalorder %s79, %s80
    %p94 = scmp.eq.s32.totalorder %s25, 1
    %p95 = por %p93, %p94
    %p97 = scmp.ne.s32.totalorder %s80, %s96
    %p98 = scmp.eq.s32.totalorder %s25, 0
    %p99 = por %p97, %p98
    %s100 = ssub.s32 %s19, %s26
    %p101 = scmp.eq.s32.totalorder %s100, 0
    %s103 = sadd.s32 %s102, 1
    %s104 = scalar_select %p101, %s102, %s103
    %p107 = pneg %p101
    %p108 = scmp.eq.s32.totalorder %s19, 1
    %p109 = por %p107, %p108
    %p110 = scmp.ne.s32.totalorder %s102, %s105
    %p111 = scmp.eq.s32.totalorder %s19, 0
    %p112 = por %p110, %p111
    %p113 = scmp.ne.s32.totalorder %s102, %s105
    %p114 = scmp.eq.s32.totalorder %s24, 1
    %p115 = por %p113, %p114
    %p116 = scmp.ne.s32.totalorder %s105, %s106
    %p117 = scmp.eq.s32.totalorder %s24, 0
    %p118 = por %p116, %p117
    %p119 = scmp.ne.s32.totalorder %s105, %s106
    %p120 = scmp.eq.s32.totalorder %s25, 1
    %p121 = por %p119, %p120
    %p123 = scmp.ne.s32.totalorder %s106, %s122
    %p124 = scmp.eq.s32.totalorder %s25, 0
    %p125 = por %p123, %p124
    %s126 = ssub.s32 %s19, %s26
    %p127 = scmp.eq.s32.totalorder %s126, 0
    %s129 = sadd.s32 %s128, 1
    %s130 = scalar_select %p127, %s128, %s129
    %p133 = pneg %p127
    %p134 = scmp.eq.s32.totalorder %s19, 1
    %p135 = por %p133, %p134
    %p136 = scmp.ne.s32.totalorder %s128, %s131
    %p137 = scmp.eq.s32.totalorder %s19, 0
    %p138 = por %p136, %p137
    %p139 = scmp.ne.s32.totalorder %s128, %s131
    %p140 = scmp.eq.s32.totalorder %s24, 1
    %p141 = por %p139, %p140
    %p142 = scmp.ne.s32.totalorder %s131, %s132
    %p143 = scmp.eq.s32.totalorder %s24, 0
    %p144 = por %p142, %p143
    %p145 = scmp.ne.s32.totalorder %s131, %s132
    %p146 = scmp.eq.s32.totalorder %s25, 1
    %p147 = por %p145, %p146
    %p149 = scmp.ne.s32.totalorder %s132, %s148
    %p150 = scmp.eq.s32.totalorder %s25, 0
    %p151 = por %p149, %p150
    %s152 = ssub.s32 %s19, %s26
    %p153 = scmp.eq.s32.totalorder %s152, 0
    %s155 = sadd.s32 %s154, 1
    %s156 = scalar_select %p153, %s154, %s155
    %p159 = pneg %p153
    %p160 = scmp.eq.s32.totalorder %s19, 1
    %p161 = por %p159, %p160
    %p162 = scmp.ne.s32.totalorder %s154, %s157
    %p163 = scmp.eq.s32.totalorder %s19, 0
    %p164 = por %p162, %p163
    %p165 = scmp.ne.s32.totalorder %s154, %s157
    %p166 = scmp.eq.s32.totalorder %s24, 1
    %p167 = por %p165, %p166
    %p168 = scmp.ne.s32.totalorder %s157, %s158
    %p169 = scmp.eq.s32.totalorder %s24, 0
    %p170 = por %p168, %p169
    %p171 = scmp.ne.s32.totalorder %s157, %s158
    %p172 = scmp.eq.s32.totalorder %s25, 1
    %p173 = por %p171, %p172
    %p175 = scmp.ne.s32.totalorder %s158, %s174
    %p176 = scmp.eq.s32.totalorder %s25, 0
    %p177 = por %p175, %p176
    %s178 = ssub.s32 %s19, %s26
    %p179 = scmp.eq.s32.totalorder %s178, 0
    %s181 = sadd.s32 %s180, 1
    %s182 = scalar_select %p179, %s180, %s181
    %p185 = pneg %p179
    %p186 = scmp.eq.s32.totalorder %s19, 1
    %p187 = por %p185, %p186
    %p188 = scmp.ne.s32.totalorder %s180, %s183
    %p189 = scmp.eq.s32.totalorder %s19, 0
    %p190 = por %p188, %p189
    %p191 = scmp.ne.s32.totalorder %s180, %s183
    %p192 = scmp.eq.s32.totalorder %s24, 1
    %p193 = por %p191, %p192
    %p194 = scmp.ne.s32.totalorder %s183, %s184
    %p195 = scmp.eq.s32.totalorder %s24, 0
    %p196 = por %p194, %p195
    %p197 = scmp.ne.s32.totalorder %s183, %s184
    %p198 = scmp.eq.s32.totalorder %s25, 1
    %p199 = por %p197, %p198
    %p201 = scmp.ne.s32.totalorder %s184, %s200
    %p202 = scmp.eq.s32.totalorder %s25, 0
    %p203 = por %p201, %p202
    %s204 = ssub.s32 %s19, %s26
    %p205 = scmp.eq.s32.totalorder %s204, 0
    %s207 = sadd.s32 %s206, 1
    %s208 = scalar_select %p205, %s206, %s207
    %p211 = pneg %p205
    %p212 = scmp.eq.s32.totalorder %s19, 1
    %p213 = por %p211, %p212
    %p214 = scmp.ne.s32.totalorder %s206, %s209
    %p215 = scmp.eq.s32.totalorder %s19, 0
    %p216 = por %p214, %p215
    %p217 = scmp.ne.s32.totalorder %s206, %s209
    %p218 = scmp.eq.s32.totalorder %s24, 1
    %p219 = por %p217, %p218
    %p220 = scmp.ne.s32.totalorder %s209, %s210
    %p221 = scmp.eq.s32.totalorder %s24, 0
    %p222 = por %p220, %p221
    %p223 = scmp.ne.s32.totalorder %s209, %s210
    %p224 = scmp.eq.s32.totalorder %s25, 1
    %p225 = por %p223, %p224
    %p227 = scmp.ne.s32.totalorder %s210, %s226
    %p228 = scmp.eq.s32.totalorder %s25, 0
    %p229 = por %p227, %p228
    %s230 = ssub.s32 %s19, %s26
    %p231 = scmp.eq.s32.totalorder %s230, 0
    %s233 = sadd.s32 %s232, 1
    %s234 = scalar_select %p231, %s232, %s233
    %p237 = pneg %p231
    %p238 = scmp.eq.s32.totalorder %s19, 1
    %p239 = por %p237, %p238
    %p240 = scmp.ne.s32.totalorder %s232, %s235
    %p241 = scmp.eq.s32.totalorder %s19, 0
    %p242 = por %p240, %p241
    %p243 = scmp.ne.s32.totalorder %s232, %s235
    %p244 = scmp.eq.s32.totalorder %s24, 1
    %p245 = por %p243, %p244
    %p246 = scmp.ne.s32.totalorder %s235, %s236
    %p247 = scmp.eq.s32.totalorder %s24, 0
    %p248 = por %p246, %p247
    %p249 = scmp.ne.s32.totalorder %s235, %s236
    %p250 = scmp.eq.s32.totalorder %s25, 1
    %p251 = por %p249, %p250
    %p253 = scmp.ne.s32.totalorder %s236, %s252
    %p254 = scmp.eq.s32.totalorder %s25, 0
    %p255 = por %p253, %p254
    %s256 = ssub.s32 %s19, %s26
    %p257 = scmp.eq.s32.totalorder %s256, 0
    %s259 = sadd.s32 %s258, 1
    %s260 = scalar_select %p257, %s258, %s259
    %p263 = pneg %p257
    %p264 = scmp.eq.s32.totalorder %s19, 1
    %p265 = por %p263, %p264
    %p266 = scmp.ne.s32.totalorder %s258, %s261
    %p267 = scmp.eq.s32.totalorder %s19, 0
    %p268 = por %p266, %p267
    %p269 = scmp.ne.s32.totalorder %s258, %s261
    %p270 = scmp.eq.s32.totalorder %s24, 1
    %p271 = por %p269, %p270
    %p272 = scmp.ne.s32.totalorder %s261, %s262
    %p273 = scmp.eq.s32.totalorder %s24, 0
    %p274 = por %p272, %p273
    %p275 = scmp.ne.s32.totalorder %s261, %s262
    %p276 = scmp.eq.s32.totalorder %s25, 1
    %p277 = por %p275, %p276
    %p279 = scmp.ne.s32.totalorder %s262, %s278
    %p280 = scmp.eq.s32.totalorder %s25, 0
    %p281 = por %p279, %p280
    %s282 = ssub.s32 %s19, %s26
    %p283 = scmp.eq.s32.totalorder %s282, 0
    %s285 = sadd.s32 %s284, 1
    %s286 = scalar_select %p283, %s284, %s285
    %p289 = pneg %p283
    %p290 = scmp.eq.s32.totalorder %s19, 1
    %p291 = por %p289, %p290
    %p292 = scmp.ne.s32.totalorder %s284, %s287
    %p293 = scmp.eq.s32.totalorder %s19, 0
    %p294 = por %p292, %p293
    %p295 = scmp.ne.s32.totalorder %s284, %s287
    %p296 = scmp.eq.s32.totalorder %s24, 1
    %p297 = por %p295, %p296
    %p298 = scmp.ne.s32.totalorder %s287, %s288
    %p299 = scmp.eq.s32.totalorder %s24, 0
    %p300 = por %p298, %p299
    %p301 = scmp.ne.s32.totalorder %s287, %s288
    %p302 = scmp.eq.s32.totalorder %s25, 1
    %p303 = por %p301, %p302
    %p305 = scmp.ne.s32.totalorder %s288, %s304
    %p306 = scmp.eq.s32.totalorder %s25, 0
    %p307 = por %p305, %p306
    %s308 = ssub.s32 %s19, %s26
    %p309 = scmp.eq.s32.totalorder %s308, 0
    %s311 = sadd.s32 %s310, 1
    %s312 = scalar_select %p309, %s310, %s311
    %p315 = pneg %p309
    %p316 = scmp.eq.s32.totalorder %s19, 1
    %p317 = por %p315, %p316
    %p318 = scmp.ne.s32.totalorder %s310, %s313
    %p319 = scmp.eq.s32.totalorder %s19, 0
    %p320 = por %p318, %p319
    %p321 = scmp.ne.s32.totalorder %s310, %s313
    %p322 = scmp.eq.s32.totalorder %s24, 1
    %p323 = por %p321, %p322
    %p324 = scmp.ne.s32.totalorder %s313, %s314
    %p325 = scmp.eq.s32.totalorder %s24, 0
    %p326 = por %p324, %p325
    %p327 = scmp.ne.s32.totalorder %s313, %s314
    %p328 = scmp.eq.s32.totalorder %s25, 1
    %p329 = por %p327, %p328
    %p331 = scmp.ne.s32.totalorder %s314, %s330
    %p332 = scmp.eq.s32.totalorder %s25, 0
    %p333 = por %p331, %p332
    %s334 = ssub.s32 %s19, %s26
    %p335 = scmp.eq.s32.totalorder %s334, 0
    %s337 = sadd.s32 %s336, 1
    %s338 = scalar_select %p335, %s336, %s337
    %p341 = pneg %p335
    %p342 = scmp.eq.s32.totalorder %s19, 1
    %p343 = por %p341, %p342
    %p344 = scmp.ne.s32.totalorder %s336, %s339
    %p345 = scmp.eq.s32.totalorder %s19, 0
    %p346 = por %p344, %p345
    %p347 = scmp.ne.s32.totalorder %s336, %s339
    %p348 = scmp.eq.s32.totalorder %s24, 1
    %p349 = por %p347, %p348
    %p350 = scmp.ne.s32.totalorder %s339, %s340
    %p351 = scmp.eq.s32.totalorder %s24, 0
    %p352 = por %p350, %p351
    %p353 = scmp.ne.s32.totalorder %s339, %s340
    %p354 = scmp.eq.s32.totalorder %s25, 1
    %p355 = por %p353, %p354
    %p357 = scmp.ne.s32.totalorder %s340, %s356
    %p358 = scmp.eq.s32.totalorder %s25, 0
    %p359 = por %p357, %p358
    %s361 = sadd.s32 %s360, 1
    %p364 = scmp.eq.s32.totalorder %s19, 1
    %p365 = scmp.ne.s32.totalorder %s360, %s362
    %p366 = scmp.eq.s32.totalorder %s19, 0
    %p367 = por %p365, %p366
    %p368 = scmp.ne.s32.totalorder %s360, %s362
    %p369 = scmp.eq.s32.totalorder %s24, 1
    %p370 = por %p368, %p369
    %p371 = scmp.ne.s32.totalorder %s362, %s363
    %p372 = scmp.eq.s32.totalorder %s24, 0
    %p373 = por %p371, %p372
    %p374 = scmp.ne.s32.totalorder %s362, %s363
    %p375 = scmp.eq.s32.totalorder %s25, 1
    %p376 = por %p374, %p375
    %p378 = scmp.ne.s32.totalorder %s363, %s377
    %p379 = scmp.eq.s32.totalorder %s25, 0
    %p380 = por %p378, %p379
    %p381 = scmp.le.s32.totalorder 1, %s19
    %p382 = scmp.lt.s32.totalorder %s19, 3
    %p383 = pnand %p381, %p382
    %p384 = pneg %p383
    // Predicated region
    $region9: #{simclr_vit_forward.4} parent=5 // pred_check
      _
    $region10: #{simclr_vit_forward.4} parent=5 // pred_check_branch
      %386 = sbr.rel (%p383) target = $region12
    $region11: #{simclr_vit_forward.4} parent=5 // pred_region
      %s387 = ssub.s32 %s19, 1
      // Predicated region
      $region13: #{simclr_vit_forward.4} parent=11 // pred_check
        %p388 = pneg %p40
      $region14: #{simclr_vit_forward.4} parent=11 // pred_check_branch
        %390 = sbr.rel (%p388) target = $region16
      $region15: #{simclr_vit_forward.4} parent=11 // pred_region
        _
      $region16: #{simclr_vit_forward.4} parent=11 // pred_fallthru
        _
    $region12: #{simclr_vit_forward.4} parent=5 // pred_fallthru
      _
    %p391 = scmp.lt.s32.totalorder %s19, 2
    // Predicated region
    $region17: #{simclr_vit_forward.4} parent=5 // pred_check
      %p392 = pneg %p391
    $region18: #{simclr_vit_forward.4} parent=5 // pred_check_branch
      %394 = sbr.rel (%p392) target = $region20
    $region19: #{simclr_vit_forward.4} parent=5 // pred_region
      // Predicated region
      $region21: #{simclr_vit_forward.4} parent=19 // pred_check
        %p395 = pneg %p60
      $region22: #{simclr_vit_forward.4} parent=19 // pred_check_branch
        %397 = sbr.rel (%p395) target = $region24
      $region23: #{simclr_vit_forward.4} parent=19 // pred_region
        %p398 = scmp.lt.s32.totalorder %s19, 1
        %s399 = scalar_select %p398, %s19, 1
        %s400 = scalar_lea.vmem %s1, %s399
      $region24: #{simclr_vit_forward.4} parent=19 // pred_fallthru
        _
      // Predicated region
      $region25: #{simclr_vit_forward.4} parent=19 // pred_check
        %p401 = pneg %p86
      $region26: #{simclr_vit_forward.4} parent=19 // pred_check_branch
        %403 = sbr.rel (%p401) target = $region28
      $region27: #{simclr_vit_forward.4} parent=19 // pred_region
        %p404 = scmp.lt.s32.totalorder %s19, 1
        %s405 = scalar_select %p404, %s19, 1
        %s406 = scalar_lea.vmem %s2, %s405
      $region28: #{simclr_vit_forward.4} parent=19 // pred_fallthru
        _
      // Predicated region
      $region29: #{simclr_vit_forward.4} parent=19 // pred_check
        %p407 = pneg %p112
      $region30: #{simclr_vit_forward.4} parent=19 // pred_check_branch
        %409 = sbr.rel (%p407) target = $region32
      $region31: #{simclr_vit_forward.4} parent=19 // pred_region
        %p410 = scmp.lt.s32.totalorder %s19, 1
        %s411 = scalar_select %p410, %s19, 1
        %s412 = smul.addr %s411, 48
        %s413 = smul.addr %s412, 4
        %s414 = scalar_lea.vmem %s3, %s413
      $region32: #{simclr_vit_forward.4} parent=19 // pred_fallthru
        _
      // Predicated region
      $region33: #{simclr_vit_forward.4} parent=19 // pred_check
        %p415 = pneg %p138
      $region34: #{simclr_vit_forward.4} parent=19 // pred_check_branch
        %417 = sbr.rel (%p415) target = $region36
      $region35: #{simclr_vit_forward.4} parent=19 // pred_region
        %p418 = scmp.lt.s32.totalorder %s19, 1
        %s419 = scalar_select %p418, %s19, 1
        %s420 = smul.addr %s419, 3
        %s421 = scalar_lea.vmem %s4, %s420
      $region36: #{simclr_vit_forward.4} parent=19 // pred_fallthru
        _
      // Predicated region
      $region37: #{simclr_vit_forward.4} parent=19 // pred_check
        %p422 = pneg %p164
      $region38: #{simclr_vit_forward.4} parent=19 // pred_check_branch
        %424 = sbr.rel (%p422) target = $region40
      $region39: #{simclr_vit_forward.4} parent=19 // pred_region
        %p425 = scmp.lt.s32.totalorder %s19, 1
        %s426 = scalar_select %p425, %s19, 1
        %s427 = smul.addr %s426, 16
        %s428 = smul.addr %s427, 4
        %s429 = scalar_lea.vmem %s5, %s428
      $region40: #{simclr_vit_forward.4} parent=19 // pred_fallthru
        _
      // Predicated region
      $region41: #{simclr_vit_forward.4} parent=19 // pred_check
        %p430 = pneg %p190
      $region42: #{simclr_vit_forward.4} parent=19 // pred_check_branch
        %432 = sbr.rel (%p430) target = $region44
      $region43: #{simclr_vit_forward.4} parent=19 // pred_region
        %p433 = scmp.lt.s32.totalorder %s19, 1
        %s434 = scalar_select %p433, %s19, 1
        %s435 = scalar_lea.vmem %s6, %s434
      $region44: #{simclr_vit_forward.4} parent=19 // pred_fallthru
        _
      // Predicated region
      $region45: #{simclr_vit_forward.4} parent=19 // pred_check
        %p436 = pneg %p216
      $region46: #{simclr_vit_forward.4} parent=19 // pred_check_branch
        %438 = sbr.rel (%p436) target = $region48
      $region47: #{simclr_vit_forward.4} parent=19 // pred_region
        %p439 = scmp.lt.s32.totalorder %s19, 1
        %s440 = scalar_select %p439, %s19, 1
        %s441 = scalar_lea.vmem %s7, %s440
      $region48: #{simclr_vit_forward.4} parent=19 // pred_fallthru
        _
      // Predicated region
      $region49: #{simclr_vit_forward.4} parent=19 // pred_check
        %p442 = pneg %p242
      $region50: #{simclr_vit_forward.4} parent=19 // pred_check_branch
        %444 = sbr.rel (%p442) target = $region52
      $region51: #{simclr_vit_forward.4} parent=19 // pred_region
        %p445 = scmp.lt.s32.totalorder %s19, 1
        %s446 = scalar_select %p445, %s19, 1
        %s447 = scalar_lea.vmem %s8, %s446
      $region52: #{simclr_vit_forward.4} parent=19 // pred_fallthru
        _
      // Predicated region
      $region53: #{simclr_vit_forward.4} parent=19 // pred_check
        %p448 = pneg %p268
      $region54: #{simclr_vit_forward.4} parent=19 // pred_check_branch
        %450 = sbr.rel (%p448) target = $region56
      $region55: #{simclr_vit_forward.4} parent=19 // pred_region
        %p451 = scmp.lt.s32.totalorder %s19, 1
        %s452 = scalar_select %p451, %s19, 1
        %s453 = smul.addr %s452, 32
        %s454 = smul.addr %s453, 4
        %s455 = scalar_lea.vmem %s9, %s454
      $region56: #{simclr_vit_forward.4} parent=19 // pred_fallthru
        _
      // Predicated region
      $region57: #{simclr_vit_forward.4} parent=19 // pred_check
        %p456 = pneg %p294
      $region58: #{simclr_vit_forward.4} parent=19 // pred_check_branch
        %458 = sbr.rel (%p456) target = $region60
      $region59: #{simclr_vit_forward.4} parent=19 // pred_region
        %p459 = scmp.lt.s32.totalorder %s19, 1
        %s460 = scalar_select %p459, %s19, 1
        %s461 = smul.addr %s460, 2
        %s462 = scalar_lea.vmem %s10, %s461
      $region60: #{simclr_vit_forward.4} parent=19 // pred_fallthru
        _
      // Predicated region
      $region61: #{simclr_vit_forward.4} parent=19 // pred_check
        %p463 = pneg %p320
      $region62: #{simclr_vit_forward.4} parent=19 // pred_check_branch
        %465 = sbr.rel (%p463) target = $region64
      $region63: #{simclr_vit_forward.4} parent=19 // pred_region
        %p466 = scmp.lt.s32.totalorder %s19, 1
        %s467 = scalar_select %p466, %s19, 1
        %s468 = smul.addr %s467, 32
        %s469 = smul.addr %s468, 4
        %s470 = scalar_lea.vmem %s11, %s469
      $region64: #{simclr_vit_forward.4} parent=19 // pred_fallthru
        _
      // Predicated region
      $region65: #{simclr_vit_forward.4} parent=19 // pred_check
        %p471 = pneg %p346
      $region66: #{simclr_vit_forward.4} parent=19 // pred_check_branch
        %473 = sbr.rel (%p471) target = $region68
      $region67: #{simclr_vit_forward.4} parent=19 // pred_region
        %p474 = scmp.lt.s32.totalorder %s19, 1
        %s475 = scalar_select %p474, %s19, 1
        %s476 = scalar_lea.vmem %s12, %s475
      $region68: #{simclr_vit_forward.4} parent=19 // pred_fallthru
        _
    $region20: #{simclr_vit_forward.4} parent=5 // pred_fallthru
      _
    %p477 = scmp.le.s32.totalorder 1, %s19
    %p478 = scmp.lt.s32.totalorder %s19, 3
    %p479 = pnand %p477, %p478
    %p480 = pneg %p479
    // Predicated region
    $region69: #{simclr_vit_forward.4} parent=5 // pred_check
      _
    $region70: #{simclr_vit_forward.4} parent=5 // pred_check_branch
      %482 = sbr.rel (%p479) target = $region72
    $region71: #{simclr_vit_forward.4} parent=5 // pred_region
      %s483 = ssub.s32 %s19, 1
      %p484 = pneg %p40
      %p485 = pneg %p37
      %p486 = scmp.lt.s32.totalorder %s24, 1
      %s487 = scalar_select %p486, %s24, 1
      %s488 = scalar_lea.vmem %s1, %s487
      %p489 = pneg %p66
      %p490 = pneg %p63
      %p491 = scmp.lt.s32.totalorder %s24, 1
      %s492 = scalar_select %p491, %s24, 1
      %s493 = scalar_lea.vmem %s2, %s492
      %p494 = pneg %p92
      %p495 = pneg %p89
      %p496 = scmp.lt.s32.totalorder %s24, 1
      %s497 = scalar_select %p496, %s24, 1
      %s498 = smul.addr %s497, 48
      %s499 = smul.addr %s498, 4
      %s500 = scalar_lea.vmem %s3, %s499
      %p501 = pneg %p118
      %p502 = pneg %p115
      %p503 = scmp.lt.s32.totalorder %s24, 1
      %s504 = scalar_select %p503, %s24, 1
      %s505 = smul.addr %s504, 3
      %s506 = scalar_lea.vmem %s4, %s505
      %p507 = pneg %p144
      %p508 = pneg %p141
      %p509 = scmp.lt.s32.totalorder %s24, 1
      %s510 = scalar_select %p509, %s24, 1
      %s511 = smul.addr %s510, 16
      %s512 = smul.addr %s511, 4
      %s513 = scalar_lea.vmem %s5, %s512
      %p514 = pneg %p170
      %p515 = pneg %p167
      %p516 = scmp.lt.s32.totalorder %s24, 1
      %s517 = scalar_select %p516, %s24, 1
      %s518 = scalar_lea.vmem %s6, %s517
      %p519 = pneg %p196
      %p520 = pneg %p193
      %p521 = scmp.lt.s32.totalorder %s24, 1
      %s522 = scalar_select %p521, %s24, 1
      %s523 = scalar_lea.vmem %s7, %s522
      %p524 = pneg %p222
      %p525 = pneg %p219
      %p526 = scmp.lt.s32.totalorder %s24, 1
      %s527 = scalar_select %p526, %s24, 1
      %s528 = scalar_lea.vmem %s8, %s527
      %p529 = pneg %p248
      %p530 = pneg %p245
      %p531 = scmp.lt.s32.totalorder %s24, 1
      %s532 = scalar_select %p531, %s24, 1
      %s533 = smul.addr %s532, 32
      %s534 = smul.addr %s533, 4
      %s535 = scalar_lea.vmem %s9, %s534
      %p536 = pneg %p274
      %p537 = pneg %p271
      %p538 = scmp.lt.s32.totalorder %s24, 1
      %s539 = scalar_select %p538, %s24, 1
      %s540 = smul.addr %s539, 2
      %s541 = scalar_lea.vmem %s10, %s540
      %p542 = pneg %p300
      %p543 = pneg %p297
      %p544 = scmp.lt.s32.totalorder %s24, 1
      %s545 = scalar_select %p544, %s24, 1
      %s546 = smul.addr %s545, 32
      %s547 = smul.addr %s546, 4
      %s548 = scalar_lea.vmem %s11, %s547
      %p549 = pneg %p326
      %p550 = pneg %p323
      %p551 = scmp.lt.s32.totalorder %s24, 1
      %s552 = scalar_select %p551, %s24, 1
      %s553 = scalar_lea.vmem %s12, %s552
      %p554 = pneg %p352
      %p555 = pneg %p349
      %p556 = pneg %p373
      %p557 = pneg %p370
      %p558 = scmp.lt.s32.totalorder %s24, 1
      %s559 = scalar_select %p558, %s24, 1
      %s560 = scalar_lea.vmem %s1, %s559
      %p561 = scmp.lt.s32.totalorder %s24, 1
      %s562 = scalar_select %p561, %s24, 1
      %s563 = scalar_lea.vmem %s2, %s562
      %p564 = scmp.lt.s32.totalorder %s24, 1
      %s565 = scalar_select %p564, %s24, 1
      %s566 = smul.addr %s565, 48
      %s567 = smul.addr %s566, 4
      %s568 = scalar_lea.vmem %s3, %s567
      %p569 = scmp.lt.s32.totalorder %s24, 1
      %s570 = scalar_select %p569, %s24, 1
      %s571 = smul.addr %s570, 3
      %s572 = scalar_lea.vmem %s4, %s571
      %p573 = scmp.lt.s32.totalorder %s24, 1
      %s574 = scalar_select %p573, %s24, 1
      %s575 = smul.addr %s574, 16
      %s576 = smul.addr %s575, 4
      %s577 = scalar_lea.vmem %s5, %s576
      %p578 = scmp.lt.s32.totalorder %s24, 1
      %s579 = scalar_select %p578, %s24, 1
      %s580 = scalar_lea.vmem %s6, %s579
      %p581 = scmp.lt.s32.totalorder %s24, 1
      %s582 = scalar_select %p581, %s24, 1
      %s583 = scalar_lea.vmem %s7, %s582
      %p584 = scmp.lt.s32.totalorder %s24, 1
      %s585 = scalar_select %p584, %s24, 1
      %s586 = scalar_lea.vmem %s8, %s585
      %p587 = scmp.lt.s32.totalorder %s24, 1
      %s588 = scalar_select %p587, %s24, 1
      %s589 = smul.addr %s588, 32
      %s590 = smul.addr %s589, 4
      %s591 = scalar_lea.vmem %s9, %s590
      %p592 = scmp.lt.s32.totalorder %s24, 1
      %s593 = scalar_select %p592, %s24, 1
      %s594 = smul.addr %s593, 2
      %s595 = scalar_lea.vmem %s10, %s594
      %p596 = scmp.lt.s32.totalorder %s24, 1
      %s597 = scalar_select %p596, %s24, 1
      %s598 = smul.addr %s597, 32
      %s599 = smul.addr %s598, 4
      %s600 = scalar_lea.vmem %s11, %s599
      %p601 = scmp.lt.s32.totalorder %s24, 1
      %s602 = scalar_select %p601, %s24, 1
      %s603 = scalar_lea.vmem %s12, %s602
      %p605 = scmp.eq.s32.totalorder %s24, 0
      // Predicated region
      $region73: #{simclr_vit_forward.4} parent=71 // pred_check
        %p606 = pneg %p605
      $region74: #{simclr_vit_forward.4} parent=71 // pred_check_branch
        %608 = sbr.rel (%p606) target = $region76
      $region75: #{simclr_vit_forward.4} parent=71 // pred_region
        %v609 = vld [vmem:[%s0] sm:$0xf]
        %v610 = vld [vmem:[%s0 + $0x4] sm:$0xf]
        %v611 = vld [vmem:[%s0 + $0x8] sm:$0xf]
        %v612 = vld [vmem:[%s0 + $0xc] sm:$0xf]
        %v613 = vunpack.c.l.bf16 %v609
        %v614 = vunpack.c.l.bf16 %v610
        %v615 = vunpack.c.l.bf16 %v611
        %v616 = vunpack.c.l.bf16 %v612
        %617 = vst [vmem:[#allocation2] sm:$0xff] %v613
        %618 = vst [vmem:[#allocation2 + $0x8] sm:$0xff] %v614
        %619 = vst [vmem:[#allocation2 + $0x10] sm:$0xff] %v615
        %620 = vst [vmem:[#allocation2 + $0x18] sm:$0xff] %v616
      $region76: #{simclr_vit_forward.4} parent=71 // pred_fallthru
        _
      %v621 = vld [vmem:[#allocation2] sm:$0xff]
      %v622 = vld [vmem:[#allocation2 + $0x8] sm:$0xff]
      %v623 = vld [vmem:[#allocation2 + $0x10] sm:$0xff]
      %v624 = vld [vmem:[#allocation2 + $0x18] sm:$0xff]
      %v625 = vld [vmem:[%s560] sm:$0x1]
      %v626 = vld [vmem:[%s563] sm:$0x1]
      %627 = vadd.xlane.f32.xlu0 %v621
      %v628 = vpop.xlane.xlu0 %627
      %629 = vadd.xlane.f32.xlu0 %v622
      %v630 = vpop.xlane.xlu0 %629
      %631 = vadd.xlane.f32.xlu0 %v623
      %v632 = vpop.xlane.xlu0 %631
      %633 = vadd.xlane.f32.xlu0 %v624
      %v634 = vpop.xlane.xlu0 %633
      %v635 = vrcp.pop 128.0
      %v636 = vmul.f32 %v628, %v635
      %v637 = vmul.f32 %v630, %v635
      %v638 = vmul.f32 %v632, %v635
      %v639 = vmul.f32 %v634, %v635
      %v640 = vsub.f32 %v621, %v636
      %v641 = vsub.f32 %v622, %v637
      %v642 = vsub.f32 %v623, %v638
      %v643 = vsub.f32 %v624, %v639
      %v644 = vmul.f32 %v640, %v640
      %v645 = vmul.f32 %v641, %v641
      %v646 = vmul.f32 %v642, %v642
      %v647 = vmul.f32 %v643, %v643
      %648 = vadd.xlane.f32.xlu0 %v644
      %v649 = vpop.xlane.xlu0 %648
      %650 = vadd.xlane.f32.xlu0 %v645
      %v651 = vpop.xlane.xlu0 %650
      %652 = vadd.xlane.f32.xlu0 %v646
      %v653 = vpop.xlane.xlu0 %652
      %654 = vadd.xlane.f32.xlu0 %v647
      %v655 = vpop.xlane.xlu0 %654
      %v656 = vmul.f32 %v649, %v635
      %v657 = vmul.f32 %v651, %v635
      %v658 = vmul.f32 %v653, %v635
      %v659 = vmul.f32 %v655, %v635
      %v660 = vadd.f32 %v656, 1e-12
      %v661 = vadd.f32 %v657, 1e-12
      %v662 = vadd.f32 %v658, 1e-12
      %v663 = vadd.f32 %v659, 1e-12
      %v664 = vrsqrt.pop %v660
      %v665 = vrsqrt.pop %v661
      %v666 = vrsqrt.pop %v662
      %v667 = vrsqrt.pop %v663
      %v668 = vmul.f32 %v640, %v664
      %v669 = vmul.f32 %v641, %v665
      %v670 = vmul.f32 %v642, %v666
      %v671 = vmul.f32 %v643, %v667
      %v673 = vlaneseq
      %v674 = vshrl.u32 %v673, 7
      %v675 = vsub.s32 0, %v674
      %v676 = vrot.slane %v625, %v675
      %v678 = vmul.f32 %v668, %v676
      %v679 = vmul.f32 %v669, %v676
      %v680 = vmul.f32 %v670, %v676
      %v681 = vmul.f32 %v671, %v676
      %v683 = vlaneseq
      %v684 = vshrl.u32 %v683, 7
      %v685 = vsub.s32 0, %v684
      %v686 = vrot.slane %v626, %v685
      %v688 = vadd.f32 %v678, %v686
      %v689 = vadd.f32 %v679, %v686
      %v690 = vadd.f32 %v680, %v686
      %v691 = vadd.f32 %v681, %v686
      %v692 = vpack.c.bf16 %v689, %v688
      %v693 = vpack.c.bf16 %v691, %v690
      %v694 = vld [vmem:[%s568] sm:$0xff]
      %v695 = vld [vmem:[%s568 + $0x8] sm:$0xf]
      %v696 = vld [vmem:[%s568 + $0xc] sm:$0xff]
      %v697 = vld [vmem:[%s568 + $0x14] sm:$0xf]
      %v698 = vld [vmem:[%s568 + $0x18] sm:$0xff]
      %v699 = vld [vmem:[%s568 + $0x20] sm:$0xf]
      %v700 = vld [vmem:[%s568 + $0x24] sm:$0xff]
      %v701 = vld [vmem:[%s568 + $0x2c] sm:$0xf]
      %v702 = vld [vmem:[%s568 + $0x30] sm:$0xff]
      %v703 = vld [vmem:[%s568 + $0x38] sm:$0xf]
      %v704 = vld [vmem:[%s568 + $0x3c] sm:$0xff]
      %v705 = vld [vmem:[%s568 + $0x44] sm:$0xf]
      %v706 = vld [vmem:[%s568 + $0x48] sm:$0xff]
      %v707 = vld [vmem:[%s568 + $0x50] sm:$0xf]
      %v708 = vld [vmem:[%s568 + $0x54] sm:$0xff]
      %v709 = vld [vmem:[%s568 + $0x5c] sm:$0xf]
      %v710 = vld [vmem:[%s568 + $0x60] sm:$0xff]
      %v711 = vld [vmem:[%s568 + $0x68] sm:$0xf]
      %v712 = vld [vmem:[%s568 + $0x6c] sm:$0xff]
      %v713 = vld [vmem:[%s568 + $0x74] sm:$0xf]
      %v714 = vld [vmem:[%s568 + $0x78] sm:$0xff]
      %v715 = vld [vmem:[%s568 + $0x80] sm:$0xf]
      %v716 = vld [vmem:[%s568 + $0x84] sm:$0xff]
      %v717 = vld [vmem:[%s568 + $0x8c] sm:$0xf]
      %v718 = vld [vmem:[%s568 + $0x90] sm:$0xff]
      %v719 = vld [vmem:[%s568 + $0x98] sm:$0xf]
      %v720 = vld [vmem:[%s568 + $0x9c] sm:$0xff]
      %v721 = vld [vmem:[%s568 + $0xa4] sm:$0xf]
      %v722 = vld [vmem:[%s568 + $0xa8] sm:$0xff]
      %v723 = vld [vmem:[%s568 + $0xb0] sm:$0xf]
      %v724 = vld [vmem:[%s568 + $0xb4] sm:$0xff]
      %v725 = vld [vmem:[%s568 + $0xbc] sm:$0xf]
      %v726 = vld [vmem:[%s572] sm:$0x7]
      %v728 = vlaneseq
      %v729 = vshrl.u32 %v728, 7
      %v730 = vsub.s32 0, %v729
      %v731 = vrot.slane %v726, %v730
      %v732 = vlaneseq
      %v733 = vshrl.u32 %v732, 7
      %v734 = vsub.s32 1, %v733
      %v735 = vrot.slane %v726, %v734
      %v736 = vlaneseq
      %v737 = vshrl.u32 %v736, 7
      %v738 = vsub.s32 2, %v737
      %v739 = vrot.slane %v726, %v738
      %v775 = vunpack.c.l.b16 %v694
      %v776 = vunpack.c.h.b16 %v694
      %v777 = vunpack.c.l.b16 %v695
      %v778 = vunpack.c.l.b16 %v696
      %v779 = vunpack.c.h.b16 %v696
      %v780 = vunpack.c.l.b16 %v697
      %v781 = vunpack.c.l.b16 %v698
      %v782 = vunpack.c.h.b16 %v698
      %v783 = vunpack.c.l.b16 %v699
      %v784 = vunpack.c.l.b16 %v700
      %v785 = vunpack.c.h.b16 %v700
      %v786 = vunpack.c.l.b16 %v701
      %v787 = vunpack.c.l.b16 %v702
      %v788 = vunpack.c.h.b16 %v702
      %v789 = vunpack.c.l.b16 %v703
      %v790 = vunpack.c.l.b16 %v704
      %v791 = vunpack.c.h.b16 %v704
      %v792 = vunpack.c.l.b16 %v705
      %v793 = vunpack.c.l.b16 %v706
      %v794 = vunpack.c.h.b16 %v706
      %v795 = vunpack.c.l.b16 %v707
      %v796 = vunpack.c.l.b16 %v708
      %v797 = vunpack.c.h.b16 %v708
      %v798 = vunpack.c.l.b16 %v709
      %v799 = vunpack.c.l.b16 %v710
      %v800 = vunpack.c.h.b16 %v710
      %v801 = vunpack.c.l.b16 %v711
      %v802 = vunpack.c.l.b16 %v712
      %v803 = vunpack.c.h.b16 %v712
      %v804 = vunpack.c.l.b16 %v713
      %v805 = vunpack.c.l.b16 %v714
      %v806 = vunpack.c.h.b16 %v714
      %v807 = vunpack.c.l.b16 %v715
      %v808 = vunpack.c.l.b16 %v716
      %v809 = vunpack.c.h.b16 %v716
      %v810 = vunpack.c.l.b16 %v717
      %v811 = vunpack.c.l.b16 %v718
      %v812 = vunpack.c.h.b16 %v718
      %v813 = vunpack.c.l.b16 %v719
      %v814 = vunpack.c.l.b16 %v720
      %v815 = vunpack.c.h.b16 %v720
      %v816 = vunpack.c.l.b16 %v721
      %v817 = vunpack.c.l.b16 %v722
      %v818 = vunpack.c.h.b16 %v722
      %v819 = vunpack.c.l.b16 %v723
      %v820 = vunpack.c.l.b16 %v724
      %v821 = vunpack.c.h.b16 %v724
      %v822 = vunpack.c.l.b16 %v725
      %v823 = vpack.c.b16 %v778, %v775
      %v824 = vpack.c.b16 %v779, %v776
      %v825 = vpack.c.b16 %v780, %v777
      %v826 = vpack.c.b16 %v784, %v781
      %v827 = vpack.c.b16 %v785, %v782
      %v828 = vpack.c.b16 %v786, %v783
      %v829 = vpack.c.b16 %v790, %v787
      %v830 = vpack.c.b16 %v791, %v788
      %v831 = vpack.c.b16 %v792, %v789
      %v832 = vpack.c.b16 %v796, %v793
      %v833 = vpack.c.b16 %v797, %v794
      %v834 = vpack.c.b16 %v798, %v795
      %v835 = vpack.c.b16 %v802, %v799
      %v836 = vpack.c.b16 %v803, %v800
      %v837 = vpack.c.b16 %v804, %v801
      %v838 = vpack.c.b16 %v808, %v805
      %v839 = vpack.c.b16 %v809, %v806
      %v840 = vpack.c.b16 %v810, %v807
      %v841 = vpack.c.b16 %v814, %v811
      %v842 = vpack.c.b16 %v815, %v812
      %v843 = vpack.c.b16 %v816, %v813
      %v844 = vpack.c.b16 %v820, %v817
      %v845 = vpack.c.b16 %v821, %v818
      %v846 = vpack.c.b16 %v822, %v819
      %871 = vmatprep.subr.bf16.mxu0 %v824
      %872 = vmatpush1.bf16.msra.mxu0 %v823
      %873 = vmatprep.subr.bf16.mxu0 %v827
      %874 = vmatpush1.bf16.msra.mxu0 %v826
      %875 = vmatprep.subr.bf16.mxu0 %v830
      %876 = vmatpush1.bf16.msra.mxu0 %v829
      %877 = vmatprep.subr.bf16.mxu0 %v833
      %878 = vmatpush1.bf16.msra.mxu0 %v832
      %879 = vmatprep.subr.bf16.mxu0 %v836
      %880 = vmatpush1.bf16.msra.mxu0 %v835
      %881 = vmatprep.subr.bf16.mxu0 %v839
      %882 = vmatpush1.bf16.msra.mxu0 %v838
      %883 = vmatprep.subr.bf16.mxu0 %v842
      %884 = vmatpush1.bf16.msra.mxu0 %v841
      %885 = vmatprep.subr.bf16.mxu0 %v845
      %886 = vmatpush1.bf16.msra.mxu0 %v844
      %887 = vmatprep.subr.bf16.mxu0 0
      %888 = vmatpush1.bf16.msra.mxu0 0
      %889 = vmatprep.subr.bf16.mxu0 0
      %890 = vmatpush1.bf16.msra.mxu0 0
      %891 = vmatprep.subr.bf16.mxu0 0
      %892 = vmatpush1.bf16.msra.mxu0 0
      %893 = vmatprep.subr.bf16.mxu0 0
      %894 = vmatpush1.bf16.msra.mxu0 0
      %895 = vmatprep.subr.bf16.mxu0 0
      %896 = vmatpush1.bf16.msra.mxu0 0
      %897 = vmatprep.subr.bf16.mxu0 0
      %898 = vmatpush1.bf16.msra.mxu0 0
      %899 = vmatprep.subr.bf16.mxu0 0
      %900 = vmatpush1.bf16.msra.mxu0 0
      %901 = vmatprep.subr.bf16.mxu0 0
      %902 = vmatpush1.bf16.msra.mxu0 0
      %903 = vmatprep.mubr.bf16.mxu0 0
      %904 = vmatmul.mubr.bf16.gmra.mrb[0].mxu0 %v692
      %v905 = vpop.f32.mrb[0].mxu0
      %v906 = vadd.f32 %v731, %v905
      %v907 = vpop.f32.mrb[0].mxu0
      %v908 = vadd.f32 %v735, %v907
      %v909 = vpop.f32.mrb[0].mxu0
      %v910 = vadd.f32 %v731, %v909
      %v911 = vpop.f32.mrb[0].mxu0
      %v912 = vadd.f32 %v735, %v911
      %913 = vmatprep.mubr.bf16.mxu0 0
      %914 = vmatmul.mubr.bf16.gmra.mrb[0].mxu0 %v693
      %v915 = vpop.f32.mrb[0].mxu0
      %v916 = vadd.f32 %v731, %v915
      %v917 = vpop.f32.mrb[0].mxu0
      %v918 = vadd.f32 %v735, %v917
      %v919 = vpop.f32.mrb[0].mxu0
      %v920 = vadd.f32 %v731, %v919
      %v921 = vpop.f32.mrb[0].mxu0
      %v922 = vadd.f32 %v735, %v921
      %923 = vdwg.mxu0
      %924 = vmatprep.subr.bf16.mxu0 0
      %925 = vmatpush1.bf16.msra.mxu0 %v825
      %926 = vmatprep.subr.bf16.mxu0 0
      %927 = vmatpush1.bf16.msra.mxu0 %v828
      %928 = vmatprep.subr.bf16.mxu0 0
      %929 = vmatpush1.bf16.msra.mxu0 %v831
      %930 = vmatprep.subr.bf16.mxu0 0
      %931 = vmatpush1.bf16.msra.mxu0 %v834
      %932 = vmatprep.subr.bf16.mxu0 0
      %933 = vmatpush1.bf16.msra.mxu0 %v837
      %934 = vmatprep.subr.bf16.mxu0 0
      %935 = vmatpush1.bf16.msra.mxu0 %v840
      %936 = vmatprep.subr.bf16.mxu0 0
      %937 = vmatpush1.bf16.msra.mxu0 %v843
      %938 = vmatprep.subr.bf16.mxu0 0
      %939 = vmatpush1.bf16.msra.mxu0 %v846
      %940 = vmatprep.subr.bf16.mxu0 0
      %941 = vmatpush1.bf16.msra.mxu0 0
      %942 = vmatprep.subr.bf16.mxu0 0
      %943 = vmatpush1.bf16.msra.mxu0 0
      %944 = vmatprep.subr.bf16.mxu0 0
      %945 = vmatpush1.bf16.msra.mxu0 0
      %946 = vmatprep.subr.bf16.mxu0 0
      %947 = vmatpush1.bf16.msra.mxu0 0
      %948 = vmatprep.subr.bf16.mxu0 0
      %949 = vmatpush1.bf16.msra.mxu0 0
      %950 = vmatprep.subr.bf16.mxu0 0
      %951 = vmatpush1.bf16.msra.mxu0 0
      %952 = vmatprep.subr.bf16.mxu0 0
      %953 = vmatpush1.bf16.msra.mxu0 0
      %954 = vmatprep.subr.bf16.mxu0 0
      %955 = vmatpush1.bf16.msra.mxu0 0
      %956 = vmatprep.mubr.bf16.mxu0 0
      %957 = vmatmul.mubr.bf16.gmra.mrb[0].mxu0 %v692
      %v958 = vpop.f32.mrb[0].mxu0
      %v959 = vadd.f32 %v739, %v958
      %v960 = vpop.f32.mrb[0].mxu0
      %v961 = vpop.f32.mrb[0].mxu0
      %v962 = vadd.f32 %v739, %v961
      %v963 = vpop.f32.mrb[0].mxu0
      %964 = vmatprep.mubr.bf16.mxu0 0
      %965 = vmatmul.mubr.bf16.gmra.mrb[0].mxu0 %v693
      %v966 = vpop.f32.mrb[0].mxu0
      %v967 = vadd.f32 %v739, %v966
      %v968 = vpop.f32.mrb[0].mxu0
      %v969 = vpop.f32.mrb[0].mxu0
      %v970 = vadd.f32 %v739, %v969
      %v971 = vpop.f32.mrb[0].mxu0
      %972 = vdwg.mxu0
      %v973 = vld [vmem:[%s577] sm:$0xf]
      %v974 = vld [vmem:[%s577 + $0x4] sm:$0xf]
      %v975 = vld [vmem:[%s577 + $0x8] sm:$0xf]
      %v976 = vld [vmem:[%s577 + $0xc] sm:$0xf]
      %v977 = vld [vmem:[%s577 + $0x10] sm:$0xf]
      %v978 = vld [vmem:[%s577 + $0x14] sm:$0xf]
      %v979 = vld [vmem:[%s577 + $0x18] sm:$0xf]
      %v980 = vld [vmem:[%s577 + $0x1c] sm:$0xf]
      %v981 = vld [vmem:[%s577 + $0x20] sm:$0xf]
      %v982 = vld [vmem:[%s577 + $0x24] sm:$0xf]
      %v983 = vld [vmem:[%s577 + $0x28] sm:$0xf]
      %v984 = vld [vmem:[%s577 + $0x2c] sm:$0xf]
      %v985 = vld [vmem:[%s577 + $0x30] sm:$0xf]
      %v986 = vld [vmem:[%s577 + $0x34] sm:$0xf]
      %v987 = vld [vmem:[%s577 + $0x38] sm:$0xf]
      %v988 = vld [vmem:[%s577 + $0x3c] sm:$0xf]
      %v989 = vmul.f32 %v906, 0.17677669
      %v990 = vmul.f32 %v910, 0.17677669
      %v991 = vmul.f32 %v916, 0.17677669
      %v992 = vmul.f32 %v920, 0.17677669
      %v993 = vpack.c.bf16 %v990, %v989
      %v994 = vpack.c.bf16 %v992, %v991
      %v995 = vpack.c.bf16 %v912, %v908
      %v996 = vpack.c.bf16 %v922, %v918
      %v997 = vpack.c.bf16 %v962, %v959
      %v998 = vpack.c.bf16 %v970, %v967
      %vm999 = vcmask 261120
      %v1001 = vsel %vm999, %v993, 0
      %v1004 = vsel %vm999, %v995, 0
      %1006 = vmatprep.subr.bf16.mxu0 0
      %1007 = vmatpush1.bf16.xpose.msra.mxu0 %v1004
      %1008 = vmatprep.subr.bf16.mxu0 0
      %1009 = vmatpush1.bf16.xpose.msra.mxu0 0
      %1010 = vmatprep.subr.bf16.mxu0 0
      %1011 = vmatpush1.bf16.xpose.msra.mxu0 0
      %1012 = vmatprep.subr.bf16.mxu0 0
      %1013 = vmatpush1.bf16.xpose.msra.mxu0 0
      %1014 = vmatprep.subr.bf16.mxu0 0
      %1015 = vmatpush1.bf16.xpose.msra.mxu0 0
      %1016 = vmatprep.subr.bf16.mxu0 0
      %1017 = vmatpush1.bf16.xpose.msra.mxu0 0
      %1018 = vmatprep.subr.bf16.mxu0 0
      %1019 = vmatpush1.bf16.xpose.msra.mxu0 0
      %1020 = vmatprep.subr.bf16.mxu0 0
      %1021 = vmatpush1.bf16.xpose.msra.mxu0 0
      %1022 = vmatprep.subr.bf16.mxu0 0
      %1023 = vmatpush1.bf16.xpose.msra.mxu0 0
      %1024 = vmatprep.subr.bf16.mxu0 0
      %1025 = vmatpush1.bf16.xpose.msra.mxu0 0
      %1026 = vmatprep.subr.bf16.mxu0 0
      %1027 = vmatpush1.bf16.xpose.msra.mxu0 0
      %1028 = vmatprep.subr.bf16.mxu0 0
      %1029 = vmatpush1.bf16.xpose.msra.mxu0 0
      %1030 = vmatprep.subr.bf16.mxu0 0
      %1031 = vmatpush1.bf16.xpose.msra.mxu0 0
      %1032 = vmatprep.subr.bf16.mxu0 0
      %1033 = vmatpush1.bf16.xpose.msra.mxu0 0
      %1034 = vmatprep.subr.bf16.mxu0 0
      %1035 = vmatpush1.bf16.xpose.msra.mxu0 0
      %1036 = vmatprep.subr.bf16.mxu0 0
      %1037 = vmatpush1.bf16.xpose.msra.mxu0 0
      %1038 = vmatprep.mubr.bf16.mxu0 0
      %1039 = vmatmul.mubr.bf16.gmra.mrb[0].mxu0 %v1001
      %v1040 = vpop.f32.mrb[0].mxu0
      %v1041 = vadd.f32 0.0, %v1040
      %v1042 = vpop.f32.mrb[0].mxu0
      %v1043 = vpop.f32.mrb[0].mxu0
      %v1044 = vadd.f32 0.0, %v1043
      %v1045 = vpop.f32.mrb[0].mxu0
      %1046 = vdwg.mxu0
      %v1048 = vsel %vm999, %v994, 0
      %v1051 = vsel %vm999, %v996, 0
      %1053 = vmatprep.subr.bf16.mxu0 0
      %1054 = vmatpush1.bf16.xpose.msra.mxu0 %v1051
      %1055 = vmatprep.subr.bf16.mxu0 0
      %1056 = vmatpush1.bf16.xpose.msra.mxu0 0
      %1057 = vmatprep.subr.bf16.mxu0 0
      %1058 = vmatpush1.bf16.xpose.msra.mxu0 0
      %1059 = vmatprep.subr.bf16.mxu0 0
      %1060 = vmatpush1.bf16.xpose.msra.mxu0 0
      %1061 = vmatprep.subr.bf16.mxu0 0
      %1062 = vmatpush1.bf16.xpose.msra.mxu0 0
      %1063 = vmatprep.subr.bf16.mxu0 0
      %1064 = vmatpush1.bf16.xpose.msra.mxu0 0
      %1065 = vmatprep.subr.bf16.mxu0 0
      %1066 = vmatpush1.bf16.xpose.msra.mxu0 0
      %1067 = vmatprep.subr.bf16.mxu0 0
      %1068 = vmatpush1.bf16.xpose.msra.mxu0 0
      %1069 = vmatprep.subr.bf16.mxu0 0
      %1070 = vmatpush1.bf16.xpose.msra.mxu0 0
      %1071 = vmatprep.subr.bf16.mxu0 0
      %1072 = vmatpush1.bf16.xpose.msra.mxu0 0
      %1073 = vmatprep.subr.bf16.mxu0 0
      %1074 = vmatpush1.bf16.xpose.msra.mxu0 0
      %1075 = vmatprep.subr.bf16.mxu0 0
      %1076 = vmatpush1.bf16.xpose.msra.mxu0 0
      %1077 = vmatprep.subr.bf16.mxu0 0
      %1078 = vmatpush1.bf16.xpose.msra.mxu0 0
      %1079 = vmatprep.subr.bf16.mxu0 0
      %1080 = vmatpush1.bf16.xpose.msra.mxu0 0
      %1081 = vmatprep.subr.bf16.mxu0 0
      %1082 = vmatpush1.bf16.xpose.msra.mxu0 0
      %1083 = vmatprep.subr.bf16.mxu0 0
      %1084 = vmatpush1.bf16.xpose.msra.mxu0 0
      %1085 = vmatprep.mubr.bf16.mxu0 0
      %1086 = vmatmul.mubr.bf16.gmra.mrb[0].mxu0 %v1048
      %v1087 = vpop.f32.mrb[0].mxu0
      %v1088 = vadd.f32 0.0, %v1087
      %v1089 = vpop.f32.mrb[0].mxu0
      %v1090 = vpop.f32.mrb[0].mxu0
      %v1091 = vadd.f32 0.0, %v1090
      %v1092 = vpop.f32.mrb[0].mxu0
      %1093 = vdwg.mxu0
      %vm1094 = vcmask 130048
      %v1095 = vsel %vm1094, %v1041, -inf
      %1096 = vmax.xlane.f32.xlu0 %v1095
      %v1097 = vpop.xlane.xlu0 %1096
      %v1098 = vsel %vm1094, %v1044, -inf
      %1099 = vmax.xlane.f32.xlu0 %v1098
      %v1100 = vpop.xlane.xlu0 %1099
      %v1101 = vsel %vm1094, %v1088, -inf
      %1102 = vmax.xlane.f32.xlu0 %v1101
      %v1103 = vpop.xlane.xlu0 %1102
      %v1104 = vsel %vm1094, %v1091, -inf
      %1105 = vmax.xlane.f32.xlu0 %v1104
      %v1106 = vpop.xlane.xlu0 %1105
      %v1107 = vsub.f32 %v1041, %v1097
      %v1108 = vsub.f32 %v1044, %v1100
      %v1109 = vsub.f32 %v1088, %v1103
      %v1110 = vsub.f32 %v1091, %v1106
      %v1111 = vmul.f32 %v1107, 1.442695
      %v1112 = vpow.pop %v1111
      %v1113 = vmul.f32 %v1108, 1.442695
      %v1114 = vpow.pop %v1113
      %v1115 = vmul.f32 %v1109, 1.442695
      %v1116 = vpow.pop %v1115
      %v1117 = vmul.f32 %v1110, 1.442695
      %v1118 = vpow.pop %v1117
      %v1119 = vsel %vm1094, %v1112, 0.0
      %1120 = vadd.xlane.f32.xlu0 %v1119
      %v1121 = vpop.xlane.xlu0 %1120
      %v1122 = vsel %vm1094, %v1114, 0.0
      %1123 = vadd.xlane.f32.xlu0 %v1122
      %v1124 = vpop.xlane.xlu0 %1123
      %v1125 = vsel %vm1094, %v1116, 0.0
      %1126 = vadd.xlane.f32.xlu0 %v1125
      %v1127 = vpop.xlane.xlu0 %1126
      %v1128 = vsel %vm1094, %v1118, 0.0
      %1129 = vadd.xlane.f32.xlu0 %v1128
      %v1130 = vpop.xlane.xlu0 %1129
      %v1131 = vrcp.pop %v1121
      %v1132 = vrcp.pop %v1124
      %v1133 = vrcp.pop %v1127
      %v1134 = vrcp.pop %v1130
      %v1135 = vmul.f32 %v1112, %v1131
      %v1136 = vmul.f32 %v1114, %v1132
      %v1137 = vmul.f32 %v1116, %v1133
      %v1138 = vmul.f32 %v1118, %v1134
      %v1139 = vpack.c.bf16 %v1136, %v1135
      %v1140 = vpack.c.bf16 %v1138, %v1137
      %v1142 = vsel %vm1094, %v1139, 0
      %1144 = vmatprep.subr.bf16.mxu0 0
      %1145 = vmatpush1.bf16.msra.mxu0 %v997
      %1146 = vmatprep.subr.bf16.mxu0 0
      %1147 = vmatpush1.bf16.msra.mxu0 0
      %1148 = vmatprep.subr.bf16.mxu0 0
      %1149 = vmatpush1.bf16.msra.mxu0 0
      %1150 = vmatprep.subr.bf16.mxu0 0
      %1151 = vmatpush1.bf16.msra.mxu0 0
      %1152 = vmatprep.subr.bf16.mxu0 0
      %1153 = vmatpush1.bf16.msra.mxu0 0
      %1154 = vmatprep.subr.bf16.mxu0 0
      %1155 = vmatpush1.bf16.msra.mxu0 0
      %1156 = vmatprep.subr.bf16.mxu0 0
      %1157 = vmatpush1.bf16.msra.mxu0 0
      %1158 = vmatprep.subr.bf16.mxu0 0
      %1159 = vmatpush1.bf16.msra.mxu0 0
      %1160 = vmatprep.subr.bf16.mxu0 0
      %1161 = vmatpush1.bf16.msra.mxu0 0
      %1162 = vmatprep.subr.bf16.mxu0 0
      %1163 = vmatpush1.bf16.msra.mxu0 0
      %1164 = vmatprep.subr.bf16.mxu0 0
      %1165 = vmatpush1.bf16.msra.mxu0 0
      %1166 = vmatprep.subr.bf16.mxu0 0
      %1167 = vmatpush1.bf16.msra.mxu0 0
      %1168 = vmatprep.subr.bf16.mxu0 0
      %1169 = vmatpush1.bf16.msra.mxu0 0
      %1170 = vmatprep.subr.bf16.mxu0 0
      %1171 = vmatpush1.bf16.msra.mxu0 0
      %1172 = vmatprep.subr.bf16.mxu0 0
      %1173 = vmatpush1.bf16.msra.mxu0 0
      %1174 = vmatprep.subr.bf16.mxu0 0
      %1175 = vmatpush1.bf16.msra.mxu0 0
      %1176 = vmatprep.mubr.bf16.mxu0 0
      %1177 = vmatmul.mubr.bf16.gmra.mrb[0].mxu0 %v1142
      %v1178 = vpop.f32.mrb[0].mxu0
      %v1179 = vadd.f32 0.0, %v1178
      %v1180 = vpop.f32.mrb[0].mxu0
      %v1181 = vpop.f32.mrb[0].mxu0
      %v1182 = vadd.f32 0.0, %v1181
      %v1183 = vpop.f32.mrb[0].mxu0
      %1184 = vdwg.mxu0
      %v1186 = vsel %vm1094, %v1140, 0
      %1188 = vmatprep.subr.bf16.mxu0 0
      %1189 = vmatpush1.bf16.msra.mxu0 %v998
      %1190 = vmatprep.subr.bf16.mxu0 0
      %1191 = vmatpush1.bf16.msra.mxu0 0
      %1192 = vmatprep.subr.bf16.mxu0 0
      %1193 = vmatpush1.bf16.msra.mxu0 0
      %1194 = vmatprep.subr.bf16.mxu0 0
      %1195 = vmatpush1.bf16.msra.mxu0 0
      %1196 = vmatprep.subr.bf16.mxu0 0
      %1197 = vmatpush1.bf16.msra.mxu0 0
      %1198 = vmatprep.subr.bf16.mxu0 0
      %1199 = vmatpush1.bf16.msra.mxu0 0
      %1200 = vmatprep.subr.bf16.mxu0 0
      %1201 = vmatpush1.bf16.msra.mxu0 0
      %1202 = vmatprep.subr.bf16.mxu0 0
      %1203 = vmatpush1.bf16.msra.mxu0 0
      %1204 = vmatprep.subr.bf16.mxu0 0
      %1205 = vmatpush1.bf16.msra.mxu0 0
      %1206 = vmatprep.subr.bf16.mxu0 0
      %1207 = vmatpush1.bf16.msra.mxu0 0
      %1208 = vmatprep.subr.bf16.mxu0 0
      %1209 = vmatpush1.bf16.msra.mxu0 0
      %1210 = vmatprep.subr.bf16.mxu0 0
      %1211 = vmatpush1.bf16.msra.mxu0 0
      %1212 = vmatprep.subr.bf16.mxu0 0
      %1213 = vmatpush1.bf16.msra.mxu0 0
      %1214 = vmatprep.subr.bf16.mxu0 0
      %1215 = vmatpush1.bf16.msra.mxu0 0
      %1216 = vmatprep.subr.bf16.mxu0 0
      %1217 = vmatpush1.bf16.msra.mxu0 0
      %1218 = vmatprep.subr.bf16.mxu0 0
      %1219 = vmatpush1.bf16.msra.mxu0 0
      %1220 = vmatprep.mubr.bf16.mxu0 0
      %1221 = vmatmul.mubr.bf16.gmra.mrb[0].mxu0 %v1186
      %v1222 = vpop.f32.mrb[0].mxu0
      %v1223 = vadd.f32 0.0, %v1222
      %v1224 = vpop.f32.mrb[0].mxu0
      %v1225 = vpop.f32.mrb[0].mxu0
      %v1226 = vadd.f32 0.0, %v1225
      %v1227 = vpop.f32.mrb[0].mxu0
      %1228 = vdwg.mxu0
      %v1229 = vpack.c.bf16 %v1182, %v1179
      %v1230 = vpack.c.bf16 %v1226, %v1223
      %1232 = vrot.lane.b32.xlu0 %v993, 96
      %v1233 = vpop.permute.xlu0 %1232
      %1235 = vrot.lane.b32.xlu0 %v995, 96
      %v1236 = vpop.permute.xlu0 %1235
      %v1238 = vsel %vm999, %v1233, 0
      %v1241 = vsel %vm999, %v1236, 0
      %1243 = vmatprep.subr.bf16.mxu0 0
      %1244 = vmatpush1.bf16.xpose.msra.mxu0 %v1241
      %1245 = vmatprep.subr.bf16.mxu0 0
      %1246 = vmatpush1.bf16.xpose.msra.mxu0 0
      %1247 = vmatprep.subr.bf16.mxu0 0
      %1248 = vmatpush1.bf16.xpose.msra.mxu0 0
      %1249 = vmatprep.subr.bf16.mxu0 0
      %1250 = vmatpush1.bf16.xpose.msra.mxu0 0
      %1251 = vmatprep.subr.bf16.mxu0 0
      %1252 = vmatpush1.bf16.xpose.msra.mxu0 0
      %1253 = vmatprep.subr.bf16.mxu0 0
      %1254 = vmatpush1.bf16.xpose.msra.mxu0 0
      %1255 = vmatprep.subr.bf16.mxu0 0
      %1256 = vmatpush1.bf16.xpose.msra.mxu0 0
      %1257 = vmatprep.subr.bf16.mxu0 0
      %1258 = vmatpush1.bf16.xpose.msra.mxu0 0
      %1259 = vmatprep.subr.bf16.mxu0 0
      %1260 = vmatpush1.bf16.xpose.msra.mxu0 0
      %1261 = vmatprep.subr.bf16.mxu0 0
      %1262 = vmatpush1.bf16.xpose.msra.mxu0 0
      %1263 = vmatprep.subr.bf16.mxu0 0
      %1264 = vmatpush1.bf16.xpose.msra.mxu0 0
      %1265 = vmatprep.subr.bf16.mxu0 0
      %1266 = vmatpush1.bf16.xpose.msra.mxu0 0
      %1267 = vmatprep.subr.bf16.mxu0 0
      %1268 = vmatpush1.bf16.xpose.msra.mxu0 0
      %1269 = vmatprep.subr.bf16.mxu0 0
      %1270 = vmatpush1.bf16.xpose.msra.mxu0 0
      %1271 = vmatprep.subr.bf16.mxu0 0
      %1272 = vmatpush1.bf16.xpose.msra.mxu0 0
      %1273 = vmatprep.subr.bf16.mxu0 0
      %1274 = vmatpush1.bf16.xpose.msra.mxu0 0
      %1275 = vmatprep.mubr.bf16.mxu0 0
      %1276 = vmatmul.mubr.bf16.gmra.mrb[0].mxu0 %v1238
      %v1277 = vpop.f32.mrb[0].mxu0
      %v1278 = vadd.f32 0.0, %v1277
      %v1279 = vpop.f32.mrb[0].mxu0
      %v1280 = vpop.f32.mrb[0].mxu0
      %v1281 = vadd.f32 0.0, %v1280
      %v1282 = vpop.f32.mrb[0].mxu0
      %1283 = vdwg.mxu0
      %1285 = vrot.lane.b32.xlu0 %v994, 96
      %v1286 = vpop.permute.xlu0 %1285
      %1288 = vrot.lane.b32.xlu0 %v996, 96
      %v1289 = vpop.permute.xlu0 %1288
      %v1291 = vsel %vm999, %v1286, 0
      %v1294 = vsel %vm999, %v1289, 0
      %1296 = vmatprep.subr.bf16.mxu0 0
      %1297 = vmatpush1.bf16.xpose.msra.mxu0 %v1294
      %1298 = vmatprep.subr.bf16.mxu0 0
      %1299 = vmatpush1.bf16.xpose.msra.mxu0 0
      %1300 = vmatprep.subr.bf16.mxu0 0
      %1301 = vmatpush1.bf16.xpose.msra.mxu0 0
      %1302 = vmatprep.subr.bf16.mxu0 0
      %1303 = vmatpush1.bf16.xpose.msra.mxu0 0
      %1304 = vmatprep.subr.bf16.mxu0 0
      %1305 = vmatpush1.bf16.xpose.msra.mxu0 0
      %1306 = vmatprep.subr.bf16.mxu0 0
      %1307 = vmatpush1.bf16.xpose.msra.mxu0 0
      %1308 = vmatprep.subr.bf16.mxu0 0
      %1309 = vmatpush1.bf16.xpose.msra.mxu0 0
      %1310 = vmatprep.subr.bf16.mxu0 0
      %1311 = vmatpush1.bf16.xpose.msra.mxu0 0
      %1312 = vmatprep.subr.bf16.mxu0 0
      %1313 = vmatpush1.bf16.xpose.msra.mxu0 0
      %1314 = vmatprep.subr.bf16.mxu0 0
      %1315 = vmatpush1.bf16.xpose.msra.mxu0 0
      %1316 = vmatprep.subr.bf16.mxu0 0
      %1317 = vmatpush1.bf16.xpose.msra.mxu0 0
      %1318 = vmatprep.subr.bf16.mxu0 0
      %1319 = vmatpush1.bf16.xpose.msra.mxu0 0
      %1320 = vmatprep.subr.bf16.mxu0 0
      %1321 = vmatpush1.bf16.xpose.msra.mxu0 0
      %1322 = vmatprep.subr.bf16.mxu0 0
      %1323 = vmatpush1.bf16.xpose.msra.mxu0 0
      %1324 = vmatprep.subr.bf16.mxu0 0
      %1325 = vmatpush1.bf16.xpose.msra.mxu0 0
      %1326 = vmatprep.subr.bf16.mxu0 0
      %1327 = vmatpush1.bf16.xpose.msra.mxu0 0
      %1328 = vmatprep.mubr.bf16.mxu0 0
      %1329 = vmatmul.mubr.bf16.gmra.mrb[0].mxu0 %v1291
      %v1330 = vpop.f32.mrb[0].mxu0
      %v1331 = vadd.f32 0.0, %v1330
      %v1332 = vpop.f32.mrb[0].mxu0
      %v1333 = vpop.f32.mrb[0].mxu0
      %v1334 = vadd.f32 0.0, %v1333
      %v1335 = vpop.f32.mrb[0].mxu0
      %1336 = vdwg.mxu0
      %v1337 = vsel %vm1094, %v1278, -inf
      %1338 = vmax.xlane.f32.xlu0 %v1337
      %v1339 = vpop.xlane.xlu0 %1338
      %v1340 = vsel %vm1094, %v1281, -inf
      %1341 = vmax.xlane.f32.xlu0 %v1340
      %v1342 = vpop.xlane.xlu0 %1341
      %v1343 = vsel %vm1094, %v1331, -inf
      %1344 = vmax.xlane.f32.xlu0 %v1343
      %v1345 = vpop.xlane.xlu0 %1344
      %v1346 = vsel %vm1094, %v1334, -inf
      %1347 = vmax.xlane.f32.xlu0 %v1346
      %v1348 = vpop.xlane.xlu0 %1347
      %v1349 = vsub.f32 %v1278, %v1339
      %v1350 = vsub.f32 %v1281, %v1342
      %v1351 = vsub.f32 %v1331, %v1345
      %v1352 = vsub.f32 %v1334, %v1348
      %v1353 = vmul.f32 %v1349, 1.442695
      %v1354 = vpow.pop %v1353
      %v1355 = vmul.f32 %v1350, 1.442695
      %v1356 = vpow.pop %v1355
      %v1357 = vmul.f32 %v1351, 1.442695
      %v1358 = vpow.pop %v1357
      %v1359 = vmul.f32 %v1352, 1.442695
      %v1360 = vpow.pop %v1359
      %v1361 = vsel %vm1094, %v1354, 0.0
      %1362 = vadd.xlane.f32.xlu0 %v1361
      %v1363 = vpop.xlane.xlu0 %1362
      %v1364 = vsel %vm1094, %v1356, 0.0
      %1365 = vadd.xlane.f32.xlu0 %v1364
      %v1366 = vpop.xlane.xlu0 %1365
      %v1367 = vsel %vm1094, %v1358, 0.0
      %1368 = vadd.xlane.f32.xlu0 %v1367
      %v1369 = vpop.xlane.xlu0 %1368
      %v1370 = vsel %vm1094, %v1360, 0.0
      %1371 = vadd.xlane.f32.xlu0 %v1370
      %v1372 = vpop.xlane.xlu0 %1371
      %v1373 = vrcp.pop %v1363
      %v1374 = vrcp.pop %v1366
      %v1375 = vrcp.pop %v1369
      %v1376 = vrcp.pop %v1372
      %v1377 = vmul.f32 %v1354, %v1373
      %v1378 = vmul.f32 %v1356, %v1374
      %v1379 = vmul.f32 %v1358, %v1375
      %v1380 = vmul.f32 %v1360, %v1376
      %v1381 = vpack.c.bf16 %v1378, %v1377
      %v1382 = vpack.c.bf16 %v1380, %v1379
      %1384 = vrot.lane.b32.xlu0 %v997, 96
      %v1385 = vpop.permute.xlu0 %1384
      %v1388 = vsel %vm1094, %v1381, 0
      %1390 = vmatprep.subr.bf16.mxu0 0
      %1391 = vmatpush1.bf16.msra.mxu0 %v1385
      %1392 = vmatprep.subr.bf16.mxu0 0
      %1393 = vmatpush1.bf16.msra.mxu0 0
      %1394 = vmatprep.subr.bf16.mxu0 0
      %1395 = vmatpush1.bf16.msra.mxu0 0
      %1396 = vmatprep.subr.bf16.mxu0 0
      %1397 = vmatpush1.bf16.msra.mxu0 0
      %1398 = vmatprep.subr.bf16.mxu0 0
      %1399 = vmatpush1.bf16.msra.mxu0 0
      %1400 = vmatprep.subr.bf16.mxu0 0
      %1401 = vmatpush1.bf16.msra.mxu0 0
      %1402 = vmatprep.subr.bf16.mxu0 0
      %1403 = vmatpush1.bf16.msra.mxu0 0
      %1404 = vmatprep.subr.bf16.mxu0 0
      %1405 = vmatpush1.bf16.msra.mxu0 0
      %1406 = vmatprep.subr.bf16.mxu0 0
      %1407 = vmatpush1.bf16.msra.mxu0 0
      %1408 = vmatprep.subr.bf16.mxu0 0
      %1409 = vmatpush1.bf16.msra.mxu0 0
      %1410 = vmatprep.subr.bf16.mxu0 0
      %1411 = vmatpush1.bf16.msra.mxu0 0
      %1412 = vmatprep.subr.bf16.mxu0 0
      %1413 = vmatpush1.bf16.msra.mxu0 0
      %1414 = vmatprep.subr.bf16.mxu0 0
      %1415 = vmatpush1.bf16.msra.mxu0 0
      %1416 = vmatprep.subr.bf16.mxu0 0
      %1417 = vmatpush1.bf16.msra.mxu0 0
      %1418 = vmatprep.subr.bf16.mxu0 0
      %1419 = vmatpush1.bf16.msra.mxu0 0
      %1420 = vmatprep.subr.bf16.mxu0 0
      %1421 = vmatpush1.bf16.msra.mxu0 0
      %1422 = vmatprep.mubr.bf16.mxu0 0
      %1423 = vmatmul.mubr.bf16.gmra.mrb[0].mxu0 %v1388
      %v1424 = vpop.f32.mrb[0].mxu0
      %v1425 = vadd.f32 0.0, %v1424
      %v1426 = vpop.f32.mrb[0].mxu0
      %v1427 = vpop.f32.mrb[0].mxu0
      %v1428 = vadd.f32 0.0, %v1427
      %v1429 = vpop.f32.mrb[0].mxu0
      %1430 = vdwg.mxu0
      %1432 = vrot.lane.b32.xlu0 %v998, 96
      %v1433 = vpop.permute.xlu0 %1432
      %v1436 = vsel %vm1094, %v1382, 0
      %1438 = vmatprep.subr.bf16.mxu0 0
      %1439 = vmatpush1.bf16.msra.mxu0 %v1433
      %1440 = vmatprep.subr.bf16.mxu0 0
      %1441 = vmatpush1.bf16.msra.mxu0 0
      %1442 = vmatprep.subr.bf16.mxu0 0
      %1443 = vmatpush1.bf16.msra.mxu0 0
      %1444 = vmatprep.subr.bf16.mxu0 0
      %1445 = vmatpush1.bf16.msra.mxu0 0
      %1446 = vmatprep.subr.bf16.mxu0 0
      %1447 = vmatpush1.bf16.msra.mxu0 0
      %1448 = vmatprep.subr.bf16.mxu0 0
      %1449 = vmatpush1.bf16.msra.mxu0 0
      %1450 = vmatprep.subr.bf16.mxu0 0
      %1451 = vmatpush1.bf16.msra.mxu0 0
      %1452 = vmatprep.subr.bf16.mxu0 0
      %1453 = vmatpush1.bf16.msra.mxu0 0
      %1454 = vmatprep.subr.bf16.mxu0 0
      %1455 = vmatpush1.bf16.msra.mxu0 0
      %1456 = vmatprep.subr.bf16.mxu0 0
      %1457 = vmatpush1.bf16.msra.mxu0 0
      %1458 = vmatprep.subr.bf16.mxu0 0
      %1459 = vmatpush1.bf16.msra.mxu0 0
      %1460 = vmatprep.subr.bf16.mxu0 0
      %1461 = vmatpush1.bf16.msra.mxu0 0
      %1462 = vmatprep.subr.bf16.mxu0 0
      %1463 = vmatpush1.bf16.msra.mxu0 0
      %1464 = vmatprep.subr.bf16.mxu0 0
      %1465 = vmatpush1.bf16.msra.mxu0 0
      %1466 = vmatprep.subr.bf16.mxu0 0
      %1467 = vmatpush1.bf16.msra.mxu0 0
      %1468 = vmatprep.subr.bf16.mxu0 0
      %1469 = vmatpush1.bf16.msra.mxu0 0
      %1470 = vmatprep.mubr.bf16.mxu0 0
      %1471 = vmatmul.mubr.bf16.gmra.mrb[0].mxu0 %v1436
      %v1472 = vpop.f32.mrb[0].mxu0
      %v1473 = vadd.f32 0.0, %v1472
      %v1474 = vpop.f32.mrb[0].mxu0
      %v1475 = vpop.f32.mrb[0].mxu0
      %v1476 = vadd.f32 0.0, %v1475
      %v1477 = vpop.f32.mrb[0].mxu0
      %1478 = vdwg.mxu0
      %v1479 = vpack.c.bf16 %v1428, %v1425
      %v1480 = vpack.c.bf16 %v1476, %v1473
      %v1485 = vunpack.c.l.b16 %v977
      %v1486 = vunpack.c.l.b16 %v978
      %v1487 = vunpack.c.l.b16 %v979
      %v1488 = vunpack.c.l.b16 %v980
      %v1489 = vpack.c.b16 %v1486, %v1485
      %v1490 = vpack.c.b16 %v1488, %v1487
      %v1494 = vsel %vm999, %v1479, 0
      %v1497 = vsel %vm999, %v1480, 0
      %1499 = vmatprep.subr.bf16.mxu0 0
      %1500 = vmatpush1.bf16.msra.mxu0 %v1489
      %1501 = vmatprep.subr.bf16.mxu0 0
      %1502 = vmatpush1.bf16.msra.mxu0 %v1490
      %1503 = vmatprep.subr.bf16.mxu0 0
      %1504 = vmatpush1.bf16.msra.mxu0 0
      %1505 = vmatprep.subr.bf16.mxu0 0
      %1506 = vmatpush1.bf16.msra.mxu0 0
      %1507 = vmatprep.subr.bf16.mxu0 0
      %1508 = vmatpush1.bf16.msra.mxu0 0
      %1509 = vmatprep.subr.bf16.mxu0 0
      %1510 = vmatpush1.bf16.msra.mxu0 0
      %1511 = vmatprep.subr.bf16.mxu0 0
      %1512 = vmatpush1.bf16.msra.mxu0 0
      %1513 = vmatprep.subr.bf16.mxu0 0
      %1514 = vmatpush1.bf16.msra.mxu0 0
      %1515 = vmatprep.subr.bf16.mxu0 0
      %1516 = vmatpush1.bf16.msra.mxu0 0
      %1517 = vmatprep.subr.bf16.mxu0 0
      %1518 = vmatpush1.bf16.msra.mxu0 0
      %1519 = vmatprep.subr.bf16.mxu0 0
      %1520 = vmatpush1.bf16.msra.mxu0 0
      %1521 = vmatprep.subr.bf16.mxu0 0
      %1522 = vmatpush1.bf16.msra.mxu0 0
      %1523 = vmatprep.subr.bf16.mxu0 0
      %1524 = vmatpush1.bf16.msra.mxu0 0
      %1525 = vmatprep.subr.bf16.mxu0 0
      %1526 = vmatpush1.bf16.msra.mxu0 0
      %1527 = vmatprep.subr.bf16.mxu0 0
      %1528 = vmatpush1.bf16.msra.mxu0 0
      %1529 = vmatprep.subr.bf16.mxu0 0
      %1530 = vmatpush1.bf16.msra.mxu0 0
      %1531 = vmatprep.mubr.bf16.mxu0 0
      %1532 = vmatmul.mubr.bf16.gmra.mrb[0].mxu0 %v1494
      %v1533 = vpop.f32.mrb[0].mxu0
      %v1534 = vadd.f32 0.0, %v1533
      %v1535 = vpop.f32.mrb[0].mxu0
      %v1536 = vpop.f32.mrb[0].mxu0
      %v1537 = vadd.f32 0.0, %v1536
      %v1538 = vpop.f32.mrb[0].mxu0
      %1539 = vmatprep.mubr.bf16.mxu0 0
      %1540 = vmatmul.mubr.bf16.gmra.mrb[0].mxu0 %v1497
      %v1541 = vpop.f32.mrb[0].mxu0
      %v1542 = vadd.f32 0.0, %v1541
      %v1543 = vpop.f32.mrb[0].mxu0
      %v1544 = vpop.f32.mrb[0].mxu0
      %v1545 = vadd.f32 0.0, %v1544
      %v1546 = vpop.f32.mrb[0].mxu0
      %1547 = vdwg.mxu0
      %v1552 = vunpack.c.l.b16 %v973
      %v1553 = vunpack.c.l.b16 %v974
      %v1554 = vunpack.c.l.b16 %v975
      %v1555 = vunpack.c.l.b16 %v976
      %v1556 = vpack.c.b16 %v1553, %v1552
      %v1557 = vpack.c.b16 %v1555, %v1554
      %v1561 = vsel %vm999, %v1229, 0
      %v1564 = vsel %vm999, %v1230, 0
      %1566 = vmatprep.subr.bf16.mxu0 0
      %1567 = vmatpush1.bf16.msra.mxu0 %v1556
      %1568 = vmatprep.subr.bf16.mxu0 0
      %1569 = vmatpush1.bf16.msra.mxu0 %v1557
      %1570 = vmatprep.subr.bf16.mxu0 0
      %1571 = vmatpush1.bf16.msra.mxu0 0
      %1572 = vmatprep.subr.bf16.mxu0 0
      %1573 = vmatpush1.bf16.msra.mxu0 0
      %1574 = vmatprep.subr.bf16.mxu0 0
      %1575 = vmatpush1.bf16.msra.mxu0 0
      %1576 = vmatprep.subr.bf16.mxu0 0
      %1577 = vmatpush1.bf16.msra.mxu0 0
      %1578 = vmatprep.subr.bf16.mxu0 0
      %1579 = vmatpush1.bf16.msra.mxu0 0
      %1580 = vmatprep.subr.bf16.mxu0 0
      %1581 = vmatpush1.bf16.msra.mxu0 0
      %1582 = vmatprep.subr.bf16.mxu0 0
      %1583 = vmatpush1.bf16.msra.mxu0 0
      %1584 = vmatprep.subr.bf16.mxu0 0
      %1585 = vmatpush1.bf16.msra.mxu0 0
      %1586 = vmatprep.subr.bf16.mxu0 0
      %1587 = vmatpush1.bf16.msra.mxu0 0
      %1588 = vmatprep.subr.bf16.mxu0 0
      %1589 = vmatpush1.bf16.msra.mxu0 0
      %1590 = vmatprep.subr.bf16.mxu0 0
      %1591 = vmatpush1.bf16.msra.mxu0 0
      %1592 = vmatprep.subr.bf16.mxu0 0
      %1593 = vmatpush1.bf16.msra.mxu0 0
      %1594 = vmatprep.subr.bf16.mxu0 0
      %1595 = vmatpush1.bf16.msra.mxu0 0
      %1596 = vmatprep.subr.bf16.mxu0 0
      %1597 = vmatpush1.bf16.msra.mxu0 0
      %1598 = vmatprep.mubr.bf16.mxu0 0
      %1599 = vmatmul.mubr.bf16.gmra.mrb[0].mxu0 %v1561
      %v1600 = vpop.f32.mrb[0].mxu0
      %v1601 = vadd.f32 %v1534, %v1600
      %v1602 = vpop.f32.mrb[0].mxu0
      %v1603 = vpop.f32.mrb[0].mxu0
      %v1604 = vadd.f32 %v1537, %v1603
      %v1605 = vpop.f32.mrb[0].mxu0
      %1606 = vmatprep.mubr.bf16.mxu0 0
      %1607 = vmatmul.mubr.bf16.gmra.mrb[0].mxu0 %v1564
      %v1608 = vpop.f32.mrb[0].mxu0
      %v1609 = vadd.f32 %v1542, %v1608
      %v1610 = vpop.f32.mrb[0].mxu0
      %v1611 = vpop.f32.mrb[0].mxu0
      %v1612 = vadd.f32 %v1545, %v1611
      %v1613 = vpop.f32.mrb[0].mxu0
      %1614 = vdwg.mxu0
      %1615 = vrot.lane.b32.xlu0 %v993, 64
      %v1616 = vpop.permute.xlu0 %1615
      %1617 = vrot.lane.b32.xlu0 %v995, 64
      %v1618 = vpop.permute.xlu0 %1617
      %v1620 = vsel %vm999, %v1616, 0
      %v1623 = vsel %vm999, %v1618, 0
      %1625 = vmatprep.subr.bf16.mxu0 0
      %1626 = vmatpush1.bf16.xpose.msra.mxu0 %v1623
      %1627 = vmatprep.subr.bf16.mxu0 0
      %1628 = vmatpush1.bf16.xpose.msra.mxu0 0
      %1629 = vmatprep.subr.bf16.mxu0 0
      %1630 = vmatpush1.bf16.xpose.msra.mxu0 0
      %1631 = vmatprep.subr.bf16.mxu0 0
      %1632 = vmatpush1.bf16.xpose.msra.mxu0 0
      %1633 = vmatprep.subr.bf16.mxu0 0
      %1634 = vmatpush1.bf16.xpose.msra.mxu0 0
      %1635 = vmatprep.subr.bf16.mxu0 0
      %1636 = vmatpush1.bf16.xpose.msra.mxu0 0
      %1637 = vmatprep.subr.bf16.mxu0 0
      %1638 = vmatpush1.bf16.xpose.msra.mxu0 0
      %1639 = vmatprep.subr.bf16.mxu0 0
      %1640 = vmatpush1.bf16.xpose.msra.mxu0 0
      %1641 = vmatprep.subr.bf16.mxu0 0
      %1642 = vmatpush1.bf16.xpose.msra.mxu0 0
      %1643 = vmatprep.subr.bf16.mxu0 0
      %1644 = vmatpush1.bf16.xpose.msra.mxu0 0
      %1645 = vmatprep.subr.bf16.mxu0 0
      %1646 = vmatpush1.bf16.xpose.msra.mxu0 0
      %1647 = vmatprep.subr.bf16.mxu0 0
      %1648 = vmatpush1.bf16.xpose.msra.mxu0 0
      %1649 = vmatprep.subr.bf16.mxu0 0
      %1650 = vmatpush1.bf16.xpose.msra.mxu0 0
      %1651 = vmatprep.subr.bf16.mxu0 0
      %1652 = vmatpush1.bf16.xpose.msra.mxu0 0
      %1653 = vmatprep.subr.bf16.mxu0 0
      %1654 = vmatpush1.bf16.xpose.msra.mxu0 0
      %1655 = vmatprep.subr.bf16.mxu0 0
      %1656 = vmatpush1.bf16.xpose.msra.mxu0 0
      %1657 = vmatprep.mubr.bf16.mxu0 0
      %1658 = vmatmul.mubr.bf16.gmra.mrb[0].mxu0 %v1620
      %v1659 = vpop.f32.mrb[0].mxu0
      %v1660 = vadd.f32 0.0, %v1659
      %v1661 = vpop.f32.mrb[0].mxu0
      %v1662 = vpop.f32.mrb[0].mxu0
      %v1663 = vadd.f32 0.0, %v1662
      %v1664 = vpop.f32.mrb[0].mxu0
      %1665 = vdwg.mxu0
      %1666 = vrot.lane.b32.xlu0 %v994, 64
      %v1667 = vpop.permute.xlu0 %1666
      %1668 = vrot.lane.b32.xlu0 %v996, 64
      %v1669 = vpop.permute.xlu0 %1668
      %v1671 = vsel %vm999, %v1667, 0
      %v1674 = vsel %vm999, %v1669, 0
      %1676 = vmatprep.subr.bf16.mxu0 0
      %1677 = vmatpush1.bf16.xpose.msra.mxu0 %v1674
      %1678 = vmatprep.subr.bf16.mxu0 0
      %1679 = vmatpush1.bf16.xpose.msra.mxu0 0
      %1680 = vmatprep.subr.bf16.mxu0 0
      %1681 = vmatpush1.bf16.xpose.msra.mxu0 0
      %1682 = vmatprep.subr.bf16.mxu0 0
      %1683 = vmatpush1.bf16.xpose.msra.mxu0 0
      %1684 = vmatprep.subr.bf16.mxu0 0
      %1685 = vmatpush1.bf16.xpose.msra.mxu0 0
      %1686 = vmatprep.subr.bf16.mxu0 0
      %1687 = vmatpush1.bf16.xpose.msra.mxu0 0
      %1688 = vmatprep.subr.bf16.mxu0 0
      %1689 = vmatpush1.bf16.xpose.msra.mxu0 0
      %1690 = vmatprep.subr.bf16.mxu0 0
      %1691 = vmatpush1.bf16.xpose.msra.mxu0 0
      %1692 = vmatprep.subr.bf16.mxu0 0
      %1693 = vmatpush1.bf16.xpose.msra.mxu0 0
      %1694 = vmatprep.subr.bf16.mxu0 0
      %1695 = vmatpush1.bf16.xpose.msra.mxu0 0
      %1696 = vmatprep.subr.bf16.mxu0 0
      %1697 = vmatpush1.bf16.xpose.msra.mxu0 0
      %1698 = vmatprep.subr.bf16.mxu0 0
      %1699 = vmatpush1.bf16.xpose.msra.mxu0 0
      %1700 = vmatprep.subr.bf16.mxu0 0
      %1701 = vmatpush1.bf16.xpose.msra.mxu0 0
      %1702 = vmatprep.subr.bf16.mxu0 0
      %1703 = vmatpush1.bf16.xpose.msra.mxu0 0
      %1704 = vmatprep.subr.bf16.mxu0 0
      %1705 = vmatpush1.bf16.xpose.msra.mxu0 0
      %1706 = vmatprep.subr.bf16.mxu0 0
      %1707 = vmatpush1.bf16.xpose.msra.mxu0 0
      %1708 = vmatprep.mubr.bf16.mxu0 0
      %1709 = vmatmul.mubr.bf16.gmra.mrb[0].mxu0 %v1671
      %v1710 = vpop.f32.mrb[0].mxu0
      %v1711 = vadd.f32 0.0, %v1710
      %v1712 = vpop.f32.mrb[0].mxu0
      %v1713 = vpop.f32.mrb[0].mxu0
      %v1714 = vadd.f32 0.0, %v1713
      %v1715 = vpop.f32.mrb[0].mxu0
      %1716 = vdwg.mxu0
      %v1717 = vsel %vm1094, %v1660, -inf
      %1718 = vmax.xlane.f32.xlu0 %v1717
      %v1719 = vpop.xlane.xlu0 %1718
      %v1720 = vsel %vm1094, %v1663, -inf
      %1721 = vmax.xlane.f32.xlu0 %v1720
      %v1722 = vpop.xlane.xlu0 %1721
      %v1723 = vsel %vm1094, %v1711, -inf
      %1724 = vmax.xlane.f32.xlu0 %v1723
      %v1725 = vpop.xlane.xlu0 %1724
      %v1726 = vsel %vm1094, %v1714, -inf
      %1727 = vmax.xlane.f32.xlu0 %v1726
      %v1728 = vpop.xlane.xlu0 %1727
      %v1729 = vsub.f32 %v1660, %v1719
      %v1730 = vsub.f32 %v1663, %v1722
      %v1731 = vsub.f32 %v1711, %v1725
      %v1732 = vsub.f32 %v1714, %v1728
      %v1733 = vmul.f32 %v1729, 1.442695
      %v1734 = vpow.pop %v1733
      %v1735 = vmul.f32 %v1730, 1.442695
      %v1736 = vpow.pop %v1735
      %v1737 = vmul.f32 %v1731, 1.442695
      %v1738 = vpow.pop %v1737
      %v1739 = vmul.f32 %v1732, 1.442695
      %v1740 = vpow.pop %v1739
      %v1741 = vsel %vm1094, %v1734, 0.0
      %1742 = vadd.xlane.f32.xlu0 %v1741
      %v1743 = vpop.xlane.xlu0 %1742
      %v1744 = vsel %vm1094, %v1736, 0.0
      %1745 = vadd.xlane.f32.xlu0 %v1744
      %v1746 = vpop.xlane.xlu0 %1745
      %v1747 = vsel %vm1094, %v1738, 0.0
      %1748 = vadd.xlane.f32.xlu0 %v1747
      %v1749 = vpop.xlane.xlu0 %1748
      %v1750 = vsel %vm1094, %v1740, 0.0
      %1751 = vadd.xlane.f32.xlu0 %v1750
      %v1752 = vpop.xlane.xlu0 %1751
      %v1753 = vrcp.pop %v1743
      %v1754 = vrcp.pop %v1746
      %v1755 = vrcp.pop %v1749
      %v1756 = vrcp.pop %v1752
      %v1757 = vmul.f32 %v1734, %v1753
      %v1758 = vmul.f32 %v1736, %v1754
      %v1759 = vmul.f32 %v1738, %v1755
      %v1760 = vmul.f32 %v1740, %v1756
      %v1761 = vpack.c.bf16 %v1758, %v1757
      %v1762 = vpack.c.bf16 %v1760, %v1759
      %1763 = vrot.lane.b32.xlu0 %v997, 64
      %v1764 = vpop.permute.xlu0 %1763
      %v1767 = vsel %vm1094, %v1761, 0
      %1769 = vmatprep.subr.bf16.mxu0 0
      %1770 = vmatpush1.bf16.msra.mxu0 %v1764
      %1771 = vmatprep.subr.bf16.mxu0 0
      %1772 = vmatpush1.bf16.msra.mxu0 0
      %1773 = vmatprep.subr.bf16.mxu0 0
      %1774 = vmatpush1.bf16.msra.mxu0 0
      %1775 = vmatprep.subr.bf16.mxu0 0
      %1776 = vmatpush1.bf16.msra.mxu0 0
      %1777 = vmatprep.subr.bf16.mxu0 0
      %1778 = vmatpush1.bf16.msra.mxu0 0
      %1779 = vmatprep.subr.bf16.mxu0 0
      %1780 = vmatpush1.bf16.msra.mxu0 0
      %1781 = vmatprep.subr.bf16.mxu0 0
      %1782 = vmatpush1.bf16.msra.mxu0 0
      %1783 = vmatprep.subr.bf16.mxu0 0
      %1784 = vmatpush1.bf16.msra.mxu0 0
      %1785 = vmatprep.subr.bf16.mxu0 0
      %1786 = vmatpush1.bf16.msra.mxu0 0
      %1787 = vmatprep.subr.bf16.mxu0 0
      %1788 = vmatpush1.bf16.msra.mxu0 0
      %1789 = vmatprep.subr.bf16.mxu0 0
      %1790 = vmatpush1.bf16.msra.mxu0 0
      %1791 = vmatprep.subr.bf16.mxu0 0
      %1792 = vmatpush1.bf16.msra.mxu0 0
      %1793 = vmatprep.subr.bf16.mxu0 0
      %1794 = vmatpush1.bf16.msra.mxu0 0
      %1795 = vmatprep.subr.bf16.mxu0 0
      %1796 = vmatpush1.bf16.msra.mxu0 0
      %1797 = vmatprep.subr.bf16.mxu0 0
      %1798 = vmatpush1.bf16.msra.mxu0 0
      %1799 = vmatprep.subr.bf16.mxu0 0
      %1800 = vmatpush1.bf16.msra.mxu0 0
      %1801 = vmatprep.mubr.bf16.mxu0 0
      %1802 = vmatmul.mubr.bf16.gmra.mrb[0].mxu0 %v1767
      %v1803 = vpop.f32.mrb[0].mxu0
      %v1804 = vadd.f32 0.0, %v1803
      %v1805 = vpop.f32.mrb[0].mxu0
      %v1806 = vpop.f32.mrb[0].mxu0
      %v1807 = vadd.f32 0.0, %v1806
      %v1808 = vpop.f32.mrb[0].mxu0
      %1809 = vdwg.mxu0
      %1810 = vrot.lane.b32.xlu0 %v998, 64
      %v1811 = vpop.permute.xlu0 %1810
      %v1814 = vsel %vm1094, %v1762, 0
      %1816 = vmatprep.subr.bf16.mxu0 0
      %1817 = vmatpush1.bf16.msra.mxu0 %v1811
      %1818 = vmatprep.subr.bf16.mxu0 0
      %1819 = vmatpush1.bf16.msra.mxu0 0
      %1820 = vmatprep.subr.bf16.mxu0 0
      %1821 = vmatpush1.bf16.msra.mxu0 0
      %1822 = vmatprep.subr.bf16.mxu0 0
      %1823 = vmatpush1.bf16.msra.mxu0 0
      %1824 = vmatprep.subr.bf16.mxu0 0
      %1825 = vmatpush1.bf16.msra.mxu0 0
      %1826 = vmatprep.subr.bf16.mxu0 0
      %1827 = vmatpush1.bf16.msra.mxu0 0
      %1828 = vmatprep.subr.bf16.mxu0 0
      %1829 = vmatpush1.bf16.msra.mxu0 0
      %1830 = vmatprep.subr.bf16.mxu0 0
      %1831 = vmatpush1.bf16.msra.mxu0 0
      %1832 = vmatprep.subr.bf16.mxu0 0
      %1833 = vmatpush1.bf16.msra.mxu0 0
      %1834 = vmatprep.subr.bf16.mxu0 0
      %1835 = vmatpush1.bf16.msra.mxu0 0
      %1836 = vmatprep.subr.bf16.mxu0 0
      %1837 = vmatpush1.bf16.msra.mxu0 0
      %1838 = vmatprep.subr.bf16.mxu0 0
      %1839 = vmatpush1.bf16.msra.mxu0 0
      %1840 = vmatprep.subr.bf16.mxu0 0
      %1841 = vmatpush1.bf16.msra.mxu0 0
      %1842 = vmatprep.subr.bf16.mxu0 0
      %1843 = vmatpush1.bf16.msra.mxu0 0
      %1844 = vmatprep.subr.bf16.mxu0 0
      %1845 = vmatpush1.bf16.msra.mxu0 0
      %1846 = vmatprep.subr.bf16.mxu0 0
      %1847 = vmatpush1.bf16.msra.mxu0 0
      %1848 = vmatprep.mubr.bf16.mxu0 0
      %1849 = vmatmul.mubr.bf16.gmra.mrb[0].mxu0 %v1814
      %v1850 = vpop.f32.mrb[0].mxu0
      %v1851 = vadd.f32 0.0, %v1850
      %v1852 = vpop.f32.mrb[0].mxu0
      %v1853 = vpop.f32.mrb[0].mxu0
      %v1854 = vadd.f32 0.0, %v1853
      %v1855 = vpop.f32.mrb[0].mxu0
      %1856 = vdwg.mxu0
      %v1857 = vpack.c.bf16 %v1807, %v1804
      %v1858 = vpack.c.bf16 %v1854, %v1851
      %v1863 = vunpack.c.l.b16 %v981
      %v1864 = vunpack.c.l.b16 %v982
      %v1865 = vunpack.c.l.b16 %v983
      %v1866 = vunpack.c.l.b16 %v984
      %v1867 = vpack.c.b16 %v1864, %v1863
      %v1868 = vpack.c.b16 %v1866, %v1865
      %v1872 = vsel %vm999, %v1857, 0
      %v1875 = vsel %vm999, %v1858, 0
      %1877 = vmatprep.subr.bf16.mxu0 0
      %1878 = vmatpush1.bf16.msra.mxu0 %v1867
      %1879 = vmatprep.subr.bf16.mxu0 0
      %1880 = vmatpush1.bf16.msra.mxu0 %v1868
      %1881 = vmatprep.subr.bf16.mxu0 0
      %1882 = vmatpush1.bf16.msra.mxu0 0
      %1883 = vmatprep.subr.bf16.mxu0 0
      %1884 = vmatpush1.bf16.msra.mxu0 0
      %1885 = vmatprep.subr.bf16.mxu0 0
      %1886 = vmatpush1.bf16.msra.mxu0 0
      %1887 = vmatprep.subr.bf16.mxu0 0
      %1888 = vmatpush1.bf16.msra.mxu0 0
      %1889 = vmatprep.subr.bf16.mxu0 0
      %1890 = vmatpush1.bf16.msra.mxu0 0
      %1891 = vmatprep.subr.bf16.mxu0 0
      %1892 = vmatpush1.bf16.msra.mxu0 0
      %1893 = vmatprep.subr.bf16.mxu0 0
      %1894 = vmatpush1.bf16.msra.mxu0 0
      %1895 = vmatprep.subr.bf16.mxu0 0
      %1896 = vmatpush1.bf16.msra.mxu0 0
      %1897 = vmatprep.subr.bf16.mxu0 0
      %1898 = vmatpush1.bf16.msra.mxu0 0
      %1899 = vmatprep.subr.bf16.mxu0 0
      %1900 = vmatpush1.bf16.msra.mxu0 0
      %1901 = vmatprep.subr.bf16.mxu0 0
      %1902 = vmatpush1.bf16.msra.mxu0 0
      %1903 = vmatprep.subr.bf16.mxu0 0
      %1904 = vmatpush1.bf16.msra.mxu0 0
      %1905 = vmatprep.subr.bf16.mxu0 0
      %1906 = vmatpush1.bf16.msra.mxu0 0
      %1907 = vmatprep.subr.bf16.mxu0 0
      %1908 = vmatpush1.bf16.msra.mxu0 0
      %1909 = vmatprep.mubr.bf16.mxu0 0
      %1910 = vmatmul.mubr.bf16.gmra.mrb[0].mxu0 %v1872
      %v1911 = vpop.f32.mrb[0].mxu0
      %v1912 = vadd.f32 0.0, %v1911
      %v1913 = vpop.f32.mrb[0].mxu0
      %v1914 = vpop.f32.mrb[0].mxu0
      %v1915 = vadd.f32 0.0, %v1914
      %v1916 = vpop.f32.mrb[0].mxu0
      %1917 = vmatprep.mubr.bf16.mxu0 0
      %1918 = vmatmul.mubr.bf16.gmra.mrb[0].mxu0 %v1875
      %v1919 = vpop.f32.mrb[0].mxu0
      %v1920 = vadd.f32 0.0, %v1919
      %v1921 = vpop.f32.mrb[0].mxu0
      %v1922 = vpop.f32.mrb[0].mxu0
      %v1923 = vadd.f32 0.0, %v1922
      %v1924 = vpop.f32.mrb[0].mxu0
      %1925 = vdwg.mxu0
      %v1926 = vadd.f32 %v1601, %v1912
      %v1927 = vadd.f32 %v1604, %v1915
      %v1928 = vadd.f32 %v1609, %v1920
      %v1929 = vadd.f32 %v1612, %v1923
      %1930 = vrot.lane.b32.xlu0 %v993, 32
      %v1931 = vpop.permute.xlu0 %1930
      %1932 = vrot.lane.b32.xlu0 %v995, 32
      %v1933 = vpop.permute.xlu0 %1932
      %v1935 = vsel %vm999, %v1931, 0
      %v1938 = vsel %vm999, %v1933, 0
      %1940 = vmatprep.subr.bf16.mxu0 0
      %1941 = vmatpush1.bf16.xpose.msra.mxu0 %v1938
      %1942 = vmatprep.subr.bf16.mxu0 0
      %1943 = vmatpush1.bf16.xpose.msra.mxu0 0
      %1944 = vmatprep.subr.bf16.mxu0 0
      %1945 = vmatpush1.bf16.xpose.msra.mxu0 0
      %1946 = vmatprep.subr.bf16.mxu0 0
      %1947 = vmatpush1.bf16.xpose.msra.mxu0 0
      %1948 = vmatprep.subr.bf16.mxu0 0
      %1949 = vmatpush1.bf16.xpose.msra.mxu0 0
      %1950 = vmatprep.subr.bf16.mxu0 0
      %1951 = vmatpush1.bf16.xpose.msra.mxu0 0
      %1952 = vmatprep.subr.bf16.mxu0 0
      %1953 = vmatpush1.bf16.xpose.msra.mxu0 0
      %1954 = vmatprep.subr.bf16.mxu0 0
      %1955 = vmatpush1.bf16.xpose.msra.mxu0 0
      %1956 = vmatprep.subr.bf16.mxu0 0
      %1957 = vmatpush1.bf16.xpose.msra.mxu0 0
      %1958 = vmatprep.subr.bf16.mxu0 0
      %1959 = vmatpush1.bf16.xpose.msra.mxu0 0
      %1960 = vmatprep.subr.bf16.mxu0 0
      %1961 = vmatpush1.bf16.xpose.msra.mxu0 0
      %1962 = vmatprep.subr.bf16.mxu0 0
      %1963 = vmatpush1.bf16.xpose.msra.mxu0 0
      %1964 = vmatprep.subr.bf16.mxu0 0
      %1965 = vmatpush1.bf16.xpose.msra.mxu0 0
      %1966 = vmatprep.subr.bf16.mxu0 0
      %1967 = vmatpush1.bf16.xpose.msra.mxu0 0
      %1968 = vmatprep.subr.bf16.mxu0 0
      %1969 = vmatpush1.bf16.xpose.msra.mxu0 0
      %1970 = vmatprep.subr.bf16.mxu0 0
      %1971 = vmatpush1.bf16.xpose.msra.mxu0 0
      %1972 = vmatprep.mubr.bf16.mxu0 0
      %1973 = vmatmul.mubr.bf16.gmra.mrb[0].mxu0 %v1935
      %v1974 = vpop.f32.mrb[0].mxu0
      %v1975 = vadd.f32 0.0, %v1974
      %v1976 = vpop.f32.mrb[0].mxu0
      %v1977 = vpop.f32.mrb[0].mxu0
      %v1978 = vadd.f32 0.0, %v1977
      %v1979 = vpop.f32.mrb[0].mxu0
      %1980 = vdwg.mxu0
      %1981 = vrot.lane.b32.xlu0 %v994, 32
      %v1982 = vpop.permute.xlu0 %1981
      %1983 = vrot.lane.b32.xlu0 %v996, 32
      %v1984 = vpop.permute.xlu0 %1983
      %v1986 = vsel %vm999, %v1982, 0
      %v1989 = vsel %vm999, %v1984, 0
      %1991 = vmatprep.subr.bf16.mxu0 0
      %1992 = vmatpush1.bf16.xpose.msra.mxu0 %v1989
      %1993 = vmatprep.subr.bf16.mxu0 0
      %1994 = vmatpush1.bf16.xpose.msra.mxu0 0
      %1995 = vmatprep.subr.bf16.mxu0 0
      %1996 = vmatpush1.bf16.xpose.msra.mxu0 0
      %1997 = vmatprep.subr.bf16.mxu0 0
      %1998 = vmatpush1.bf16.xpose.msra.mxu0 0
      %1999 = vmatprep.subr.bf16.mxu0 0
      %2000 = vmatpush1.bf16.xpose.msra.mxu0 0
      %2001 = vmatprep.subr.bf16.mxu0 0
      %2002 = vmatpush1.bf16.xpose.msra.mxu0 0
      %2003 = vmatprep.subr.bf16.mxu0 0
      %2004 = vmatpush1.bf16.xpose.msra.mxu0 0
      %2005 = vmatprep.subr.bf16.mxu0 0
      %2006 = vmatpush1.bf16.xpose.msra.mxu0 0
      %2007 = vmatprep.subr.bf16.mxu0 0
      %2008 = vmatpush1.bf16.xpose.msra.mxu0 0
      %2009 = vmatprep.subr.bf16.mxu0 0
      %2010 = vmatpush1.bf16.xpose.msra.mxu0 0
      %2011 = vmatprep.subr.bf16.mxu0 0
      %2012 = vmatpush1.bf16.xpose.msra.mxu0 0
      %2013 = vmatprep.subr.bf16.mxu0 0
      %2014 = vmatpush1.bf16.xpose.msra.mxu0 0
      %2015 = vmatprep.subr.bf16.mxu0 0
      %2016 = vmatpush1.bf16.xpose.msra.mxu0 0
      %2017 = vmatprep.subr.bf16.mxu0 0
      %2018 = vmatpush1.bf16.xpose.msra.mxu0 0
      %2019 = vmatprep.subr.bf16.mxu0 0
      %2020 = vmatpush1.bf16.xpose.msra.mxu0 0
      %2021 = vmatprep.subr.bf16.mxu0 0
      %2022 = vmatpush1.bf16.xpose.msra.mxu0 0
      %2023 = vmatprep.mubr.bf16.mxu0 0
      %2024 = vmatmul.mubr.bf16.gmra.mrb[0].mxu0 %v1986
      %v2025 = vpop.f32.mrb[0].mxu0
      %v2026 = vadd.f32 0.0, %v2025
      %v2027 = vpop.f32.mrb[0].mxu0
      %v2028 = vpop.f32.mrb[0].mxu0
      %v2029 = vadd.f32 0.0, %v2028
      %v2030 = vpop.f32.mrb[0].mxu0
      %2031 = vdwg.mxu0
      %v2032 = vsel %vm1094, %v1975, -inf
      %2033 = vmax.xlane.f32.xlu0 %v2032
      %v2034 = vpop.xlane.xlu0 %2033
      %v2035 = vsel %vm1094, %v1978, -inf
      %2036 = vmax.xlane.f32.xlu0 %v2035
      %v2037 = vpop.xlane.xlu0 %2036
      %v2038 = vsel %vm1094, %v2026, -inf
      %2039 = vmax.xlane.f32.xlu0 %v2038
      %v2040 = vpop.xlane.xlu0 %2039
      %v2041 = vsel %vm1094, %v2029, -inf
      %2042 = vmax.xlane.f32.xlu0 %v2041
      %v2043 = vpop.xlane.xlu0 %2042
      %v2044 = vsub.f32 %v1975, %v2034
      %v2045 = vsub.f32 %v1978, %v2037
      %v2046 = vsub.f32 %v2026, %v2040
      %v2047 = vsub.f32 %v2029, %v2043
      %v2048 = vmul.f32 %v2044, 1.442695
      %v2049 = vpow.pop %v2048
      %v2050 = vmul.f32 %v2045, 1.442695
      %v2051 = vpow.pop %v2050
      %v2052 = vmul.f32 %v2046, 1.442695
      %v2053 = vpow.pop %v2052
      %v2054 = vmul.f32 %v2047, 1.442695
      %v2055 = vpow.pop %v2054
      %v2056 = vsel %vm1094, %v2049, 0.0
      %2057 = vadd.xlane.f32.xlu0 %v2056
      %v2058 = vpop.xlane.xlu0 %2057
      %v2059 = vsel %vm1094, %v2051, 0.0
      %2060 = vadd.xlane.f32.xlu0 %v2059
      %v2061 = vpop.xlane.xlu0 %2060
      %v2062 = vsel %vm1094, %v2053, 0.0
      %2063 = vadd.xlane.f32.xlu0 %v2062
      %v2064 = vpop.xlane.xlu0 %2063
      %v2065 = vsel %vm1094, %v2055, 0.0
      %2066 = vadd.xlane.f32.xlu0 %v2065
      %v2067 = vpop.xlane.xlu0 %2066
      %v2068 = vrcp.pop %v2058
      %v2069 = vrcp.pop %v2061
      %v2070 = vrcp.pop %v2064
      %v2071 = vrcp.pop %v2067
      %v2072 = vmul.f32 %v2049, %v2068
      %v2073 = vmul.f32 %v2051, %v2069
      %v2074 = vmul.f32 %v2053, %v2070
      %v2075 = vmul.f32 %v2055, %v2071
      %v2076 = vpack.c.bf16 %v2073, %v2072
      %v2077 = vpack.c.bf16 %v2075, %v2074
      %2078 = vrot.lane.b32.xlu0 %v997, 32
      %v2079 = vpop.permute.xlu0 %2078
      %v2082 = vsel %vm1094, %v2076, 0
      %2084 = vmatprep.subr.bf16.mxu0 0
      %2085 = vmatpush1.bf16.msra.mxu0 %v2079
      %2086 = vmatprep.subr.bf16.mxu0 0
      %2087 = vmatpush1.bf16.msra.mxu0 0
      %2088 = vmatprep.subr.bf16.mxu0 0
      %2089 = vmatpush1.bf16.msra.mxu0 0
      %2090 = vmatprep.subr.bf16.mxu0 0
      %2091 = vmatpush1.bf16.msra.mxu0 0
      %2092 = vmatprep.subr.bf16.mxu0 0
      %2093 = vmatpush1.bf16.msra.mxu0 0
      %2094 = vmatprep.subr.bf16.mxu0 0
      %2095 = vmatpush1.bf16.msra.mxu0 0
      %2096 = vmatprep.subr.bf16.mxu0 0
      %2097 = vmatpush1.bf16.msra.mxu0 0
      %2098 = vmatprep.subr.bf16.mxu0 0
      %2099 = vmatpush1.bf16.msra.mxu0 0
      %2100 = vmatprep.subr.bf16.mxu0 0
      %2101 = vmatpush1.bf16.msra.mxu0 0
      %2102 = vmatprep.subr.bf16.mxu0 0
      %2103 = vmatpush1.bf16.msra.mxu0 0
      %2104 = vmatprep.subr.bf16.mxu0 0
      %2105 = vmatpush1.bf16.msra.mxu0 0
      %2106 = vmatprep.subr.bf16.mxu0 0
      %2107 = vmatpush1.bf16.msra.mxu0 0
      %2108 = vmatprep.subr.bf16.mxu0 0
      %2109 = vmatpush1.bf16.msra.mxu0 0
      %2110 = vmatprep.subr.bf16.mxu0 0
      %2111 = vmatpush1.bf16.msra.mxu0 0
      %2112 = vmatprep.subr.bf16.mxu0 0
      %2113 = vmatpush1.bf16.msra.mxu0 0
      %2114 = vmatprep.subr.bf16.mxu0 0
      %2115 = vmatpush1.bf16.msra.mxu0 0
      %2116 = vmatprep.mubr.bf16.mxu0 0
      %2117 = vmatmul.mubr.bf16.gmra.mrb[0].mxu0 %v2082
      %v2118 = vpop.f32.mrb[0].mxu0
      %v2119 = vadd.f32 0.0, %v2118
      %v2120 = vpop.f32.mrb[0].mxu0
      %v2121 = vpop.f32.mrb[0].mxu0
      %v2122 = vadd.f32 0.0, %v2121
      %v2123 = vpop.f32.mrb[0].mxu0
      %2124 = vdwg.mxu0
      %2125 = vrot.lane.b32.xlu0 %v998, 32
      %v2126 = vpop.permute.xlu0 %2125
      %v2129 = vsel %vm1094, %v2077, 0
      %2131 = vmatprep.subr.bf16.mxu0 0
      %2132 = vmatpush1.bf16.msra.mxu0 %v2126
      %2133 = vmatprep.subr.bf16.mxu0 0
      %2134 = vmatpush1.bf16.msra.mxu0 0
      %2135 = vmatprep.subr.bf16.mxu0 0
      %2136 = vmatpush1.bf16.msra.mxu0 0
      %2137 = vmatprep.subr.bf16.mxu0 0
      %2138 = vmatpush1.bf16.msra.mxu0 0
      %2139 = vmatprep.subr.bf16.mxu0 0
      %2140 = vmatpush1.bf16.msra.mxu0 0
      %2141 = vmatprep.subr.bf16.mxu0 0
      %2142 = vmatpush1.bf16.msra.mxu0 0
      %2143 = vmatprep.subr.bf16.mxu0 0
      %2144 = vmatpush1.bf16.msra.mxu0 0
      %2145 = vmatprep.subr.bf16.mxu0 0
      %2146 = vmatpush1.bf16.msra.mxu0 0
      %2147 = vmatprep.subr.bf16.mxu0 0
      %2148 = vmatpush1.bf16.msra.mxu0 0
      %2149 = vmatprep.subr.bf16.mxu0 0
      %2150 = vmatpush1.bf16.msra.mxu0 0
      %2151 = vmatprep.subr.bf16.mxu0 0
      %2152 = vmatpush1.bf16.msra.mxu0 0
      %2153 = vmatprep.subr.bf16.mxu0 0
      %2154 = vmatpush1.bf16.msra.mxu0 0
      %2155 = vmatprep.subr.bf16.mxu0 0
      %2156 = vmatpush1.bf16.msra.mxu0 0
      %2157 = vmatprep.subr.bf16.mxu0 0
      %2158 = vmatpush1.bf16.msra.mxu0 0
      %2159 = vmatprep.subr.bf16.mxu0 0
      %2160 = vmatpush1.bf16.msra.mxu0 0
      %2161 = vmatprep.subr.bf16.mxu0 0
      %2162 = vmatpush1.bf16.msra.mxu0 0
      %2163 = vmatprep.mubr.bf16.mxu0 0
      %2164 = vmatmul.mubr.bf16.gmra.mrb[0].mxu0 %v2129
      %v2165 = vpop.f32.mrb[0].mxu0
      %v2166 = vadd.f32 0.0, %v2165
      %v2167 = vpop.f32.mrb[0].mxu0
      %v2168 = vpop.f32.mrb[0].mxu0
      %v2169 = vadd.f32 0.0, %v2168
      %v2170 = vpop.f32.mrb[0].mxu0
      %2171 = vdwg.mxu0
      %v2172 = vpack.c.bf16 %v2122, %v2119
      %v2173 = vpack.c.bf16 %v2169, %v2166
      %v2178 = vunpack.c.l.b16 %v985
      %v2179 = vunpack.c.l.b16 %v986
      %v2180 = vunpack.c.l.b16 %v987
      %v2181 = vunpack.c.l.b16 %v988
      %v2182 = vpack.c.b16 %v2179, %v2178
      %v2183 = vpack.c.b16 %v2181, %v2180
      %v2187 = vsel %vm999, %v2172, 0
      %v2190 = vsel %vm999, %v2173, 0
      %2192 = vmatprep.subr.bf16.mxu0 0
      %2193 = vmatpush1.bf16.msra.mxu0 %v2182
      %2194 = vmatprep.subr.bf16.mxu0 0
      %2195 = vmatpush1.bf16.msra.mxu0 %v2183
      %2196 = vmatprep.subr.bf16.mxu0 0
      %2197 = vmatpush1.bf16.msra.mxu0 0
      %2198 = vmatprep.subr.bf16.mxu0 0
      %2199 = vmatpush1.bf16.msra.mxu0 0
      %2200 = vmatprep.subr.bf16.mxu0 0
      %2201 = vmatpush1.bf16.msra.mxu0 0
      %2202 = vmatprep.subr.bf16.mxu0 0
      %2203 = vmatpush1.bf16.msra.mxu0 0
      %2204 = vmatprep.subr.bf16.mxu0 0
      %2205 = vmatpush1.bf16.msra.mxu0 0
      %2206 = vmatprep.subr.bf16.mxu0 0
      %2207 = vmatpush1.bf16.msra.mxu0 0
      %2208 = vmatprep.subr.bf16.mxu0 0
      %2209 = vmatpush1.bf16.msra.mxu0 0
      %2210 = vmatprep.subr.bf16.mxu0 0
      %2211 = vmatpush1.bf16.msra.mxu0 0
      %2212 = vmatprep.subr.bf16.mxu0 0
      %2213 = vmatpush1.bf16.msra.mxu0 0
      %2214 = vmatprep.subr.bf16.mxu0 0
      %2215 = vmatpush1.bf16.msra.mxu0 0
      %2216 = vmatprep.subr.bf16.mxu0 0
      %2217 = vmatpush1.bf16.msra.mxu0 0
      %2218 = vmatprep.subr.bf16.mxu0 0
      %2219 = vmatpush1.bf16.msra.mxu0 0
      %2220 = vmatprep.subr.bf16.mxu0 0
      %2221 = vmatpush1.bf16.msra.mxu0 0
      %2222 = vmatprep.subr.bf16.mxu0 0
      %2223 = vmatpush1.bf16.msra.mxu0 0
      %2224 = vmatprep.mubr.bf16.mxu0 0
      %2225 = vmatmul.mubr.bf16.gmra.mrb[0].mxu0 %v2187
      %v2226 = vpop.f32.mrb[0].mxu0
      %v2227 = vadd.f32 0.0, %v2226
      %v2228 = vpop.f32.mrb[0].mxu0
      %v2229 = vpop.f32.mrb[0].mxu0
      %v2230 = vadd.f32 0.0, %v2229
      %v2231 = vpop.f32.mrb[0].mxu0
      %2232 = vmatprep.mubr.bf16.mxu0 0
      %2233 = vmatmul.mubr.bf16.gmra.mrb[0].mxu0 %v2190
      %v2234 = vpop.f32.mrb[0].mxu0
      %v2235 = vadd.f32 0.0, %v2234
      %v2236 = vpop.f32.mrb[0].mxu0
      %v2237 = vpop.f32.mrb[0].mxu0
      %v2238 = vadd.f32 0.0, %v2237
      %v2239 = vpop.f32.mrb[0].mxu0
      %2240 = vdwg.mxu0
      %v2241 = vadd.f32 %v1926, %v2227
      %v2242 = vadd.f32 %v1927, %v2230
      %v2243 = vadd.f32 %v1928, %v2235
      %v2244 = vadd.f32 %v1929, %v2238
      %v2245 = vadd.f32 %v621, %v2241
      %v2246 = vadd.f32 %v622, %v2242
      %v2247 = vadd.f32 %v623, %v2243
      %v2248 = vadd.f32 %v624, %v2244
      %v2249 = vld [vmem:[%s580] sm:$0x1]
      %v2251 = vlaneseq
      %v2252 = vshrl.u32 %v2251, 7
      %v2253 = vsub.s32 0, %v2252
      %v2254 = vrot.slane %v2249, %v2253
      %v2256 = vadd.f32 %v2245, %v2254
      %v2257 = vadd.f32 %v2246, %v2254
      %v2258 = vadd.f32 %v2247, %v2254
      %v2259 = vadd.f32 %v2248, %v2254
      %v2260 = vld [vmem:[%s583] sm:$0x1]
      %v2261 = vld [vmem:[%s586] sm:$0x1]
      %2262 = vadd.xlane.f32.xlu0 %v2256
      %v2263 = vpop.xlane.xlu0 %2262
      %2264 = vadd.xlane.f32.xlu0 %v2257
      %v2265 = vpop.xlane.xlu0 %2264
      %2266 = vadd.xlane.f32.xlu0 %v2258
      %v2267 = vpop.xlane.xlu0 %2266
      %2268 = vadd.xlane.f32.xlu0 %v2259
      %v2269 = vpop.xlane.xlu0 %2268
      %v2270 = vmul.f32 %v2263, %v635
      %v2271 = vmul.f32 %v2265, %v635
      %v2272 = vmul.f32 %v2267, %v635
      %v2273 = vmul.f32 %v2269, %v635
      %v2274 = vsub.f32 %v2256, %v2270
      %v2275 = vsub.f32 %v2257, %v2271
      %v2276 = vsub.f32 %v2258, %v2272
      %v2277 = vsub.f32 %v2259, %v2273
      %v2278 = vmul.f32 %v2274, %v2274
      %v2279 = vmul.f32 %v2275, %v2275
      %v2280 = vmul.f32 %v2276, %v2276
      %v2281 = vmul.f32 %v2277, %v2277
      %2282 = vadd.xlane.f32.xlu0 %v2278
      %v2283 = vpop.xlane.xlu0 %2282
      %2284 = vadd.xlane.f32.xlu0 %v2279
      %v2285 = vpop.xlane.xlu0 %2284
      %2286 = vadd.xlane.f32.xlu0 %v2280
      %v2287 = vpop.xlane.xlu0 %2286
      %2288 = vadd.xlane.f32.xlu0 %v2281
      %v2289 = vpop.xlane.xlu0 %2288
      %v2290 = vmul.f32 %v2283, %v635
      %v2291 = vmul.f32 %v2285, %v635
      %v2292 = vmul.f32 %v2287, %v635
      %v2293 = vmul.f32 %v2289, %v635
      %v2294 = vadd.f32 %v2290, 1e-12
      %v2295 = vadd.f32 %v2291, 1e-12
      %v2296 = vadd.f32 %v2292, 1e-12
      %v2297 = vadd.f32 %v2293, 1e-12
      %v2298 = vrsqrt.pop %v2294
      %v2299 = vrsqrt.pop %v2295
      %v2300 = vrsqrt.pop %v2296
      %v2301 = vrsqrt.pop %v2297
      %v2302 = vmul.f32 %v2274, %v2298
      %v2303 = vmul.f32 %v2275, %v2299
      %v2304 = vmul.f32 %v2276, %v2300
      %v2305 = vmul.f32 %v2277, %v2301
      %v2307 = vlaneseq
      %v2308 = vshrl.u32 %v2307, 7
      %v2309 = vsub.s32 0, %v2308
      %v2310 = vrot.slane %v2260, %v2309
      %v2312 = vmul.f32 %v2302, %v2310
      %v2313 = vmul.f32 %v2303, %v2310
      %v2314 = vmul.f32 %v2304, %v2310
      %v2315 = vmul.f32 %v2305, %v2310
      %v2317 = vlaneseq
      %v2318 = vshrl.u32 %v2317, 7
      %v2319 = vsub.s32 0, %v2318
      %v2320 = vrot.slane %v2261, %v2319
      %v2322 = vadd.f32 %v2312, %v2320
      %v2323 = vadd.f32 %v2313, %v2320
      %v2324 = vadd.f32 %v2314, %v2320
      %v2325 = vadd.f32 %v2315, %v2320
      %v2326 = vpack.c.bf16 %v2323, %v2322
      %v2327 = vpack.c.bf16 %v2325, %v2324
      %v2328 = vld [vmem:[%s591] sm:$0xff]
      %v2329 = vld [vmem:[%s591 + $0x8] sm:$0xff]
      %v2330 = vld [vmem:[%s591 + $0x10] sm:$0xff]
      %v2331 = vld [vmem:[%s591 + $0x18] sm:$0xff]
      %v2332 = vld [vmem:[%s591 + $0x20] sm:$0xff]
      %v2333 = vld [vmem:[%s591 + $0x28] sm:$0xff]
      %v2334 = vld [vmem:[%s591 + $0x30] sm:$0xff]
      %v2335 = vld [vmem:[%s591 + $0x38] sm:$0xff]
      %v2336 = vld [vmem:[%s591 + $0x40] sm:$0xff]
      %v2337 = vld [vmem:[%s591 + $0x48] sm:$0xff]
      %v2338 = vld [vmem:[%s591 + $0x50] sm:$0xff]
      %v2339 = vld [vmem:[%s591 + $0x58] sm:$0xff]
      %v2340 = vld [vmem:[%s591 + $0x60] sm:$0xff]
      %v2341 = vld [vmem:[%s591 + $0x68] sm:$0xff]
      %v2342 = vld [vmem:[%s591 + $0x70] sm:$0xff]
      %v2343 = vld [vmem:[%s591 + $0x78] sm:$0xff]
      %v2344 = vld [vmem:[%s595] sm:$0x3]
      %v2346 = vlaneseq
      %v2347 = vshrl.u32 %v2346, 7
      %v2348 = vsub.s32 0, %v2347
      %v2349 = vrot.slane %v2344, %v2348
      %v2350 = vlaneseq
      %v2351 = vshrl.u32 %v2350, 7
      %v2352 = vsub.s32 1, %v2351
      %v2353 = vrot.slane %v2344, %v2352
      %v2372 = vunpack.c.l.b16 %v2328
      %v2373 = vunpack.c.h.b16 %v2328
      %v2374 = vunpack.c.l.b16 %v2329
      %v2375 = vunpack.c.h.b16 %v2329
      %v2376 = vunpack.c.l.b16 %v2330
      %v2377 = vunpack.c.h.b16 %v2330
      %v2378 = vunpack.c.l.b16 %v2331
      %v2379 = vunpack.c.h.b16 %v2331
      %v2380 = vunpack.c.l.b16 %v2332
      %v2381 = vunpack.c.h.b16 %v2332
      %v2382 = vunpack.c.l.b16 %v2333
      %v2383 = vunpack.c.h.b16 %v2333
      %v2384 = vunpack.c.l.b16 %v2334
      %v2385 = vunpack.c.h.b16 %v2334
      %v2386 = vunpack.c.l.b16 %v2335
      %v2387 = vunpack.c.h.b16 %v2335
      %v2388 = vunpack.c.l.b16 %v2336
      %v2389 = vunpack.c.h.b16 %v2336
      %v2390 = vunpack.c.l.b16 %v2337
      %v2391 = vunpack.c.h.b16 %v2337
      %v2392 = vunpack.c.l.b16 %v2338
      %v2393 = vunpack.c.h.b16 %v2338
      %v2394 = vunpack.c.l.b16 %v2339
      %v2395 = vunpack.c.h.b16 %v2339
      %v2396 = vunpack.c.l.b16 %v2340
      %v2397 = vunpack.c.h.b16 %v2340
      %v2398 = vunpack.c.l.b16 %v2341
      %v2399 = vunpack.c.h.b16 %v2341
      %v2400 = vunpack.c.l.b16 %v2342
      %v2401 = vunpack.c.h.b16 %v2342
      %v2402 = vunpack.c.l.b16 %v2343
      %v2403 = vunpack.c.h.b16 %v2343
      %v2404 = vpack.c.b16 %v2374, %v2372
      %v2405 = vpack.c.b16 %v2375, %v2373
      %v2406 = vpack.c.b16 %v2378, %v2376
      %v2407 = vpack.c.b16 %v2379, %v2377
      %v2408 = vpack.c.b16 %v2382, %v2380
      %v2409 = vpack.c.b16 %v2383, %v2381
      %v2410 = vpack.c.b16 %v2386, %v2384
      %v2411 = vpack.c.b16 %v2387, %v2385
      %v2412 = vpack.c.b16 %v2390, %v2388
      %v2413 = vpack.c.b16 %v2391, %v2389
      %v2414 = vpack.c.b16 %v2394, %v2392
      %v2415 = vpack.c.b16 %v2395, %v2393
      %v2416 = vpack.c.b16 %v2398, %v2396
      %v2417 = vpack.c.b16 %v2399, %v2397
      %v2418 = vpack.c.b16 %v2402, %v2400
      %v2419 = vpack.c.b16 %v2403, %v2401
      %2436 = vmatprep.subr.bf16.mxu0 %v2405
      %2437 = vmatpush1.bf16.msra.mxu0 %v2404
      %2438 = vmatprep.subr.bf16.mxu0 %v2407
      %2439 = vmatpush1.bf16.msra.mxu0 %v2406
      %2440 = vmatprep.subr.bf16.mxu0 %v2409
      %2441 = vmatpush1.bf16.msra.mxu0 %v2408
      %2442 = vmatprep.subr.bf16.mxu0 %v2411
      %2443 = vmatpush1.bf16.msra.mxu0 %v2410
      %2444 = vmatprep.subr.bf16.mxu0 %v2413
      %2445 = vmatpush1.bf16.msra.mxu0 %v2412
      %2446 = vmatprep.subr.bf16.mxu0 %v2415
      %2447 = vmatpush1.bf16.msra.mxu0 %v2414
      %2448 = vmatprep.subr.bf16.mxu0 %v2417
      %2449 = vmatpush1.bf16.msra.mxu0 %v2416
      %2450 = vmatprep.subr.bf16.mxu0 %v2419
      %2451 = vmatpush1.bf16.msra.mxu0 %v2418
      %2452 = vmatprep.subr.bf16.mxu0 0
      %2453 = vmatpush1.bf16.msra.mxu0 0
      %2454 = vmatprep.subr.bf16.mxu0 0
      %2455 = vmatpush1.bf16.msra.mxu0 0
      %2456 = vmatprep.subr.bf16.mxu0 0
      %2457 = vmatpush1.bf16.msra.mxu0 0
      %2458 = vmatprep.subr.bf16.mxu0 0
      %2459 = vmatpush1.bf16.msra.mxu0 0
      %2460 = vmatprep.subr.bf16.mxu0 0
      %2461 = vmatpush1.bf16.msra.mxu0 0
      %2462 = vmatprep.subr.bf16.mxu0 0
      %2463 = vmatpush1.bf16.msra.mxu0 0
      %2464 = vmatprep.subr.bf16.mxu0 0
      %2465 = vmatpush1.bf16.msra.mxu0 0
      %2466 = vmatprep.subr.bf16.mxu0 0
      %2467 = vmatpush1.bf16.msra.mxu0 0
      %2468 = vmatprep.mubr.bf16.mxu0 0
      %2469 = vmatmul.mubr.bf16.gmra.mrb[0].mxu0 %v2326
      %v2470 = vpop.f32.mrb[0].mxu0
      %v2471 = vadd.f32 %v2349, %v2470
      %v2472 = vpop.f32.mrb[0].mxu0
      %v2473 = vadd.f32 %v2353, %v2472
      %v2474 = vpop.f32.mrb[0].mxu0
      %v2475 = vadd.f32 %v2349, %v2474
      %v2476 = vpop.f32.mrb[0].mxu0
      %v2477 = vadd.f32 %v2353, %v2476
      %2478 = vmatprep.mubr.bf16.mxu0 0
      %2479 = vmatmul.mubr.bf16.gmra.mrb[0].mxu0 %v2327
      %v2480 = vpop.f32.mrb[0].mxu0
      %v2481 = vadd.f32 %v2349, %v2480
      %v2482 = vpop.f32.mrb[0].mxu0
      %v2483 = vadd.f32 %v2353, %v2482
      %v2484 = vpop.f32.mrb[0].mxu0
      %v2485 = vadd.f32 %v2349, %v2484
      %v2486 = vpop.f32.mrb[0].mxu0
      %v2487 = vadd.f32 %v2353, %v2486
      %2488 = vdwg.mxu0
      %v2489 = vmul.f32 %v2471, %v2471
      %v2490 = vmul.f32 %v2473, %v2473
      %v2491 = vmul.f32 %v2475, %v2475
      %v2492 = vmul.f32 %v2477, %v2477
      %v2493 = vmul.f32 %v2481, %v2481
      %v2494 = vmul.f32 %v2483, %v2483
      %v2495 = vmul.f32 %v2485, %v2485
      %v2496 = vmul.f32 %v2487, %v2487
      %v2497 = vmul.f32 %v2471, %v2489
      %v2498 = vmul.f32 %v2473, %v2490
      %v2499 = vmul.f32 %v2475, %v2491
      %v2500 = vmul.f32 %v2477, %v2492
      %v2501 = vmul.f32 %v2481, %v2493
      %v2502 = vmul.f32 %v2483, %v2494
      %v2503 = vmul.f32 %v2485, %v2495
      %v2504 = vmul.f32 %v2487, %v2496
      %v2505 = vmul.f32 %v2497, 0.044715
      %v2506 = vmul.f32 %v2498, 0.044715
      %v2507 = vmul.f32 %v2499, 0.044715
      %v2508 = vmul.f32 %v2500, 0.044715
      %v2509 = vmul.f32 %v2501, 0.044715
      %v2510 = vmul.f32 %v2502, 0.044715
      %v2511 = vmul.f32 %v2503, 0.044715
      %v2512 = vmul.f32 %v2504, 0.044715
      %v2513 = vadd.f32 %v2471, %v2505
      %v2514 = vadd.f32 %v2473, %v2506
      %v2515 = vadd.f32 %v2475, %v2507
      %v2516 = vadd.f32 %v2477, %v2508
      %v2517 = vadd.f32 %v2481, %v2509
      %v2518 = vadd.f32 %v2483, %v2510
      %v2519 = vadd.f32 %v2485, %v2511
      %v2520 = vadd.f32 %v2487, %v2512
      %v2521 = vmul.f32 %v2513, 0.7978846
      %v2522 = vmul.f32 %v2514, 0.7978846
      %v2523 = vmul.f32 %v2515, 0.7978846
      %v2524 = vmul.f32 %v2516, 0.7978846
      %v2525 = vmul.f32 %v2517, 0.7978846
      %v2526 = vmul.f32 %v2518, 0.7978846
      %v2527 = vmul.f32 %v2519, 0.7978846
      %v2528 = vmul.f32 %v2520, 0.7978846
      %v2529 = vtanh.pop %v2521
      %v2530 = vtanh.pop %v2522
      %v2531 = vtanh.pop %v2523
      %v2532 = vtanh.pop %v2524
      %v2533 = vtanh.pop %v2525
      %v2534 = vtanh.pop %v2526
      %v2535 = vtanh.pop %v2527
      %v2536 = vtanh.pop %v2528
      %v2537 = vadd.f32 %v2529, 1.0
      %v2538 = vadd.f32 %v2530, 1.0
      %v2539 = vadd.f32 %v2531, 1.0
      %v2540 = vadd.f32 %v2532, 1.0
      %v2541 = vadd.f32 %v2533, 1.0
      %v2542 = vadd.f32 %v2534, 1.0
      %v2543 = vadd.f32 %v2535, 1.0
      %v2544 = vadd.f32 %v2536, 1.0
      %v2545 = vmul.f32 %v2537, 0.5
      %v2546 = vmul.f32 %v2538, 0.5
      %v2547 = vmul.f32 %v2539, 0.5
      %v2548 = vmul.f32 %v2540, 0.5
      %v2549 = vmul.f32 %v2541, 0.5
      %v2550 = vmul.f32 %v2542, 0.5
      %v2551 = vmul.f32 %v2543, 0.5
      %v2552 = vmul.f32 %v2544, 0.5
      %v2553 = vmul.f32 %v2471, %v2545
      %v2554 = vmul.f32 %v2473, %v2546
      %v2555 = vmul.f32 %v2475, %v2547
      %v2556 = vmul.f32 %v2477, %v2548
      %v2557 = vmul.f32 %v2481, %v2549
      %v2558 = vmul.f32 %v2483, %v2550
      %v2559 = vmul.f32 %v2485, %v2551
      %v2560 = vmul.f32 %v2487, %v2552
      %v2561 = vpack.c.bf16 %v2555, %v2553
      %v2562 = vpack.c.bf16 %v2556, %v2554
      %v2563 = vpack.c.bf16 %v2559, %v2557
      %v2564 = vpack.c.bf16 %v2560, %v2558
      %v2565 = vld [vmem:[%s600] sm:$0xf]
      %v2566 = vld [vmem:[%s600 + $0x4] sm:$0xf]
      %v2567 = vld [vmem:[%s600 + $0x8] sm:$0xf]
      %v2568 = vld [vmem:[%s600 + $0xc] sm:$0xf]
      %v2569 = vld [vmem:[%s600 + $0x10] sm:$0xf]
      %v2570 = vld [vmem:[%s600 + $0x14] sm:$0xf]
      %v2571 = vld [vmem:[%s600 + $0x18] sm:$0xf]
      %v2572 = vld [vmem:[%s600 + $0x1c] sm:$0xf]
      %v2573 = vld [vmem:[%s600 + $0x20] sm:$0xf]
      %v2574 = vld [vmem:[%s600 + $0x24] sm:$0xf]
      %v2575 = vld [vmem:[%s600 + $0x28] sm:$0xf]
      %v2576 = vld [vmem:[%s600 + $0x2c] sm:$0xf]
      %v2577 = vld [vmem:[%s600 + $0x30] sm:$0xf]
      %v2578 = vld [vmem:[%s600 + $0x34] sm:$0xf]
      %v2579 = vld [vmem:[%s600 + $0x38] sm:$0xf]
      %v2580 = vld [vmem:[%s600 + $0x3c] sm:$0xf]
      %v2581 = vld [vmem:[%s600 + $0x40] sm:$0xf]
      %v2582 = vld [vmem:[%s600 + $0x44] sm:$0xf]
      %v2583 = vld [vmem:[%s600 + $0x48] sm:$0xf]
      %v2584 = vld [vmem:[%s600 + $0x4c] sm:$0xf]
      %v2585 = vld [vmem:[%s600 + $0x50] sm:$0xf]
      %v2586 = vld [vmem:[%s600 + $0x54] sm:$0xf]
      %v2587 = vld [vmem:[%s600 + $0x58] sm:$0xf]
      %v2588 = vld [vmem:[%s600 + $0x5c] sm:$0xf]
      %v2589 = vld [vmem:[%s600 + $0x60] sm:$0xf]
      %v2590 = vld [vmem:[%s600 + $0x64] sm:$0xf]
      %v2591 = vld [vmem:[%s600 + $0x68] sm:$0xf]
      %v2592 = vld [vmem:[%s600 + $0x6c] sm:$0xf]
      %v2593 = vld [vmem:[%s600 + $0x70] sm:$0xf]
      %v2594 = vld [vmem:[%s600 + $0x74] sm:$0xf]
      %v2595 = vld [vmem:[%s600 + $0x78] sm:$0xf]
      %v2596 = vld [vmem:[%s600 + $0x7c] sm:$0xf]
      %v2597 = vld [vmem:[%s603] sm:$0x1]
      %v2599 = vlaneseq
      %v2600 = vshrl.u32 %v2599, 7
      %v2601 = vsub.s32 0, %v2600
      %v2602 = vrot.slane %v2597, %v2601
      %v2636 = vunpack.c.l.b16 %v2565
      %v2637 = vunpack.c.l.b16 %v2566
      %v2638 = vunpack.c.l.b16 %v2567
      %v2639 = vunpack.c.l.b16 %v2568
      %v2640 = vunpack.c.l.b16 %v2569
      %v2641 = vunpack.c.l.b16 %v2570
      %v2642 = vunpack.c.l.b16 %v2571
      %v2643 = vunpack.c.l.b16 %v2572
      %v2644 = vunpack.c.l.b16 %v2573
      %v2645 = vunpack.c.l.b16 %v2574
      %v2646 = vunpack.c.l.b16 %v2575
      %v2647 = vunpack.c.l.b16 %v2576
      %v2648 = vunpack.c.l.b16 %v2577
      %v2649 = vunpack.c.l.b16 %v2578
      %v2650 = vunpack.c.l.b16 %v2579
      %v2651 = vunpack.c.l.b16 %v2580
      %v2652 = vunpack.c.l.b16 %v2581
      %v2653 = vunpack.c.l.b16 %v2582
      %v2654 = vunpack.c.l.b16 %v2583
      %v2655 = vunpack.c.l.b16 %v2584
      %v2656 = vunpack.c.l.b16 %v2585
      %v2657 = vunpack.c.l.b16 %v2586
      %v2658 = vunpack.c.l.b16 %v2587
      %v2659 = vunpack.c.l.b16 %v2588
      %v2660 = vunpack.c.l.b16 %v2589
      %v2661 = vunpack.c.l.b16 %v2590
      %v2662 = vunpack.c.l.b16 %v2591
      %v2663 = vunpack.c.l.b16 %v2592
      %v2664 = vunpack.c.l.b16 %v2593
      %v2665 = vunpack.c.l.b16 %v2594
      %v2666 = vunpack.c.l.b16 %v2595
      %v2667 = vunpack.c.l.b16 %v2596
      %v2668 = vpack.c.b16 %v2637, %v2636
      %v2669 = vpack.c.b16 %v2639, %v2638
      %v2670 = vpack.c.b16 %v2641, %v2640
      %v2671 = vpack.c.b16 %v2643, %v2642
      %v2672 = vpack.c.b16 %v2645, %v2644
      %v2673 = vpack.c.b16 %v2647, %v2646
      %v2674 = vpack.c.b16 %v2649, %v2648
      %v2675 = vpack.c.b16 %v2651, %v2650
      %v2676 = vpack.c.b16 %v2653, %v2652
      %v2677 = vpack.c.b16 %v2655, %v2654
      %v2678 = vpack.c.b16 %v2657, %v2656
      %v2679 = vpack.c.b16 %v2659, %v2658
      %v2680 = vpack.c.b16 %v2661, %v2660
      %v2681 = vpack.c.b16 %v2663, %v2662
      %v2682 = vpack.c.b16 %v2665, %v2664
      %v2683 = vpack.c.b16 %v2667, %v2666
      %2700 = vmatprep.subr.bf16.mxu0 0
      %2701 = vmatpush1.bf16.msra.mxu0 %v2668
      %2702 = vmatprep.subr.bf16.mxu0 0
      %2703 = vmatpush1.bf16.msra.mxu0 %v2669
      %2704 = vmatprep.subr.bf16.mxu0 0
      %2705 = vmatpush1.bf16.msra.mxu0 %v2670
      %2706 = vmatprep.subr.bf16.mxu0 0
      %2707 = vmatpush1.bf16.msra.mxu0 %v2671
      %2708 = vmatprep.subr.bf16.mxu0 0
      %2709 = vmatpush1.bf16.msra.mxu0 %v2672
      %2710 = vmatprep.subr.bf16.mxu0 0
      %2711 = vmatpush1.bf16.msra.mxu0 %v2673
      %2712 = vmatprep.subr.bf16.mxu0 0
      %2713 = vmatpush1.bf16.msra.mxu0 %v2674
      %2714 = vmatprep.subr.bf16.mxu0 0
      %2715 = vmatpush1.bf16.msra.mxu0 %v2675
      %2716 = vmatprep.subr.bf16.mxu0 0
      %2717 = vmatpush1.bf16.msra.mxu0 %v2676
      %2718 = vmatprep.subr.bf16.mxu0 0
      %2719 = vmatpush1.bf16.msra.mxu0 %v2677
      %2720 = vmatprep.subr.bf16.mxu0 0
      %2721 = vmatpush1.bf16.msra.mxu0 %v2678
      %2722 = vmatprep.subr.bf16.mxu0 0
      %2723 = vmatpush1.bf16.msra.mxu0 %v2679
      %2724 = vmatprep.subr.bf16.mxu0 0
      %2725 = vmatpush1.bf16.msra.mxu0 %v2680
      %2726 = vmatprep.subr.bf16.mxu0 0
      %2727 = vmatpush1.bf16.msra.mxu0 %v2681
      %2728 = vmatprep.subr.bf16.mxu0 0
      %2729 = vmatpush1.bf16.msra.mxu0 %v2682
      %2730 = vmatprep.subr.bf16.mxu0 0
      %2731 = vmatpush1.bf16.msra.mxu0 %v2683
      %2732 = vmatprep.mubr.bf16.mxu0 %v2562
      %2733 = vmatmul.mubr.bf16.gmra.mrb[0].mxu0 %v2561
      %v2734 = vpop.f32.mrb[0].mxu0
      %v2735 = vadd.f32 %v2602, %v2734
      %v2736 = vpop.f32.mrb[0].mxu0
      %v2737 = vpop.f32.mrb[0].mxu0
      %v2738 = vadd.f32 %v2602, %v2737
      %v2739 = vpop.f32.mrb[0].mxu0
      %2740 = vmatprep.mubr.bf16.mxu0 %v2564
      %2741 = vmatmul.mubr.bf16.gmra.mrb[0].mxu0 %v2563
      %v2742 = vpop.f32.mrb[0].mxu0
      %v2743 = vadd.f32 %v2602, %v2742
      %v2744 = vpop.f32.mrb[0].mxu0
      %v2745 = vpop.f32.mrb[0].mxu0
      %v2746 = vadd.f32 %v2602, %v2745
      %v2747 = vpop.f32.mrb[0].mxu0
      %2748 = vdwg.mxu0
      %v2749 = vadd.f32 %v2256, %v2735
      %v2750 = vadd.f32 %v2257, %v2738
      %v2751 = vadd.f32 %v2258, %v2743
      %v2752 = vadd.f32 %v2259, %v2746
      %2753 = vst [vmem:[#allocation2] sm:$0xff] %v2749
      %2754 = vst [vmem:[#allocation2 + $0x8] sm:$0xff] %v2750
      %2755 = vst [vmem:[#allocation2 + $0x10] sm:$0xff] %v2751
      %2756 = vst [vmem:[#allocation2 + $0x18] sm:$0xff] %v2752
      %p2757 = scmp.eq.s32.totalorder %s24, 1
      // Predicated region
      $region77: #{simclr_vit_forward.4} parent=71 // pred_check
        %p2758 = pneg %p2757
      $region78: #{simclr_vit_forward.4} parent=71 // pred_check_branch
        %2760 = sbr.rel (%p2758) target = $region80
      $region79: #{simclr_vit_forward.4} parent=71 // pred_region
        %v2761 = vpack.c.bf16 %v2750, %v2749
        %v2762 = vpack.c.bf16 %v2752, %v2751
        %v2765 = vunpack.c.l.b16 %v2761
        %v2766 = vunpack.c.h.b16 %v2761
        %v2767 = vunpack.c.l.b16 %v2762
        %v2768 = vunpack.c.h.b16 %v2762
        %v2769 = vpack.c.b16 %v2765, %v2765
        %v2770 = vpack.c.b16 %v2766, %v2766
        %v2771 = vpack.c.b16 %v2767, %v2767
        %v2772 = vpack.c.b16 %v2768, %v2768
        %2777 = vst [vmem:[%s13] sm:$0xf] %v2769
        %2778 = vst [vmem:[%s13 + $0x4] sm:$0xf] %v2770
        %2779 = vst [vmem:[%s13 + $0x8] sm:$0xf] %v2771
        %2780 = vst [vmem:[%s13 + $0xc] sm:$0xf] %v2772
      $region80: #{simclr_vit_forward.4} parent=71 // pred_fallthru
        _
      // Predicated region
      $region81: #{simclr_vit_forward.4} parent=71 // pred_check
        %p2781 = pneg %p370
      $region82: #{simclr_vit_forward.4} parent=71 // pred_check_branch
        %2783 = sbr.rel (%p2781) target = $region84
      $region83: #{simclr_vit_forward.4} parent=71 // pred_region
        _
      $region84: #{simclr_vit_forward.4} parent=71 // pred_fallthru
        _
      // Predicated region
      $region85: #{simclr_vit_forward.4} parent=71 // pred_check
        %p2784 = pneg %p370
      $region86: #{simclr_vit_forward.4} parent=71 // pred_check_branch
        %2786 = sbr.rel (%p2784) target = $region88
      $region87: #{simclr_vit_forward.4} parent=71 // pred_region
        _
      $region88: #{simclr_vit_forward.4} parent=71 // pred_fallthru
        _
    $region72: #{simclr_vit_forward.4} parent=5 // pred_fallthru
      _
    %p2787 = scmp.le.s32.totalorder 2, %s19
    // Predicated region
    $region89: #{simclr_vit_forward.4} parent=5 // pred_check
      %p2788 = pneg %p2787
    $region90: #{simclr_vit_forward.4} parent=5 // pred_check_branch
      %2790 = sbr.rel (%p2788) target = $region92
    $region91: #{simclr_vit_forward.4} parent=5 // pred_region
      %s2791 = ssub.s32 %s19, 2
    $region92: #{simclr_vit_forward.4} parent=5 // pred_fallthru
      _
  $region6: #{simclr_vit_forward.4} parent=0 // loop_footer
    %s23 = sadd.s32 1, %s19
  $region7: #{simclr_vit_forward.4} parent=0 // loop_footer_branch
    %18 = sbr.rel target = $region3
  $region8: #{simclr_vit_forward.4} parent=0 // loop_exit
    _

</llo_original>
